<compile_context>
chip_gen: v6e
topology: v6e:2x2x1
jax: 0.10.0
libtpu: 0.0.40
codegen_flags: <defaults>
</compile_context>

<pallas_src>
import functools

import numpy as np
import jax
import jax.numpy as jnp
from jax import lax
from jax.experimental import pallas as pl
from jax.experimental.pallas import tpu as pltpu

BN_EPS = 1e-5
BITS = np.array([2.0, 4.0, 8.0], dtype=np.float32)   # candidate bit-widths for gumbel mix
_HIGHEST = lax.Precision.HIGHEST


def _border_masks(H, W):
    """mask[tap, h*W + w] = 1.0 iff the (kh, kw) tap reads an in-bounds pixel at (h, w)."""
    m = np.zeros((9, H, W), np.float32)
    for kh in range(3):
        for kw in range(3):
            dh, dw = kh - 1, kw - 1
            hs = slice(max(0, -dh), H - max(0, dh))
            ws = slice(max(0, -dw), W - max(0, dw))
            m[kh * 3 + kw, hs, ws] = 1.0
    return m.reshape(9, H * W)


def _block_kernel(x_ref, mw_ref, wp_ref, g0_ref, b0_ref, g1_ref, b1_ref,
                  out_ref,
                  s1_ref, ssq_ref, s2_ref, w1_ref, sc1_ref, beff_ref, acache_ref,
                  *, C, P, Nb, H, W, stride, Ho, Wo, M_total, cache_a):
    # x_ref    : (Nb*C, H*W)     Nb images packed on sublanes, spatial on lanes
    # mw_ref   : (9, Nb*C, H*W)  per-tap depthwise weight * border mask
    # wp_ref   : (C, P)          pointwise 1x1 weights
    # g0/b0    : (C, 1)          BN0 affine ;  g1/b1 : (P, 1)  BN1 affine
    # out_ref  : (Nb*P, Ho*Wo)   output block (NCHW-flattened, images stacked on rows)
    # scratch  : s1/ssq (Nb*C,1), s2 (Nb*C,Nb*C) per-slot moments;
    #            w1 (C,P), sc1 (P,1), beff (P,1) folded affine; acache cached dw output
    phase = pl.program_id(0)
    nb = pl.program_id(1)
    HW = H * W
    Mo = Ho * Wo
    NbC = Nb * C

    def dwconv():
        """Depthwise 3x3 ('same' padding) via lane rolls + pre-masked tap weights."""
        x = x_ref[...].astype(jnp.float32)              # (NbC, HW)
        acc = x * mw_ref[4]                             # center tap (mask == 1)
        for kh in range(3):
            for kw in range(3):
                tap = kh * 3 + kw
                off = (kh - 1) * W + (kw - 1)
                if off == 0:
                    continue
                acc = acc + pltpu.roll(x, shift=(-off) % HW, axis=1) * mw_ref[tap]
        if stride > 1:
            # TODO(synk): lane-strided subsample via reshape; swap for a selection
            # matmul on the MXU if the strided path becomes hot.
            acc = acc.reshape(NbC, Ho, stride, Wo, stride)[:, :, 0, :, 0].reshape(NbC, Mo)
        return acc

    # ---------------- phase 0: dw conv + one-pass batch statistics ----------------
    @pl.when(jnp.logical_and(phase == 0, nb == 0))
    def _init():
        s1_ref[...] = jnp.zeros_like(s1_ref)
        ssq_ref[...] = jnp.zeros_like(ssq_ref)
        s2_ref[...] = jnp.zeros_like(s2_ref)

    @pl.when(phase == 0)
    def _stats():
        a = dwconv()                                             # (NbC, Mo)
        if cache_a:
            acache_ref[nb] = a                                   # reuse in phase 1
        s1_ref[...] += jnp.sum(a, axis=1, keepdims=True)         # per-(slot,channel) sum
        ssq_ref[...] += jnp.sum(a * a, axis=1, keepdims=True)    # per-(slot,channel) sum^2
        # cross 2nd moment on the MXU; off-diagonal (cross-image-slot) blocks are
        # never read at fold time, so accumulating the full (NbC, NbC) product is fine.
        s2_ref[...] += lax.dot_general(a, a, (((1,), (1,)), ((), ())),
                                       preferred_element_type=jnp.float32,
                                       precision=_HIGHEST)

    # ------- phase 1, first block: fold BN0 + 1x1 + BN1 into (w1, sc1, b_eff) -------
    @pl.when(jnp.logical_and(phase == 1, nb == 0))
    def _fold():
        inv_m = 1.0 / float(M_total)
        # reduce per-image-slot moments to per-channel moments (tiny, done once)
        s1f = s1_ref[...]
        ssqf = ssq_ref[...]
        s2f = s2_ref[...]
        s1 = s1f[0:C]
        ssq = ssqf[0:C]
        s2 = s2f[0:C, 0:C]
        for i in range(1, Nb):
            s1 = s1 + s1f[i * C:(i + 1) * C]
            ssq = ssq + ssqf[i * C:(i + 1) * C]
            s2 = s2 + s2f[i * C:(i + 1) * C, i * C:(i + 1) * C]

        wp = wp_ref[...].astype(jnp.float32)                     # (C, P)
        g0 = g0_ref[...]
        b0 = b0_ref[...]                                         # (C, 1)
        g1 = g1_ref[...]
        b1 = b1_ref[...]                                         # (P, 1)

        mu0 = s1 * inv_m                                         # (C, 1)
        var0 = jnp.maximum(ssq * inv_m - mu0 * mu0, 0.0)
        sc0 = g0 * lax.rsqrt(var0 + BN_EPS)                      # (C, 1)
        w1 = sc0 * wp                                            # (C, P) BN0 folded into 1x1
        s2m = s2 * inv_m                                         # (C, C) = E[a a^T]

        # var1[p] = w1[:,p]^T E[aa^T] w1[:,p] - (mu0^T w1[:,p])^2   (exact batch stats of z)
        B = lax.dot_general(w1, s2m, (((0,), (0,)), ((), ())),
                            preferred_element_type=jnp.float32, precision=_HIGHEST)  # (P,C)
        Q = lax.dot_general(B, w1, (((1,), (0,)), ((), ())),
                            preferred_element_type=jnp.float32, precision=_HIGHEST)  # (P,P)
        ri = lax.broadcasted_iota(jnp.int32, (P, P), 0)
        ci = lax.broadcasted_iota(jnp.int32, (P, P), 1)
        qf = jnp.sum(jnp.where(ri == ci, Q, 0.0), axis=1, keepdims=True)              # (P,1)
        q = lax.dot_general(w1, mu0, (((0,), (0,)), ((), ())),
                            preferred_element_type=jnp.float32, precision=_HIGHEST)   # (P,1)
        var1 = jnp.maximum(qf - q * q, 0.0)
        sc1 = g1 * lax.rsqrt(var1 + BN_EPS)                      # (P, 1)

        mu1 = lax.dot_general(wp, b0, (((0,), (0,)), ((), ())),
                              preferred_element_type=jnp.float32, precision=_HIGHEST)   # (P,1)
        bias0 = lax.dot_general(wp, b0 - mu0 * sc0, (((0,), (0,)), ((), ())),
                                preferred_element_type=jnp.float32, precision=_HIGHEST) # (P,1)

        w1_ref[...] = w1
        sc1_ref[...] = sc1
        beff_ref[...] = (bias0 - mu1) * sc1 + b1                 # (P, 1)

    # ---------------- phase 1: apply folded affine, emit output ----------------
    @pl.when(phase == 1)
    def _emit():
        if cache_a:
            a = acache_ref[nb]                                   # (NbC, Mo) cached
        else:
            a = dwconv()                                         # recompute (large-N fallback)
        w1 = w1_ref[...]                                         # (C, P)
        sc1 = sc1_ref[...]                                       # (P, 1)
        beff = beff_ref[...]                                     # (P, 1)
        for i in range(Nb):                                      # static unroll over image slots
            a_i = a[i * C:(i + 1) * C, :]                        # (C, Mo)
            z = lax.dot_general(w1, a_i, (((0,), (0,)), ((), ())),
                                preferred_element_type=jnp.float32,
                                precision=_HIGHEST)              # (P, Mo) on the MXU
            out_ref[i * P:(i + 1) * P, :] = (sc1 * z + beff).astype(out_ref.dtype)


def _gumbel_complexity(alpha, temp, is_hard, key, num_weights):
    """EdMIPS-style expected bit complexity via gumbel-softmax over bit choices."""
    u = jax.random.uniform(key, alpha.shape, minval=1e-6, maxval=1.0 - 1e-6)
    g = -jnp.log(-jnp.log(u))
    soft = jax.nn.softmax((alpha + g) / temp)
    if is_hard:
        hard = jax.nn.one_hot(jnp.argmax(soft), alpha.shape[0], dtype=soft.dtype)
        w = hard + soft - jax.lax.stop_gradient(soft)
    else:
        w = soft
    return jnp.sum(w * jnp.asarray(BITS)) * float(num_weights)


def basic_block_gumbel(x_nchw, params, temp, is_hard, stride=1, rng_key=None):
    """Forward pass of BasicBlockGumbel. Returns (out_nchw, w_complexity)."""
    N, C, H, W = x_nchw.shape
    wdw = params["conv0_w"]       # (C, 1, 3, 3)  depthwise
    wpw = params["conv1_w"]       # (P, C, 1, 1)  pointwise
    P = wpw.shape[0]
    if stride > 1:
        assert H % stride == 0 and W % stride == 0, "stride>1 path assumes even spatial dims"
    Ho = (H - 1) // stride + 1
    Wo = (W - 1) // stride + 1
    Mo = Ho * Wo
    HW = H * W

    # Pack Nb images per grid step so Nb*C fills the 8 sublanes of a vreg.
    Nb = max(1, 8 // C) if C < 8 else 1
    Nb = min(Nb, N)
    while N % Nb != 0:                      # TODO(synk): pad the batch instead of shrinking Nb
        Nb -= 1
    NB = N // Nb
    NbC = Nb * C
    if NB > 1 and ((NbC % 8 != 0) or ((Nb * P) % 8 != 0)):
        Nb, NB = N, 1                       # whole batch per block keeps BlockSpecs aligned
        NbC = Nb * C

    # Cache dw output across phases when it fits comfortably (v7x 64 MiB budget in mind).
    cache_a = (N * C * Mo * 4) <= (16 * 1024 * 1024)

    # Layout plumbing only — contiguous reshapes (no HBM transpose/pad of activations).
    x2 = x_nchw.reshape(N * C, HW)
    # masked depthwise tap weights: mw[tap, n*C+c, m] = wdw[c, tap] * border_mask[tap, m]
    mask = jnp.asarray(_border_masks(H, W))                               # (9, HW)
    wdw9 = wdw.reshape(C, 9).astype(jnp.float32)                          # (C, 9)
    mw = jnp.transpose(wdw9)[:, :, None] * mask[:, None, :]               # (9, C, HW)
    mw = jnp.tile(mw, (1, Nb, 1))                                         # (9, Nb*C, HW)
    wp = jnp.transpose(wpw.reshape(P, C)).astype(jnp.float32)             # (C, P)
    g0 = params["bn0_gamma"].reshape(C, 1).astype(jnp.float32)
    b0 = params["bn0_beta"].reshape(C, 1).astype(jnp.float32)
    g1 = params["bn1_gamma"].reshape(P, 1).astype(jnp.float32)
    b1 = params["bn1_beta"].reshape(P, 1).astype(jnp.float32)

    kernel = functools.partial(_block_kernel, C=C, P=P, Nb=Nb, H=H, W=W,
                               stride=stride, Ho=Ho, Wo=Wo,
                               M_total=N * Ho * Wo, cache_a=cache_a)

    # With the dw output cached, phase 1 parks x on block 0 (no re-read of the input).
    x_map = (lambda ph, nb: (nb * (1 - ph), 0)) if cache_a else (lambda ph, nb: (nb, 0))
    acache_shape = (NB, NbC, Mo) if cache_a else (1, NbC, 128)

    out2 = pl.pallas_call(
        kernel,
        out_shape=jax.ShapeDtypeStruct((N * P, Mo), x_nchw.dtype),
        grid_spec=pltpu.PrefetchScalarGridSpec(
            num_scalar_prefetch=0,
            grid=(2, NB),                   # (phase, image-block): stats sweep, then emit sweep
            in_specs=[
                pl.BlockSpec((NbC, HW), x_map),
                pl.BlockSpec((9, NbC, HW), lambda ph, nb: (0, 0, 0)),
                pl.BlockSpec((C, P), lambda ph, nb: (0, 0)),
                pl.BlockSpec((C, 1), lambda ph, nb: (0, 0)),
                pl.BlockSpec((C, 1), lambda ph, nb: (0, 0)),
                pl.BlockSpec((P, 1), lambda ph, nb: (0, 0)),
                pl.BlockSpec((P, 1), lambda ph, nb: (0, 0)),
            ],
            # Phase 0 parks the output on block 0: the block index never changes during
            # the stats sweep, so the uninitialized buffer is never flushed; phase 1
            # writes each block exactly once right before it is flushed.
            out_specs=pl.BlockSpec((Nb * P, Mo), lambda ph, nb: (nb * ph, 0)),
            scratch_shapes=[
                pltpu.VMEM((NbC, 1), jnp.float32),       # per-slot sum(a)
                pltpu.VMEM((NbC, 1), jnp.float32),       # per-slot sum(a^2)
                pltpu.VMEM((NbC, NbC), jnp.float32),     # per-slot sum(a a^T)
                pltpu.VMEM((C, P), jnp.float32),         # folded w1 = sc0 * wp
                pltpu.VMEM((P, 1), jnp.float32),         # folded sc1
                pltpu.VMEM((P, 1), jnp.float32),         # folded bias
                pltpu.VMEM(acache_shape, jnp.float32),   # cached dw output
            ],
        ),
        compiler_params=pltpu.CompilerParams(
            # Both grid axes carry the stats / fold scratch -> sequential on one core.
            # TODO(synk): on v7x, split the image axis over the 2 TCs with per-core
            # partial stats and a CMEM + core_barrier reduction before the emit sweep.
            dimension_semantics=("arbitrary", "arbitrary"),
            vmem_limit_bytes=32 * 1024 * 1024,
        ),
    )(x2, mw, wp, g0, b0, g1, b1)

    out = out2.reshape(N, P, Ho, Wo)        # already NCHW, free contiguous reshape

    # --- gumbel weight-complexity (scalar glue; key supplied by caller) ---
    if rng_key is None:
        rng_key = jax.random.PRNGKey(0)     # TODO(synk): caller should pass a fresh key per forward
    k0, k1 = jax.random.split(rng_key)
    wc0 = _gumbel_complexity(params["alpha0"], temp, is_hard, k0, wdw.size)
    wc1 = _gumbel_complexity(params["alpha1"], temp, is_hard, k1, wpw.size)
    return out, wc0 + wc1


def _reference(x_nchw, params, stride=1):
    """Pure-JAX reference for the conv/BN path (training-mode batch stats)."""
    C = x_nchw.shape[1]
    out = jax.lax.conv_general_dilated(
        x_nchw, params["conv0_w"], (stride, stride), ((1, 1), (1, 1)),
        feature_group_count=C, dimension_numbers=("NCHW", "OIHW", "NCHW"))
    mu = jnp.mean(out, axis=(0, 2, 3), keepdims=True)
    var = jnp.mean((out - mu) ** 2, axis=(0, 2, 3), keepdims=True)
    out = (out - mu) * jax.lax.rsqrt(var + BN_EPS)
    out = out * params["bn0_gamma"][None, :, None, None] + params["bn0_beta"][None, :, None, None]
    out = jax.lax.conv_general_dilated(
        out, params["conv1_w"], (1, 1), ((0, 0), (0, 0)),
        dimension_numbers=("NCHW", "OIHW", "NCHW"))
    mu = jnp.mean(out, axis=(0, 2, 3), keepdims=True)
    var = jnp.mean((out - mu) ** 2, axis=(0, 2, 3), keepdims=True)
    out = (out - mu) * jax.lax.rsqrt(var + BN_EPS)
    out = out * params["bn1_gamma"][None, :, None, None] + params["bn1_beta"][None, :, None, None]
    return out


if __name__ == "__main__":
    key = jax.random.PRNGKey(0)
    N, C, H, W = 2, 4, 16, 16    # inplanes = 4
    P = 8                        # planes   = 8
    stride = 1

    ks = jax.random.split(key, 9)
    x = jax.random.normal(ks[0], (N, C, H, W), dtype=jnp.float32)
    params = {
        "conv0_w": 0.1 * jax.random.normal(ks[1], (C, 1, 3, 3), jnp.float32),
        "conv1_w": 0.1 * jax.random.normal(ks[2], (P, C, 1, 1), jnp.float32),
        "bn0_gamma": 1.0 + 0.1 * jax.random.normal(ks[3], (C,), jnp.float32),
        "bn0_beta": 0.1 * jax.random.normal(ks[4], (C,), jnp.float32),
        "bn1_gamma": 1.0 + 0.1 * jax.random.normal(ks[5], (P,), jnp.float32),
        "bn1_beta": 0.1 * jax.random.normal(ks[6], (P,), jnp.float32),
        "alpha0": 0.01 * jax.random.normal(ks[7], (3,), jnp.float32),
        "alpha1": 0.01 * jax.random.normal(ks[7], (3,), jnp.float32),
    }

    temp = 1.0
    is_hard = False

    out, w_complexity = basic_block_gumbel(x, params, temp, is_hard,
                                           stride=stride, rng_key=ks[8])
    jax.block_until_ready((out, w_complexity))

    ref = _reference(x, params, stride=stride)
    assert out.shape == (N, P, H, W), out.shape
    assert jnp.allclose(out, ref, atol=2e-3, rtol=2e-3), "mismatch vs reference"

    print("KERNEL_OK")
</pallas_src>

<mosaic_0001>
module attributes {stable_mosaic.version = 11 : i64} {
  func.func @_block_kernel(%arg0: i32, %arg1: i32, %arg2: memref<8x256xf32, #tpu.memory_space<vmem>>, %arg3: memref<9x8x256xf32, #tpu.memory_space<vmem>>, %arg4: memref<4x8xf32, #tpu.memory_space<vmem>>, %arg5: memref<4x1xf32, #tpu.memory_space<vmem>>, %arg6: memref<4x1xf32, #tpu.memory_space<vmem>>, %arg7: memref<8x1xf32, #tpu.memory_space<vmem>>, %arg8: memref<8x1xf32, #tpu.memory_space<vmem>>, %arg9: memref<16x256xf32, #tpu.memory_space<vmem>>, %arg10: memref<8x1xf32, #tpu.memory_space<vmem>>, %arg11: memref<8x1xf32, #tpu.memory_space<vmem>>, %arg12: memref<8x8xf32, #tpu.memory_space<vmem>>, %arg13: memref<4x8xf32, #tpu.memory_space<vmem>>, %arg14: memref<8x1xf32, #tpu.memory_space<vmem>>, %arg15: memref<8x1xf32, #tpu.memory_space<vmem>>, %arg16: memref<1x8x256xf32, #tpu.memory_space<vmem>>) attributes {dimension_semantics = [#tpu.dimension_semantics<arbitrary>, #tpu.dimension_semantics<arbitrary>], iteration_bounds = array<i64: 2, 1>, scalar_prefetch = 0 : i64, scratch_operands = 7 : i64, tpu.core_type = #tpu.core_type<tc>, window_params = [{transform_indices = @transform_0, window_bounds = array<i64: 8, 256>}, {pipeline_mode = #tpu.pipeline_mode<synchronous>, transform_indices = @transform_1, window_bounds = array<i64: 9, 8, 256>}, {pipeline_mode = #tpu.pipeline_mode<synchronous>, transform_indices = @transform_2, window_bounds = array<i64: 4, 8>}, {pipeline_mode = #tpu.pipeline_mode<synchronous>, transform_indices = @transform_3, window_bounds = array<i64: 4, 1>}, {pipeline_mode = #tpu.pipeline_mode<synchronous>, transform_indices = @transform_4, window_bounds = array<i64: 4, 1>}, {pipeline_mode = #tpu.pipeline_mode<synchronous>, transform_indices = @transform_5, window_bounds = array<i64: 8, 1>}, {pipeline_mode = #tpu.pipeline_mode<synchronous>, transform_indices = @transform_6, window_bounds = array<i64: 8, 1>}, {transform_indices = @transform_7, window_bounds = array<i64: 16, 256>}]} {
    %c0_i32 = arith.constant 0 : i32
    %0 = arith.cmpi eq, %arg0, %c0_i32 : i32
    %c0_i32_0 = arith.constant 0 : i32
    %1 = arith.cmpi eq, %arg1, %c0_i32_0 : i32
    %2 = arith.andi %0, %1 : i1
    %3 = arith.extui %2 : i1 to i32
    %c0_i32_1 = arith.constant 0 : i32
    %4 = arith.cmpi ne, %3, %c0_i32_1 : i32
    scf.if %4 {
      %cst = arith.constant 0.000000e+00 : f32
      %16 = vector.broadcast %cst : f32 to vector<8x1xf32>
      %c0 = arith.constant 0 : index
      %c0_8 = arith.constant 0 : index
      %17 = vector.load %arg10[%c0, %c0_8] : memref<8x1xf32, #tpu.memory_space<vmem>>, vector<8x1xf32>
      tpu.vector_store %arg10[%c0, %c0_8], %16 {strides = array<i32>} : memref<8x1xf32, #tpu.memory_space<vmem>>, vector<8x1xf32>,
      %cst_9 = arith.constant 0.000000e+00 : f32
      %18 = vector.broadcast %cst_9 : f32 to vector<8x1xf32>
      %c0_10 = arith.constant 0 : index
      %c0_11 = arith.constant 0 : index
      %19 = vector.load %arg11[%c0_10, %c0_11] : memref<8x1xf32, #tpu.memory_space<vmem>>, vector<8x1xf32>
      tpu.vector_store %arg11[%c0_10, %c0_11], %18 {strides = array<i32>} : memref<8x1xf32, #tpu.memory_space<vmem>>, vector<8x1xf32>,
      %cst_12 = arith.constant 0.000000e+00 : f32
      %20 = vector.broadcast %cst_12 : f32 to vector<8x8xf32>
      %c0_13 = arith.constant 0 : index
      %c0_14 = arith.constant 0 : index
      %21 = vector.load %arg12[%c0_13, %c0_14] : memref<8x8xf32, #tpu.memory_space<vmem>>, vector<8x8xf32>
      tpu.vector_store %arg12[%c0_13, %c0_14], %20 {strides = array<i32>} : memref<8x8xf32, #tpu.memory_space<vmem>>, vector<8x8xf32>,
    } else {
    }
    %c0_i32_2 = arith.constant 0 : i32
    %5 = arith.cmpi eq, %arg0, %c0_i32_2 : i32
    %6 = arith.extui %5 : i1 to i32
    %c0_i32_3 = arith.constant 0 : i32
    %7 = arith.cmpi ne, %6, %c0_i32_3 : i32
    scf.if %7 {
      %c0 = arith.constant 0 : index
      %c0_8 = arith.constant 0 : index
      %16 = vector.load %arg2[%c0, %c0_8] : memref<8x256xf32, #tpu.memory_space<vmem>>, vector<8x256xf32>
      %c4 = arith.constant 4 : index
      %c0_9 = arith.constant 0 : index
      %c0_10 = arith.constant 0 : index
      %17 = vector.load %arg3[%c4, %c0_9, %c0_10] : memref<9x8x256xf32, #tpu.memory_space<vmem>>, vector<1x8x256xf32>
      %18 = vector.shape_cast %17 : vector<1x8x256xf32> to vector<8x256xf32>
      %19 = arith.mulf %16, %18 : vector<8x256xf32>
      %c17_i32 = arith.constant 17 : i32
      %20 = tpu.dynamic_rotate %16 by %c17_i32 dim 1 : vector<8x256xf32>, i32 -> vector<8x256xf32>
      %c0_11 = arith.constant 0 : index
      %c0_12 = arith.constant 0 : index
      %c0_13 = arith.constant 0 : index
      %21 = vector.load %arg3[%c0_11, %c0_12, %c0_13] : memref<9x8x256xf32, #tpu.memory_space<vmem>>, vector<1x8x256xf32>
      %22 = vector.shape_cast %21 : vector<1x8x256xf32> to vector<8x256xf32>
      %23 = arith.mulf %20, %22 : vector<8x256xf32>
      %24 = arith.addf %19, %23 : vector<8x256xf32>
      %c16_i32 = arith.constant 16 : i32
      %25 = tpu.dynamic_rotate %16 by %c16_i32 dim 1 : vector<8x256xf32>, i32 -> vector<8x256xf32>
      %c1 = arith.constant 1 : index
      %c0_14 = arith.constant 0 : index
      %c0_15 = arith.constant 0 : index
      %26 = vector.load %arg3[%c1, %c0_14, %c0_15] : memref<9x8x256xf32, #tpu.memory_space<vmem>>, vector<1x8x256xf32>
      %27 = vector.shape_cast %26 : vector<1x8x256xf32> to vector<8x256xf32>
      %28 = arith.mulf %25, %27 : vector<8x256xf32>
      %29 = arith.addf %24, %28 : vector<8x256xf32>
      %c15_i32 = arith.constant 15 : i32
      %30 = tpu.dynamic_rotate %16 by %c15_i32 dim 1 : vector<8x256xf32>, i32 -> vector<8x256xf32>
      %c2 = arith.constant 2 : index
      %c0_16 = arith.constant 0 : index
      %c0_17 = arith.constant 0 : index
      %31 = vector.load %arg3[%c2, %c0_16, %c0_17] : memref<9x8x256xf32, #tpu.memory_space<vmem>>, vector<1x8x256xf32>
      %32 = vector.shape_cast %31 : vector<1x8x256xf32> to vector<8x256xf32>
      %33 = arith.mulf %30, %32 : vector<8x256xf32>
      %34 = arith.addf %29, %33 : vector<8x256xf32>
      %c1_i32_18 = arith.constant 1 : i32
      %35 = tpu.dynamic_rotate %16 by %c1_i32_18 dim 1 : vector<8x256xf32>, i32 -> vector<8x256xf32>
      %c3 = arith.constant 3 : index
      %c0_19 = arith.constant 0 : index
      %c0_20 = arith.constant 0 : index
      %36 = vector.load %arg3[%c3, %c0_19, %c0_20] : memref<9x8x256xf32, #tpu.memory_space<vmem>>, vector<1x8x256xf32>
      %37 = vector.shape_cast %36 : vector<1x8x256xf32> to vector<8x256xf32>
      %38 = arith.mulf %35, %37 : vector<8x256xf32>
      %39 = arith.addf %34, %38 : vector<8x256xf32>
      %c255_i32 = arith.constant 255 : i32
      %40 = tpu.dynamic_rotate %16 by %c255_i32 dim 1 : vector<8x256xf32>, i32 -> vector<8x256xf32>
      %c5 = arith.constant 5 : index
      %c0_21 = arith.constant 0 : index
      %c0_22 = arith.constant 0 : index
      %41 = vector.load %arg3[%c5, %c0_21, %c0_22] : memref<9x8x256xf32, #tpu.memory_space<vmem>>, vector<1x8x256xf32>
      %42 = vector.shape_cast %41 : vector<1x8x256xf32> to vector<8x256xf32>
      %43 = arith.mulf %40, %42 : vector<8x256xf32>
      %44 = arith.addf %39, %43 : vector<8x256xf32>
      %c241_i32 = arith.constant 241 : i32
      %45 = tpu.dynamic_rotate %16 by %c241_i32 dim 1 : vector<8x256xf32>, i32 -> vector<8x256xf32>
      %c6 = arith.constant 6 : index
      %c0_23 = arith.constant 0 : index
      %c0_24 = arith.constant 0 : index
      %46 = vector.load %arg3[%c6, %c0_23, %c0_24] : memref<9x8x256xf32, #tpu.memory_space<vmem>>, vector<1x8x256xf32>
      %47 = vector.shape_cast %46 : vector<1x8x256xf32> to vector<8x256xf32>
      %48 = arith.mulf %45, %47 : vector<8x256xf32>
      %49 = arith.addf %44, %48 : vector<8x256xf32>
      %c240_i32 = arith.constant 240 : i32
      %50 = tpu.dynamic_rotate %16 by %c240_i32 dim 1 : vector<8x256xf32>, i32 -> vector<8x256xf32>
      %c7 = arith.constant 7 : index
      %c0_25 = arith.constant 0 : index
      %c0_26 = arith.constant 0 : index
      %51 = vector.load %arg3[%c7, %c0_25, %c0_26] : memref<9x8x256xf32, #tpu.memory_space<vmem>>, vector<1x8x256xf32>
      %52 = vector.shape_cast %51 : vector<1x8x256xf32> to vector<8x256xf32>
      %53 = arith.mulf %50, %52 : vector<8x256xf32>
      %54 = arith.addf %49, %53 : vector<8x256xf32>
      %c239_i32 = arith.constant 239 : i32
      %55 = tpu.dynamic_rotate %16 by %c239_i32 dim 1 : vector<8x256xf32>, i32 -> vector<8x256xf32>
      %c8 = arith.constant 8 : index
      %c0_27 = arith.constant 0 : index
      %c0_28 = arith.constant 0 : index
      %56 = vector.load %arg3[%c8, %c0_27, %c0_28] : memref<9x8x256xf32, #tpu.memory_space<vmem>>, vector<1x8x256xf32>
      %57 = vector.shape_cast %56 : vector<1x8x256xf32> to vector<8x256xf32>
      %58 = arith.mulf %55, %57 : vector<8x256xf32>
      %59 = arith.addf %54, %58 : vector<8x256xf32>
      %60 = arith.index_cast %arg1 : i32 to index
      %c0_29 = arith.constant 0 : index
      %c0_30 = arith.constant 0 : index
      %61 = vector.load %arg16[%60, %c0_29, %c0_30] : memref<1x8x256xf32, #tpu.memory_space<vmem>>, vector<1x8x256xf32>
      %62 = vector.shape_cast %61 : vector<1x8x256xf32> to vector<8x256xf32>
      %63 = vector.shape_cast %59 : vector<8x256xf32> to vector<1x8x256xf32>
      tpu.vector_store %arg16[%60, %c0_29, %c0_30], %63 {strides = array<i32>} : memref<1x8x256xf32, #tpu.memory_space<vmem>>, vector<1x8x256xf32>,
      %c0_31 = arith.constant 0 : index
      %c0_32 = arith.constant 0 : index
      %64 = vector.load %arg10[%c0_31, %c0_32] : memref<8x1xf32, #tpu.memory_space<vmem>>, vector<8x1xf32>
      %cst = arith.constant dense<0.000000e+00> : vector<8xf32>
      %65 = vector.multi_reduction <add>, %59, %cst [1] : vector<8x256xf32> to vector<8xf32>
      %66 = vector.shape_cast %65 : vector<8xf32> to vector<8x1xf32>
      %67 = arith.addf %64, %66 : vector<8x1xf32>
      %c0_33 = arith.constant 0 : index
      %c0_34 = arith.constant 0 : index
      %68 = vector.load %arg10[%c0_33, %c0_34] : memref<8x1xf32, #tpu.memory_space<vmem>>, vector<8x1xf32>
      tpu.vector_store %arg10[%c0_33, %c0_34], %67 {strides = array<i32>} : memref<8x1xf32, #tpu.memory_space<vmem>>, vector<8x1xf32>,
      %c0_35 = arith.constant 0 : index
      %c0_36 = arith.constant 0 : index
      %69 = vector.load %arg11[%c0_35, %c0_36] : memref<8x1xf32, #tpu.memory_space<vmem>>, vector<8x1xf32>
      %70 = arith.mulf %59, %59 : vector<8x256xf32>
      %cst_37 = arith.constant dense<0.000000e+00> : vector<8xf32>
      %71 = vector.multi_reduction <add>, %70, %cst_37 [1] : vector<8x256xf32> to vector<8xf32>
      %72 = vector.shape_cast %71 : vector<8xf32> to vector<8x1xf32>
      %73 = arith.addf %69, %72 : vector<8x1xf32>
      %c0_38 = arith.constant 0 : index
      %c0_39 = arith.constant 0 : index
      %74 = vector.load %arg11[%c0_38, %c0_39] : memref<8x1xf32, #tpu.memory_space<vmem>>, vector<8x1xf32>
      tpu.vector_store %arg11[%c0_38, %c0_39], %73 {strides = array<i32>} : memref<8x1xf32, #tpu.memory_space<vmem>>, vector<8x1xf32>,
      %c0_40 = arith.constant 0 : index
      %c0_41 = arith.constant 0 : index
      %75 = vector.load %arg12[%c0_40, %c0_41] : memref<8x8xf32, #tpu.memory_space<vmem>>, vector<8x8xf32>
      %cst_42 = arith.constant dense<0.000000e+00> : vector<8x8xf32>
      %76 = tpu.matmul %59, %59, %cst_42 {dimension_numbers = #tpu.dot_dimension_numbers<[1], [1], [0], [0], [0, 0, 1, 0], [], []>, precision = #tpu.contract_precision<fp32>} : vector<8x256xf32>, vector<8x256xf32>, vector<8x8xf32> -> vector<8x8xf32>
      %77 = arith.addf %75, %76 : vector<8x8xf32>
      %c0_43 = arith.constant 0 : index
      %c0_44 = arith.constant 0 : index
      %78 = vector.load %arg12[%c0_43, %c0_44] : memref<8x8xf32, #tpu.memory_space<vmem>>, vector<8x8xf32>
      tpu.vector_store %arg12[%c0_43, %c0_44], %77 {strides = array<i32>} : memref<8x8xf32, #tpu.memory_space<vmem>>, vector<8x8xf32>,
    } else {
    }
    %c1_i32 = arith.constant 1 : i32
    %8 = arith.cmpi eq, %arg0, %c1_i32 : i32
    %c0_i32_4 = arith.constant 0 : i32
    %9 = arith.cmpi eq, %arg1, %c0_i32_4 : i32
    %10 = arith.andi %8, %9 : i1
    %11 = arith.extui %10 : i1 to i32
    %c0_i32_5 = arith.constant 0 : i32
    %12 = arith.cmpi ne, %11, %c0_i32_5 : i32
    scf.if %12 {
      %c0 = arith.constant 0 : index
      %c0_8 = arith.constant 0 : index
      %16 = vector.load %arg10[%c0, %c0_8] : memref<8x1xf32, #tpu.memory_space<vmem>>, vector<8x1xf32>
      %c0_9 = arith.constant 0 : index
      %c0_10 = arith.constant 0 : index
      %17 = vector.load %arg11[%c0_9, %c0_10] : memref<8x1xf32, #tpu.memory_space<vmem>>, vector<8x1xf32>
      %c0_11 = arith.constant 0 : index
      %c0_12 = arith.constant 0 : index
      %18 = vector.load %arg12[%c0_11, %c0_12] : memref<8x8xf32, #tpu.memory_space<vmem>>, vector<8x8xf32>
      %19 = vector.extract_strided_slice %16 {offsets = [0, 0], sizes = [4, 1], strides = [1, 1]} : vector<8x1xf32> to vector<4x1xf32>
      %20 = vector.extract_strided_slice %17 {offsets = [0, 0], sizes = [4, 1], strides = [1, 1]} : vector<8x1xf32> to vector<4x1xf32>
      %21 = vector.extract_strided_slice %18 {offsets = [0, 0], sizes = [4, 4], strides = [1, 1]} : vector<8x8xf32> to vector<4x4xf32>
      %22 = vector.extract_strided_slice %16 {offsets = [4, 0], sizes = [4, 1], strides = [1, 1]} : vector<8x1xf32> to vector<4x1xf32>
      %23 = arith.addf %19, %22 : vector<4x1xf32>
      %24 = vector.extract_strided_slice %17 {offsets = [4, 0], sizes = [4, 1], strides = [1, 1]} : vector<8x1xf32> to vector<4x1xf32>
      %25 = arith.addf %20, %24 : vector<4x1xf32>
      %26 = vector.extract_strided_slice %18 {offsets = [4, 4], sizes = [4, 4], strides = [1, 1]} : vector<8x8xf32> to vector<4x4xf32>
      %27 = arith.addf %21, %26 : vector<4x4xf32>
      %c0_13 = arith.constant 0 : index
      %c0_14 = arith.constant 0 : index
      %28 = vector.load %arg4[%c0_13, %c0_14] : memref<4x8xf32, #tpu.memory_space<vmem>>, vector<4x8xf32>
      %c0_15 = arith.constant 0 : index
      %c0_16 = arith.constant 0 : index
      %29 = vector.load %arg5[%c0_15, %c0_16] : memref<4x1xf32, #tpu.memory_space<vmem>>, vector<4x1xf32>
      %c0_17 = arith.constant 0 : index
      %c0_18 = arith.constant 0 : index
      %30 = vector.load %arg6[%c0_17, %c0_18] : memref<4x1xf32, #tpu.memory_space<vmem>>, vector<4x1xf32>
      %c0_19 = arith.constant 0 : index
      %c0_20 = arith.constant 0 : index
      %31 = vector.load %arg7[%c0_19, %c0_20] : memref<8x1xf32, #tpu.memory_space<vmem>>, vector<8x1xf32>
      %c0_21 = arith.constant 0 : index
      %c0_22 = arith.constant 0 : index
      %32 = vector.load %arg8[%c0_21, %c0_22] : memref<8x1xf32, #tpu.memory_space<vmem>>, vector<8x1xf32>
      %cst = arith.constant 0.001953125 : f32
      %33 = vector.broadcast %cst : f32 to vector<4x1xf32>
      %34 = arith.mulf %23, %33 : vector<4x1xf32>
      %cst_23 = arith.constant 0.001953125 : f32
      %35 = vector.broadcast %cst_23 : f32 to vector<4x1xf32>
      %36 = arith.mulf %25, %35 : vector<4x1xf32>
      %37 = arith.mulf %34, %34 : vector<4x1xf32>
      %38 = arith.subf %36, %37 : vector<4x1xf32>
      %cst_24 = arith.constant 0.000000e+00 : f32
      %39 = vector.broadcast %cst_24 : f32 to vector<4x1xf32>
      %40 = arith.maximumf %38, %39 : vector<4x1xf32>
      %cst_25 = arith.constant 9.99999974E-6 : f32
      %41 = vector.broadcast %cst_25 : f32 to vector<4x1xf32>
      %42 = arith.addf %40, %41 : vector<4x1xf32>
      %43 = math.rsqrt %42 : vector<4x1xf32>
      %44 = arith.mulf %29, %43 : vector<4x1xf32>
      %45 = vector.broadcast %44 : vector<4x1xf32> to vector<4x8xf32>
      %46 = arith.mulf %45, %28 : vector<4x8xf32>
      %cst_26 = arith.constant 0.001953125 : f32
      %47 = vector.broadcast %cst_26 : f32 to vector<4x4xf32>
      %48 = arith.mulf %27, %47 : vector<4x4xf32>
      %cst_27 = arith.constant dense<0.000000e+00> : vector<8x4xf32>
      %49 = tpu.matmul %46, %48, %cst_27 {dimension_numbers = #tpu.dot_dimension_numbers<[0], [0], [1], [1], [0, 1, 1, 1], [], []>, precision = #tpu.contract_precision<fp32>} : vector<4x8xf32>, vector<4x4xf32>, vector<8x4xf32> -> vector<8x4xf32>
      %cst_28 = arith.constant dense<0.000000e+00> : vector<8x8xf32>
      %50 = tpu.matmul %49, %46, %cst_28 {dimension_numbers = #tpu.dot_dimension_numbers<[1], [0], [0], [1], [0, 0, 1, 1], [], []>, precision = #tpu.contract_precision<fp32>} : vector<8x4xf32>, vector<4x8xf32>, vector<8x8xf32> -> vector<8x8xf32>
      %51 = tpu.iota {dimensions = array<i32: 0>} : vector<8x8xi32>
      %52 = tpu.iota {dimensions = array<i32: 1>} : vector<8x8xi32>
      %53 = arith.cmpi eq, %51, %52 : vector<8x8xi32>
      %cst_29 = arith.constant 0.000000e+00 : f32
      %54 = vector.broadcast %cst_29 : f32 to vector<8x8xf32>
      %55 = arith.select %53, %50, %54 : vector<8x8xi1>, vector<8x8xf32>
      %cst_30 = arith.constant dense<0.000000e+00> : vector<8xf32>
      %56 = vector.multi_reduction <add>, %55, %cst_30 [1] : vector<8x8xf32> to vector<8xf32>
      %57 = vector.shape_cast %56 : vector<8xf32> to vector<8x1xf32>
      %cst_31 = arith.constant dense<0.000000e+00> : vector<8x1xf32>
      %58 = tpu.matmul %46, %34, %cst_31 {dimension_numbers = #tpu.dot_dimension_numbers<[0], [0], [1], [1], [0, 1, 1, 1], [], []>, precision = #tpu.contract_precision<fp32>} : vector<4x8xf32>, vector<4x1xf32>, vector<8x1xf32> -> vector<8x1xf32>
      %59 = arith.mulf %58, %58 : vector<8x1xf32>
      %60 = arith.subf %57, %59 : vector<8x1xf32>
      %cst_32 = arith.constant 0.000000e+00 : f32
      %61 = vector.broadcast %cst_32 : f32 to vector<8x1xf32>
      %62 = arith.maximumf %60, %61 : vector<8x1xf32>
      %cst_33 = arith.constant 9.99999974E-6 : f32
      %63 = vector.broadcast %cst_33 : f32 to vector<8x1xf32>
      %64 = arith.addf %62, %63 : vector<8x1xf32>
      %65 = math.rsqrt %64 : vector<8x1xf32>
      %66 = arith.mulf %31, %65 : vector<8x1xf32>
      %cst_34 = arith.constant dense<0.000000e+00> : vector<8x1xf32>
      %67 = tpu.matmul %28, %30, %cst_34 {dimension_numbers = #tpu.dot_dimension_numbers<[0], [0], [1], [1], [0, 1, 1, 1], [], []>, precision = #tpu.contract_precision<fp32>} : vector<4x8xf32>, vector<4x1xf32>, vector<8x1xf32> -> vector<8x1xf32>
      %68 = arith.mulf %34, %44 : vector<4x1xf32>
      %69 = arith.subf %30, %68 : vector<4x1xf32>
      %cst_35 = arith.constant dense<0.000000e+00> : vector<8x1xf32>
      %70 = tpu.matmul %28, %69, %cst_35 {dimension_numbers = #tpu.dot_dimension_numbers<[0], [0], [1], [1], [0, 1, 1, 1], [], []>, precision = #tpu.contract_precision<fp32>} : vector<4x8xf32>, vector<4x1xf32>, vector<8x1xf32> -> vector<8x1xf32>
      %c0_36 = arith.constant 0 : index
      %c0_37 = arith.constant 0 : index
      %71 = vector.load %arg13[%c0_36, %c0_37] : memref<4x8xf32, #tpu.memory_space<vmem>>, vector<4x8xf32>
      tpu.vector_store %arg13[%c0_36, %c0_37], %46 {strides = array<i32>} : memref<4x8xf32, #tpu.memory_space<vmem>>, vector<4x8xf32>,
      %c0_38 = arith.constant 0 : index
      %c0_39 = arith.constant 0 : index
      %72 = vector.load %arg14[%c0_38, %c0_39] : memref<8x1xf32, #tpu.memory_space<vmem>>, vector<8x1xf32>
      tpu.vector_store %arg14[%c0_38, %c0_39], %66 {strides = array<i32>} : memref<8x1xf32, #tpu.memory_space<vmem>>, vector<8x1xf32>,
      %73 = arith.subf %70, %67 : vector<8x1xf32>
      %74 = arith.mulf %73, %66 : vector<8x1xf32>
      %75 = arith.addf %74, %32 : vector<8x1xf32>
      %c0_40 = arith.constant 0 : index
      %c0_41 = arith.constant 0 : index
      %76 = vector.load %arg15[%c0_40, %c0_41] : memref<8x1xf32, #tpu.memory_space<vmem>>, vector<8x1xf32>
      tpu.vector_store %arg15[%c0_40, %c0_41], %75 {strides = array<i32>} : memref<8x1xf32, #tpu.memory_space<vmem>>, vector<8x1xf32>,
    } else {
    }
    %c1_i32_6 = arith.constant 1 : i32
    %13 = arith.cmpi eq, %arg0, %c1_i32_6 : i32
    %14 = arith.extui %13 : i1 to i32
    %c0_i32_7 = arith.constant 0 : i32
    %15 = arith.cmpi ne, %14, %c0_i32_7 : i32
    scf.if %15 {
      %16 = arith.index_cast %arg1 : i32 to index
      %c0 = arith.constant 0 : index
      %c0_8 = arith.constant 0 : index
      %17 = vector.load %arg16[%16, %c0, %c0_8] : memref<1x8x256xf32, #tpu.memory_space<vmem>>, vector<1x8x256xf32>
      %18 = vector.shape_cast %17 : vector<1x8x256xf32> to vector<8x256xf32>
      %c0_9 = arith.constant 0 : index
      %c0_10 = arith.constant 0 : index
      %19 = vector.load %arg13[%c0_9, %c0_10] : memref<4x8xf32, #tpu.memory_space<vmem>>, vector<4x8xf32>
      %c0_11 = arith.constant 0 : index
      %c0_12 = arith.constant 0 : index
      %20 = vector.load %arg14[%c0_11, %c0_12] : memref<8x1xf32, #tpu.memory_space<vmem>>, vector<8x1xf32>
      %c0_13 = arith.constant 0 : index
      %c0_14 = arith.constant 0 : index
      %21 = vector.load %arg15[%c0_13, %c0_14] : memref<8x1xf32, #tpu.memory_space<vmem>>, vector<8x1xf32>
      %22 = vector.extract_strided_slice %18 {offsets = [0, 0], sizes = [4, 256], strides = [1, 1]} : vector<8x256xf32> to vector<4x256xf32>
      %cst = arith.constant dense<0.000000e+00> : vector<8x256xf32>
      %23 = tpu.matmul %19, %22, %cst {dimension_numbers = #tpu.dot_dimension_numbers<[0], [0], [1], [1], [0, 1, 1, 1], [], []>, precision = #tpu.contract_precision<fp32>} : vector<4x8xf32>, vector<4x256xf32>, vector<8x256xf32> -> vector<8x256xf32>
      %24 = vector.broadcast %20 : vector<8x1xf32> to vector<8x256xf32>
      %25 = arith.mulf %24, %23 : vector<8x256xf32>
      %26 = vector.broadcast %21 : vector<8x1xf32> to vector<8x256xf32>
      %27 = arith.addf %25, %26 : vector<8x256xf32>
      %c0_15 = arith.constant 0 : index
      %c0_16 = arith.constant 0 : index
      %28 = vector.load %arg9[%c0_15, %c0_16] : memref<16x256xf32, #tpu.memory_space<vmem>>, vector<8x256xf32>
      tpu.vector_store %arg9[%c0_15, %c0_16], %27 {strides = array<i32>} : memref<16x256xf32, #tpu.memory_space<vmem>>, vector<8x256xf32>,
      %29 = vector.extract_strided_slice %18 {offsets = [4, 0], sizes = [4, 256], strides = [1, 1]} : vector<8x256xf32> to vector<4x256xf32>
      %cst_17 = arith.constant dense<0.000000e+00> : vector<8x256xf32>
      %30 = tpu.matmul %19, %29, %cst_17 {dimension_numbers = #tpu.dot_dimension_numbers<[0], [0], [1], [1], [0, 1, 1, 1], [], []>, precision = #tpu.contract_precision<fp32>} : vector<4x8xf32>, vector<4x256xf32>, vector<8x256xf32> -> vector<8x256xf32>
      %31 = vector.broadcast %20 : vector<8x1xf32> to vector<8x256xf32>
      %32 = arith.mulf %31, %30 : vector<8x256xf32>
      %33 = vector.broadcast %21 : vector<8x1xf32> to vector<8x256xf32>
      %34 = arith.addf %32, %33 : vector<8x256xf32>
      %c8 = arith.constant 8 : index
      %c0_18 = arith.constant 0 : index
      %35 = vector.load %arg9[%c8, %c0_18] : memref<16x256xf32, #tpu.memory_space<vmem>>, vector<8x256xf32>
      tpu.vector_store %arg9[%c8, %c0_18], %34 {strides = array<i32>} : memref<16x256xf32, #tpu.memory_space<vmem>>, vector<8x256xf32>,
    } else {
    }
    return
  }
  func.func @transform_0(%arg0: i32, %arg1: i32) -> (i32, i32) {
    %c1_i32 = arith.constant 1 : i32
    %0 = arith.subi %c1_i32, %arg0 : i32
    %1 = arith.muli %arg1, %0 : i32
    %c0_i32 = arith.constant 0 : i32
    %c0_i32_0 = arith.constant 0 : i32
    return %1, %c0_i32 : i32, i32
  }
  func.func @transform_1(%arg0: i32, %arg1: i32) -> (i32, i32, i32) {
    %c0_i32 = arith.constant 0 : i32
    %c0_i32_0 = arith.constant 0 : i32
    %c0_i32_1 = arith.constant 0 : i32
    %c0_i32_2 = arith.constant 0 : i32
    return %c0_i32, %c0_i32_0, %c0_i32_1 : i32, i32, i32
  }
  func.func @transform_2(%arg0: i32, %arg1: i32) -> (i32, i32) {
    %c0_i32 = arith.constant 0 : i32
    %c0_i32_0 = arith.constant 0 : i32
    %c0_i32_1 = arith.constant 0 : i32
    return %c0_i32, %c0_i32_0 : i32, i32
  }
  func.func @transform_3(%arg0: i32, %arg1: i32) -> (i32, i32) {
    %c0_i32 = arith.constant 0 : i32
    %c0_i32_0 = arith.constant 0 : i32
    %c0_i32_1 = arith.constant 0 : i32
    return %c0_i32, %c0_i32_0 : i32, i32
  }
  func.func @transform_4(%arg0: i32, %arg1: i32) -> (i32, i32) {
    %c0_i32 = arith.constant 0 : i32
    %c0_i32_0 = arith.constant 0 : i32
    %c0_i32_1 = arith.constant 0 : i32
    return %c0_i32, %c0_i32_0 : i32, i32
  }
  func.func @transform_5(%arg0: i32, %arg1: i32) -> (i32, i32) {
    %c0_i32 = arith.constant 0 : i32
    %c0_i32_0 = arith.constant 0 : i32
    %c0_i32_1 = arith.constant 0 : i32
    return %c0_i32, %c0_i32_0 : i32, i32
  }
  func.func @transform_6(%arg0: i32, %arg1: i32) -> (i32, i32) {
    %c0_i32 = arith.constant 0 : i32
    %c0_i32_0 = arith.constant 0 : i32
    %c0_i32_1 = arith.constant 0 : i32
    return %c0_i32, %c0_i32_0 : i32, i32
  }
  func.func @transform_7(%arg0: i32, %arg1: i32) -> (i32, i32) {
    %0 = arith.muli %arg1, %arg0 : i32
    %c0_i32 = arith.constant 0 : i32
    %c0_i32_0 = arith.constant 0 : i32
    return %0, %c0_i32 : i32, i32
  }
}

</mosaic_0001>

<llo_original>
// kernel: tpu_custom_call.1
$region0: #{tpu_custom_call.1}
  #allocation0 [shape = 'u32[]', space=smem, size = 0x4, offset = 0x4, fixed_abs, tag = 'smem constant byte address 0x4 - core index']
  #allocation1 [shape = 'u32[144,128]{1,0:T(1,128)}', space=vmem, size = 0x12000, scoped, tag = 'internal scratch']
  #allocation2 [shape = 'f32[8,1]{1,0:T(8,128)}', space=vmem, size = 0x1000, scoped, tag = 'scratch operand']
  #allocation3 [shape = 'f32[8,1]{1,0:T(8,128)}', space=vmem, size = 0x1000, scoped, tag = 'scratch operand']
  #allocation4 [shape = 'f32[8,8]{1,0:T(8,128)}', space=vmem, size = 0x1000, scoped, tag = 'scratch operand']
  #allocation5 [shape = 'f32[4,8]{1,0:T(4,128)}', space=vmem, size = 0x800, scoped, tag = 'scratch operand']
  #allocation6 [shape = 'f32[8,1]{1,0:T(8,128)}', space=vmem, size = 0x1000, scoped, tag = 'scratch operand']
  #allocation7 [shape = 'f32[8,1]{1,0:T(8,128)}', space=vmem, size = 0x1000, scoped, tag = 'scratch operand']
  #allocation8 [shape = 'f32[1,8,256]{2,1,0:T(8,128)}', space=vmem, size = 0x2000, scoped, tag = 'scratch operand']
  %s0 = inlined_call_operand.vmem [shape: f32[8,256], index: 0, kind: input, shape index: {}]
  %s1 = inlined_call_operand.hbm [shape: f32[9,8,256], index: 1, kind: input, shape index: {}]
  %s2 = inlined_call_operand.vmem [shape: f32[4,8], index: 2, kind: input, shape index: {}]
  %s3 = inlined_call_operand.vmem [shape: f32[4,1], index: 3, kind: input, shape index: {}]
  %s4 = inlined_call_operand.vmem [shape: f32[4,1], index: 4, kind: input, shape index: {}]
  %s5 = inlined_call_operand.vmem [shape: f32[8,1], index: 5, kind: input, shape index: {}]
  %s6 = inlined_call_operand.vmem [shape: f32[8,1], index: 6, kind: input, shape index: {}]
  %s7 = inlined_call_operand.hbm [shape: f32[16,256], index: 7, kind: output, shape index: {}]
  %s8 = sld [smem:[#allocation0]]
  $region81: #{tpu_custom_call.1} parent=0
    _
  %s10 = ssub.s32 1, %s8
  %s11 = scalar_select 0, %s10, %s8
  $region1: #{tpu_custom_call.1} parent=0
    #allocation9 [shape = 'u8[73728]{0}', space=vmem, size = 0x12000, scoped, tag = 'input window, operand 1, single buffered']
    #allocation10 [shape = 's32[2]{0}', space=sflag, size = 0x8, scoped, tag = 'scoped memory for tpu_custom_call.1']
    #allocation11 [shape = 's32[2]{0}', space=sflag, size = 0x8, scoped, tag = 'scoped memory for tpu_custom_call.1']
    #allocation12 [shape = 'u8[32768]{0}', space=vmem, size = 0x8000, scoped, tag = 'output window, operand 0']
    %12 = vsyncpa [#allocation10], 0
    %13 = vsyncpa [#allocation11], 0
    %s14 = scalar_lea.sflag [#allocation11], 1
    %15 = vsyncpa %s14, 0
    loop: start=0, step=1, limit=4
    $region2: #{tpu_custom_call.1} parent=1 // loop_pre_header
      _
    $region3: #{tpu_custom_call.1} parent=1 // loop_header
      %s17 = sphi 0, %s21
      %p18 = scmp.ge.s32.totalorder %s17, 4
      %s24 = sphi 0, %s36
      %s25 = sphi 0, %s32
      %s26 = sphi 0, %s24
      %s27 = sphi 0, %s25
      %s28 = sphi 0, %s26
      %s29 = sphi 0, %s27
      %s43 = sphi 0, %s45
      %s46 = sphi 0, %s43
      %s47 = sphi 0, %s46
      %s63 = sphi 0, %s47
      %s67 = sphi 0, %s67
      %s69 = sphi 0, %s67
      %s70 = sphi 0, %s69
      %s84 = sphi 0, %s70
      %s88 = sphi 0, %s88
      %s90 = sphi 0, %s88
      %s91 = sphi 0, %s90
      %s105 = sphi 0, %s91
      %s109 = sphi 0, %s109
      %s111 = sphi 0, %s109
      %s112 = sphi 0, %s111
      %s126 = sphi 0, %s112
      %s130 = sphi 0, %s130
      %s132 = sphi 0, %s130
      %s133 = sphi 0, %s132
      %s147 = sphi 0, %s133
      %s151 = sphi 0, %s151
      %s153 = sphi 0, %s151
      %s154 = sphi 0, %s153
      %s168 = sphi 0, %s154
      %s172 = sphi 0, %s172
      %s174 = sphi 0, %s172
      %s175 = sphi 0, %s174
      %s189 = sphi 0, %s175
      %s197 = sphi 0, %s199
      %s200 = sphi 0, %s197
      %s201 = sphi 0, %s200
      %s217 = sphi 0, %s201
    $region4: #{tpu_custom_call.1} parent=1 // loop_header_branch
      %20 = sbr.rel (%p18) target = $region8
    $region5: #{tpu_custom_call.1} parent=1 // loop_body
      %s22 = ssub.s32 %s17, 1
      %s23 = ssub.s32 %s17, 2
      %s30 = sadd.s32 1, %s25
      %p31 = scmp.ge.s32.totalorder %s30, 1
      %s32 = scalar_select %p31, 0, %s30
      %s33 = sadd.s32 1, %s24
      %s34 = scalar_select %p31, %s33, %s24
      %p35 = scmp.ge.s32.totalorder %s34, 2
      %s36 = scalar_select %p35, 0, %s34
      %s37 = ssub.s32 1, %s24
      %s38 = smul.u32 %s25, %s37
      %s39 = ssub.s32 1, %s36
      %s40 = smul.u32 %s32, %s39
      %s41 = ssub.s32 %s38, %s40
      %p42 = scmp.eq.s32.totalorder %s41, 0
      %s44 = sadd.s32 %s43, 1
      %s45 = scalar_select %p42, %s43, %s44
      %p48 = pneg %p42
      %p49 = scmp.eq.s32.totalorder %s17, 1
      %p50 = por %p48, %p49
      %p51 = scmp.ne.s32.totalorder %s43, %s46
      %p52 = scmp.eq.s32.totalorder %s17, 0
      %p53 = por %p51, %p52
      %p54 = scmp.ne.s32.totalorder %s43, %s46
      %p55 = scmp.eq.s32.totalorder %s22, 1
      %p56 = por %p54, %p55
      %p57 = scmp.ne.s32.totalorder %s46, %s47
      %p58 = scmp.eq.s32.totalorder %s22, 0
      %p59 = por %p57, %p58
      %p60 = scmp.ne.s32.totalorder %s46, %s47
      %p61 = scmp.eq.s32.totalorder %s23, 1
      %p62 = por %p60, %p61
      %p64 = scmp.ne.s32.totalorder %s47, %s63
      %p65 = scmp.eq.s32.totalorder %s23, 0
      %p66 = por %p64, %p65
      %s68 = sadd.s32 %s67, 1
      %p71 = scmp.eq.s32.totalorder %s17, 1
      %p72 = scmp.ne.s32.totalorder %s67, %s69
      %p73 = scmp.eq.s32.totalorder %s17, 0
      %p74 = por %p72, %p73
      %p75 = scmp.ne.s32.totalorder %s67, %s69
      %p76 = scmp.eq.s32.totalorder %s22, 1
      %p77 = por %p75, %p76
      %p78 = scmp.ne.s32.totalorder %s69, %s70
      %p79 = scmp.eq.s32.totalorder %s22, 0
      %p80 = por %p78, %p79
      %p81 = scmp.ne.s32.totalorder %s69, %s70
      %p82 = scmp.eq.s32.totalorder %s23, 1
      %p83 = por %p81, %p82
      %p85 = scmp.ne.s32.totalorder %s70, %s84
      %p86 = scmp.eq.s32.totalorder %s23, 0
      %p87 = por %p85, %p86
      %s89 = sadd.s32 %s88, 1
      %p92 = scmp.eq.s32.totalorder %s17, 1
      %p93 = scmp.ne.s32.totalorder %s88, %s90
      %p94 = scmp.eq.s32.totalorder %s17, 0
      %p95 = por %p93, %p94
      %p96 = scmp.ne.s32.totalorder %s88, %s90
      %p97 = scmp.eq.s32.totalorder %s22, 1
      %p98 = por %p96, %p97
      %p99 = scmp.ne.s32.totalorder %s90, %s91
      %p100 = scmp.eq.s32.totalorder %s22, 0
      %p101 = por %p99, %p100
      %p102 = scmp.ne.s32.totalorder %s90, %s91
      %p103 = scmp.eq.s32.totalorder %s23, 1
      %p104 = por %p102, %p103
      %p106 = scmp.ne.s32.totalorder %s91, %s105
      %p107 = scmp.eq.s32.totalorder %s23, 0
      %p108 = por %p106, %p107
      %s110 = sadd.s32 %s109, 1
      %p113 = scmp.eq.s32.totalorder %s17, 1
      %p114 = scmp.ne.s32.totalorder %s109, %s111
      %p115 = scmp.eq.s32.totalorder %s17, 0
      %p116 = por %p114, %p115
      %p117 = scmp.ne.s32.totalorder %s109, %s111
      %p118 = scmp.eq.s32.totalorder %s22, 1
      %p119 = por %p117, %p118
      %p120 = scmp.ne.s32.totalorder %s111, %s112
      %p121 = scmp.eq.s32.totalorder %s22, 0
      %p122 = por %p120, %p121
      %p123 = scmp.ne.s32.totalorder %s111, %s112
      %p124 = scmp.eq.s32.totalorder %s23, 1
      %p125 = por %p123, %p124
      %p127 = scmp.ne.s32.totalorder %s112, %s126
      %p128 = scmp.eq.s32.totalorder %s23, 0
      %p129 = por %p127, %p128
      %s131 = sadd.s32 %s130, 1
      %p134 = scmp.eq.s32.totalorder %s17, 1
      %p135 = scmp.ne.s32.totalorder %s130, %s132
      %p136 = scmp.eq.s32.totalorder %s17, 0
      %p137 = por %p135, %p136
      %p138 = scmp.ne.s32.totalorder %s130, %s132
      %p139 = scmp.eq.s32.totalorder %s22, 1
      %p140 = por %p138, %p139
      %p141 = scmp.ne.s32.totalorder %s132, %s133
      %p142 = scmp.eq.s32.totalorder %s22, 0
      %p143 = por %p141, %p142
      %p144 = scmp.ne.s32.totalorder %s132, %s133
      %p145 = scmp.eq.s32.totalorder %s23, 1
      %p146 = por %p144, %p145
      %p148 = scmp.ne.s32.totalorder %s133, %s147
      %p149 = scmp.eq.s32.totalorder %s23, 0
      %p150 = por %p148, %p149
      %s152 = sadd.s32 %s151, 1
      %p155 = scmp.eq.s32.totalorder %s17, 1
      %p156 = scmp.ne.s32.totalorder %s151, %s153
      %p157 = scmp.eq.s32.totalorder %s17, 0
      %p158 = por %p156, %p157
      %p159 = scmp.ne.s32.totalorder %s151, %s153
      %p160 = scmp.eq.s32.totalorder %s22, 1
      %p161 = por %p159, %p160
      %p162 = scmp.ne.s32.totalorder %s153, %s154
      %p163 = scmp.eq.s32.totalorder %s22, 0
      %p164 = por %p162, %p163
      %p165 = scmp.ne.s32.totalorder %s153, %s154
      %p166 = scmp.eq.s32.totalorder %s23, 1
      %p167 = por %p165, %p166
      %p169 = scmp.ne.s32.totalorder %s154, %s168
      %p170 = scmp.eq.s32.totalorder %s23, 0
      %p171 = por %p169, %p170
      %s173 = sadd.s32 %s172, 1
      %p176 = scmp.eq.s32.totalorder %s17, 1
      %p177 = scmp.ne.s32.totalorder %s172, %s174
      %p178 = scmp.eq.s32.totalorder %s17, 0
      %p179 = por %p177, %p178
      %p180 = scmp.ne.s32.totalorder %s172, %s174
      %p181 = scmp.eq.s32.totalorder %s22, 1
      %p182 = por %p180, %p181
      %p183 = scmp.ne.s32.totalorder %s174, %s175
      %p184 = scmp.eq.s32.totalorder %s22, 0
      %p185 = por %p183, %p184
      %p186 = scmp.ne.s32.totalorder %s174, %s175
      %p187 = scmp.eq.s32.totalorder %s23, 1
      %p188 = por %p186, %p187
      %p190 = scmp.ne.s32.totalorder %s175, %s189
      %p191 = scmp.eq.s32.totalorder %s23, 0
      %p192 = por %p190, %p191
      %s193 = smul.u32 %s25, %s24
      %s194 = smul.u32 %s32, %s36
      %s195 = ssub.s32 %s193, %s194
      %p196 = scmp.eq.s32.totalorder %s195, 0
      %s198 = sadd.s32 %s197, 1
      %s199 = scalar_select %p196, %s197, %s198
      %p202 = pneg %p196
      %p203 = scmp.eq.s32.totalorder %s17, 1
      %p204 = por %p202, %p203
      %p205 = scmp.ne.s32.totalorder %s197, %s200
      %p206 = scmp.eq.s32.totalorder %s17, 0
      %p207 = por %p205, %p206
      %p208 = scmp.ne.s32.totalorder %s197, %s200
      %p209 = scmp.eq.s32.totalorder %s22, 1
      %p210 = por %p208, %p209
      %p211 = scmp.ne.s32.totalorder %s200, %s201
      %p212 = scmp.eq.s32.totalorder %s22, 0
      %p213 = por %p211, %p212
      %p214 = scmp.ne.s32.totalorder %s200, %s201
      %p215 = scmp.eq.s32.totalorder %s23, 1
      %p216 = por %p214, %p215
      %p218 = scmp.ne.s32.totalorder %s201, %s217
      %p219 = scmp.eq.s32.totalorder %s23, 0
      %p220 = por %p218, %p219
      %p221 = scmp.le.s32.totalorder 1, %s17
      %p222 = scmp.lt.s32.totalorder %s17, 3
      %p223 = pnand %p221, %p222
      %p224 = pneg %p223
      // Predicated region
      $region9: #{tpu_custom_call.1} parent=5 // pred_check
        _
      $region10: #{tpu_custom_call.1} parent=5 // pred_check_branch
        %226 = sbr.rel (%p223) target = $region12
      $region11: #{tpu_custom_call.1} parent=5 // pred_region
        %s227 = ssub.s32 %s17, 1
        // Predicated region
        $region13: #{tpu_custom_call.1} parent=11 // pred_check
          %p228 = pneg %p80
        $region14: #{tpu_custom_call.1} parent=11 // pred_check_branch
          %230 = sbr.rel (%p228) target = $region16
        $region15: #{tpu_custom_call.1} parent=11 // pred_region
          %s232 = ssub.s32 2304, 2304
          %233 = vsyncadd [#allocation10], %s232
          %s234 = sshll.u32 [#allocation9], 4
          %s235 = int_to_ptr.vmem [resolvable:$true] %s234
          %240 = dma.hbm_to_vmem [thread:$0]  %s1, 2304, %s235, [#allocation10], 256, 256, 16
        $region16: #{tpu_custom_call.1} parent=11 // pred_fallthru
          _
        // Predicated region
        $region17: #{tpu_custom_call.1} parent=11 // pred_check
          %p241 = pneg %p101
        $region18: #{tpu_custom_call.1} parent=11 // pred_check_branch
          %243 = sbr.rel (%p241) target = $region20
        $region19: #{tpu_custom_call.1} parent=11 // pred_region
          _
        $region20: #{tpu_custom_call.1} parent=11 // pred_fallthru
          _
        // Predicated region
        $region21: #{tpu_custom_call.1} parent=11 // pred_check
          %p244 = pneg %p122
        $region22: #{tpu_custom_call.1} parent=11 // pred_check_branch
          %246 = sbr.rel (%p244) target = $region24
        $region23: #{tpu_custom_call.1} parent=11 // pred_region
          _
        $region24: #{tpu_custom_call.1} parent=11 // pred_fallthru
          _
        // Predicated region
        $region25: #{tpu_custom_call.1} parent=11 // pred_check
          %p247 = pneg %p143
        $region26: #{tpu_custom_call.1} parent=11 // pred_check_branch
          %249 = sbr.rel (%p247) target = $region28
        $region27: #{tpu_custom_call.1} parent=11 // pred_region
          _
        $region28: #{tpu_custom_call.1} parent=11 // pred_fallthru
          _
        // Predicated region
        $region29: #{tpu_custom_call.1} parent=11 // pred_check
          %p250 = pneg %p164
        $region30: #{tpu_custom_call.1} parent=11 // pred_check_branch
          %252 = sbr.rel (%p250) target = $region32
        $region31: #{tpu_custom_call.1} parent=11 // pred_region
          _
        $region32: #{tpu_custom_call.1} parent=11 // pred_fallthru
          _
        // Predicated region
        $region33: #{tpu_custom_call.1} parent=11 // pred_check
          %p253 = pneg %p185
        $region34: #{tpu_custom_call.1} parent=11 // pred_check_branch
          %255 = sbr.rel (%p253) target = $region36
        $region35: #{tpu_custom_call.1} parent=11 // pred_region
          _
        $region36: #{tpu_custom_call.1} parent=11 // pred_fallthru
          _
      $region12: #{tpu_custom_call.1} parent=5 // pred_fallthru
        _
      %p256 = scmp.lt.s32.totalorder %s17, 2
      // Predicated region
      $region37: #{tpu_custom_call.1} parent=5 // pred_check
        %p257 = pneg %p256
      $region38: #{tpu_custom_call.1} parent=5 // pred_check_branch
        %259 = sbr.rel (%p257) target = $region40
      $region39: #{tpu_custom_call.1} parent=5 // pred_region
        // Predicated region
        $region41: #{tpu_custom_call.1} parent=39 // pred_check
          %p260 = pneg %p53
        $region42: #{tpu_custom_call.1} parent=39 // pred_check_branch
          %262 = sbr.rel (%p260) target = $region44
        $region43: #{tpu_custom_call.1} parent=39 // pred_region
          %s263 = ssub.s32 1, %s24
          %s264 = smul.u32 %s25, %s263
          %p265 = scmp.lt.s32.totalorder %s264, 0
          %s266 = scalar_select %p265, %s264, 0
          %s267 = smul.addr %s266, 2
          %s268 = smul.addr %s267, 8
          %s269 = scalar_lea.vmem %s0, %s268
          %s270 = ssub.s32 1, %s24
          %s271 = smul.u32 %s25, %s270
        $region44: #{tpu_custom_call.1} parent=39 // pred_fallthru
          _
      $region40: #{tpu_custom_call.1} parent=5 // pred_fallthru
        _
      %p272 = scmp.le.s32.totalorder 1, %s17
      %p273 = scmp.lt.s32.totalorder %s17, 3
      %p274 = pnand %p272, %p273
      %p275 = pneg %p274
      // Predicated region
      $region45: #{tpu_custom_call.1} parent=5 // pred_check
        _
      $region46: #{tpu_custom_call.1} parent=5 // pred_check_branch
        %277 = sbr.rel (%p274) target = $region48
      $region47: #{tpu_custom_call.1} parent=5 // pred_region
        %s278 = ssub.s32 %s17, 1
        // Predicated region
        $region49: #{tpu_custom_call.1} parent=47 // pred_check
          %p279 = pneg %p80
        $region50: #{tpu_custom_call.1} parent=47 // pred_check_branch
          %281 = sbr.rel (%p279) target = $region52
        $region51: #{tpu_custom_call.1} parent=47 // pred_region
          %282 = dma.done [#allocation10], 2304
        $region52: #{tpu_custom_call.1} parent=47 // pred_fallthru
          _
        %s283 = ssub.s32 1, %s26
        %s284 = smul.u32 %s27, %s283
        %p285 = scmp.lt.s32.totalorder %s284, 0
        %s286 = scalar_select %p285, %s284, 0
        %s287 = smul.addr %s286, 2
        %s288 = smul.addr %s287, 8
        %s289 = scalar_lea.vmem %s0, %s288
        %p290 = pneg %p59
        %p291 = pneg %p56
        %p292 = pneg %p80
        %p293 = pneg %p77
        %p294 = pneg %p101
        %p295 = pneg %p98
        %p296 = pneg %p122
        %p297 = pneg %p119
        %p298 = pneg %p143
        %p299 = pneg %p140
        %p300 = pneg %p164
        %p301 = pneg %p161
        %p302 = pneg %p185
        %p303 = pneg %p182
        %p304 = pneg %p213
        %p305 = pneg %p210
        %s306 = sand.u32 %s200, 1
        %s307 = scalar_lea.sflag [#allocation11], %s306
        %s308 = sand.u32 %s200, 1
        %s309 = smul.addr %s308, 32
        %s310 = scalar_lea.vmem [#allocation12], %s309
        %s311 = ssub.s32 1, %s26
        %s312 = smul.u32 %s27, %s311
        %p313 = scmp.lt.s32.totalorder %s312, 0
        %s314 = scalar_select %p313, %s312, 0
        %s315 = smul.addr %s314, 2
        %s316 = smul.addr %s315, 8
        %s317 = scalar_lea.vmem %s0, %s316
        %s318 = ssub.s32 1, %s26
        %s319 = smul.u32 %s27, %s318
        %s320 = smul.u32 %s27, %s26
        %s321 = smul.u32 2, %s320
        %p322 = scmp.eq.s32.totalorder %s26, 0
        %p323 = scmp.eq.s32.totalorder %s27, 0
        %p324 = pnand %p322, %p323
        %p325 = pneg %p324
        // Predicated region
        $region53: #{tpu_custom_call.1} parent=47 // pred_check
          _
        $region54: #{tpu_custom_call.1} parent=47 // pred_check_branch
          %327 = sbr.rel (%p324) target = $region56
        $region55: #{tpu_custom_call.1} parent=47 // pred_region
          %vm328 = vcmask 7168
          %329 = vst.msk [vmem:[#allocation2] sm:$0xff] %vm328, 0.0
          %330 = vst.msk [vmem:[#allocation3] sm:$0xff] %vm328, 0.0
          %vm331 = vcmask 64512
          %332 = vst.msk [vmem:[#allocation4] sm:$0xff] %vm331, 0.0
        $region56: #{tpu_custom_call.1} parent=47 // pred_fallthru
          _
        // Predicated region
        $region57: #{tpu_custom_call.1} parent=47 // pred_check
          %p333 = pneg %p322
        $region58: #{tpu_custom_call.1} parent=47 // pred_check_branch
          %335 = sbr.rel (%p333) target = $region60
        $region59: #{tpu_custom_call.1} parent=47 // pred_region
          %v336 = vld [vmem:[%s317] sm:$0xff]
          %v337 = vld [vmem:[%s317 + $0x8] sm:$0xff]
          %s338 = scalar_lea.vmem [#allocation9], 64
          %v339 = vld [vmem:[%s338] sm:$0xff]
          %v340 = vld [vmem:[%s338 + $0x8] sm:$0xff]
          %v341 = vmul.f32 %v336, %v339
          %v342 = vmul.f32 %v337, %v340
          %343 = vrot.lane.b32.xlu0 %v336, 17
          %v344 = vpop.permute.xlu0 %343
          %345 = vrot.lane.b32.xlu0 %v337, 17
          %v346 = vpop.permute.xlu0 %345
          %v347 = vlaneseq
          %v348 = vand.u32 %v347, 127
          %vm349 = vcmp.lt.s32.totalorder %v348, 17
          %v350 = vsel %vm349, %v344, %v346
          %v351 = vsel %vm349, %v346, %v344
          %v352 = vld [vmem:[#allocation9] sm:$0xff]
          %v353 = vld [vmem:[#allocation9 + $0x8] sm:$0xff]
          %v354 = vmul.f32 %v351, %v352
          %v355 = vmul.f32 %v350, %v353
          %v356 = vadd.f32 %v341, %v354
          %v357 = vadd.f32 %v342, %v355
          %358 = vrot.lane.b32.xlu0 %v336, 16
          %v359 = vpop.permute.xlu0 %358
          %360 = vrot.lane.b32.xlu0 %v337, 16
          %v361 = vpop.permute.xlu0 %360
          %vm362 = vcmp.lt.s32.totalorder %v348, 16
          %v363 = vsel %vm362, %v359, %v361
          %v364 = vsel %vm362, %v361, %v359
          %s365 = scalar_lea.vmem [#allocation9], 16
          %v366 = vld [vmem:[%s365] sm:$0xff]
          %v367 = vld [vmem:[%s365 + $0x8] sm:$0xff]
          %v368 = vmul.f32 %v364, %v366
          %v369 = vmul.f32 %v363, %v367
          %v370 = vadd.f32 %v356, %v368
          %v371 = vadd.f32 %v357, %v369
          %372 = vrot.lane.b32.xlu0 %v336, 15
          %v373 = vpop.permute.xlu0 %372
          %374 = vrot.lane.b32.xlu0 %v337, 15
          %v375 = vpop.permute.xlu0 %374
          %vm376 = vcmp.lt.s32.totalorder %v348, 15
          %v377 = vsel %vm376, %v373, %v375
          %v378 = vsel %vm376, %v375, %v373
          %s379 = scalar_lea.vmem [#allocation9], 32
          %v380 = vld [vmem:[%s379] sm:$0xff]
          %v381 = vld [vmem:[%s379 + $0x8] sm:$0xff]
          %v382 = vmul.f32 %v378, %v380
          %v383 = vmul.f32 %v377, %v381
          %v384 = vadd.f32 %v370, %v382
          %v385 = vadd.f32 %v371, %v383
          %386 = vrot.lane.b32.xlu0 %v336, 1
          %v387 = vpop.permute.xlu0 %386
          %388 = vrot.lane.b32.xlu0 %v337, 1
          %v389 = vpop.permute.xlu0 %388
          %vm390 = vcmp.lt.s32.totalorder %v348, 1
          %v391 = vsel %vm390, %v387, %v389
          %v392 = vsel %vm390, %v389, %v387
          %s393 = scalar_lea.vmem [#allocation9], 48
          %v394 = vld [vmem:[%s393] sm:$0xff]
          %v395 = vld [vmem:[%s393 + $0x8] sm:$0xff]
          %v396 = vmul.f32 %v392, %v394
          %v397 = vmul.f32 %v391, %v395
          %v398 = vadd.f32 %v384, %v396
          %v399 = vadd.f32 %v385, %v397
          %400 = vrot.lane.b32.xlu0 %v336, 127
          %v401 = vpop.permute.xlu0 %400
          %402 = vrot.lane.b32.xlu0 %v337, 127
          %v403 = vpop.permute.xlu0 %402
          %vm404 = vcmp.lt.s32.totalorder %v348, 127
          %v405 = vsel %vm404, %v401, %v403
          %v406 = vsel %vm404, %v403, %v401
          %s407 = scalar_lea.vmem [#allocation9], 80
          %v408 = vld [vmem:[%s407] sm:$0xff]
          %v409 = vld [vmem:[%s407 + $0x8] sm:$0xff]
          %v410 = vmul.f32 %v405, %v408
          %v411 = vmul.f32 %v406, %v409
          %v412 = vadd.f32 %v398, %v410
          %v413 = vadd.f32 %v399, %v411
          %414 = vrot.lane.b32.xlu0 %v336, 113
          %v415 = vpop.permute.xlu0 %414
          %416 = vrot.lane.b32.xlu0 %v337, 113
          %v417 = vpop.permute.xlu0 %416
          %vm418 = vcmp.lt.s32.totalorder %v348, 113
          %v419 = vsel %vm418, %v415, %v417
          %v420 = vsel %vm418, %v417, %v415
          %s421 = scalar_lea.vmem [#allocation9], 96
          %v422 = vld [vmem:[%s421] sm:$0xff]
          %v423 = vld [vmem:[%s421 + $0x8] sm:$0xff]
          %v424 = vmul.f32 %v419, %v422
          %v425 = vmul.f32 %v420, %v423
          %v426 = vadd.f32 %v412, %v424
          %v427 = vadd.f32 %v413, %v425
          %428 = vrot.lane.b32.xlu0 %v336, 112
          %v429 = vpop.permute.xlu0 %428
          %430 = vrot.lane.b32.xlu0 %v337, 112
          %v431 = vpop.permute.xlu0 %430
          %vm432 = vcmp.lt.s32.totalorder %v348, 112
          %v433 = vsel %vm432, %v429, %v431
          %v434 = vsel %vm432, %v431, %v429
          %s435 = scalar_lea.vmem [#allocation9], 112
          %v436 = vld [vmem:[%s435] sm:$0xff]
          %v437 = vld [vmem:[%s435 + $0x8] sm:$0xff]
          %v438 = vmul.f32 %v433, %v436
          %v439 = vmul.f32 %v434, %v437
          %v440 = vadd.f32 %v426, %v438
          %v441 = vadd.f32 %v427, %v439
          %442 = vrot.lane.b32.xlu0 %v336, 111
          %v443 = vpop.permute.xlu0 %442
          %444 = vrot.lane.b32.xlu0 %v337, 111
          %v445 = vpop.permute.xlu0 %444
          %vm446 = vcmp.lt.s32.totalorder %v348, 111
          %v447 = vsel %vm446, %v443, %v445
          %v448 = vsel %vm446, %v445, %v443
          %s449 = scalar_lea.vmem [#allocation9], 128
          %v450 = vld [vmem:[%s449] sm:$0xff]
          %v451 = vld [vmem:[%s449 + $0x8] sm:$0xff]
          %v452 = vmul.f32 %v447, %v450
          %v453 = vmul.f32 %v448, %v451
          %v454 = vadd.f32 %v440, %v452
          %v455 = vadd.f32 %v441, %v453
          %s456 = smul.u32 %s27, 2
          %s457 = smul.addr %s456, 8
          %s458 = scalar_lea.vmem [#allocation8], %s457
          %459 = vst [vmem:[%s458] sm:$0xff] %v454
          %460 = vst [vmem:[%s458 + $0x8] sm:$0xff] %v455
          %v461 = vld [vmem:[#allocation2] sm:$0xff]
          %v462 = vadd.f32 %v454, %v455
          %463 = vadd.xlane.f32.xlu0 %v462
          %v464 = vpop.xlane.xlu0 %463
          %v465 = vadd.f32 %v461, %v464
          %vm466 = vcmask 7168
          %467 = vst.msk [vmem:[#allocation2] sm:$0xff] %vm466, %v465
          %v468 = vld [vmem:[#allocation3] sm:$0xff]
          %v469 = vmul.f32 %v454, %v454
          %v470 = vmul.f32 %v455, %v455
          %v471 = vadd.f32 %v469, %v470
          %472 = vadd.xlane.f32.xlu0 %v471
          %v473 = vpop.xlane.xlu0 %472
          %v474 = vadd.f32 %v468, %v473
          %475 = vst.msk [vmem:[#allocation3] sm:$0xff] %vm466, %v474
          %v476 = vld [vmem:[#allocation4] sm:$0xff]
          %477 = vmatprep.subr.mxu0 0.0
          %478 = vmatpush1.xpose.msra.mxu0 0.0
          %479 = vmatprep.subr.mxu0 0.0
          %480 = vmatpush1.xpose.msra.mxu0 0.0
          %481 = vmatprep.subr.mxu0 0.0
          %482 = vmatpush1.xpose.msra.mxu0 0.0
          %483 = vmatprep.subr.mxu0 0.0
          %484 = vmatpush1.xpose.msra.mxu0 0.0
          %485 = vmatprep.subr.mxu0 0.0
          %486 = vmatpush1.xpose.msra.mxu0 0.0
          %487 = vmatprep.subr.mxu0 0.0
          %488 = vmatpush1.xpose.msra.mxu0 0.0
          %489 = vmatprep.subr.mxu0 0.0
          %490 = vmatpush1.xpose.msra.mxu0 0.0
          %491 = vmatprep.subr.mxu0 0.0
          %492 = vmatpush1.xpose.msra.mxu0 0.0
          %493 = vmatprep.subr.mxu0 0.0
          %494 = vmatpush1.xpose.msra.mxu0 0.0
          %495 = vmatprep.subr.mxu0 0.0
          %496 = vmatpush1.xpose.msra.mxu0 0.0
          %497 = vmatprep.subr.mxu0 0.0
          %498 = vmatpush1.xpose.msra.mxu0 0.0
          %499 = vmatprep.subr.mxu0 0.0
          %500 = vmatpush1.xpose.msra.mxu0 0.0
          %501 = vmatprep.subr.mxu0 0.0
          %502 = vmatpush1.xpose.msra.mxu0 0.0
          %503 = vmatprep.subr.mxu0 0.0
          %504 = vmatpush1.xpose.msra.mxu0 0.0
          %505 = vmatprep.subr.mxu0 0.0
          %506 = vmatpush1.xpose.msra.mxu0 0.0
          %v507 = vand.u32 %v455, 4294901760
          %508 = vmatprep.subr.mxu0 %v507
          %v509 = vand.u32 %v454, 4294901760
          %510 = vmatpush1.xpose.msra.mxu0 %v509
          %511 = vmatprep.subr.mxu0 0.0
          %512 = vmatpush2.xpose.msra.mxu0 0.0
          %513 = vmatprep.subr.mxu0 0.0
          %514 = vmatpush2.xpose.msra.mxu0 0.0
          %515 = vmatprep.subr.mxu0 0.0
          %516 = vmatpush2.xpose.msra.mxu0 0.0
          %517 = vmatprep.subr.mxu0 0.0
          %518 = vmatpush2.xpose.msra.mxu0 0.0
          %519 = vmatprep.subr.mxu0 0.0
          %520 = vmatpush2.xpose.msra.mxu0 0.0
          %521 = vmatprep.subr.mxu0 0.0
          %522 = vmatpush2.xpose.msra.mxu0 0.0
          %523 = vmatprep.subr.mxu0 0.0
          %524 = vmatpush2.xpose.msra.mxu0 0.0
          %525 = vmatprep.subr.mxu0 0.0
          %526 = vmatpush2.xpose.msra.mxu0 0.0
          %527 = vmatprep.subr.mxu0 0.0
          %528 = vmatpush2.xpose.msra.mxu0 0.0
          %529 = vmatprep.subr.mxu0 0.0
          %530 = vmatpush2.xpose.msra.mxu0 0.0
          %531 = vmatprep.subr.mxu0 0.0
          %532 = vmatpush2.xpose.msra.mxu0 0.0
          %533 = vmatprep.subr.mxu0 0.0
          %534 = vmatpush2.xpose.msra.mxu0 0.0
          %535 = vmatprep.subr.mxu0 0.0
          %536 = vmatpush2.xpose.msra.mxu0 0.0
          %537 = vmatprep.subr.mxu0 0.0
          %538 = vmatpush2.xpose.msra.mxu0 0.0
          %539 = vmatprep.subr.mxu0 0.0
          %540 = vmatpush2.xpose.msra.mxu0 0.0
          %541 = vmatprep.subr.mxu0 0.0
          %542 = vmatpush2.xpose.msra.mxu0 0.0
          %v543 = vand.u32 %v455, 4294901760
          %v544 = vsub.f32 %v455, %v543
          %v545 = vand.u32 %v544, 4294901760
          %v546 = vsub.f32 %v544, %v545
          %v547 = vand.u32 %v546, 4294901760
          %548 = vmatprep.mubr.f32.mxu0 %v547
          %v549 = vand.u32 %v454, 4294901760
          %v550 = vsub.f32 %v454, %v549
          %v551 = vand.u32 %v550, 4294901760
          %v552 = vsub.f32 %v550, %v551
          %v553 = vand.u32 %v552, 4294901760
          %554 = vmatmul.mubr.f32.gmra.mxu0 %v553
          %v555 = vpop.f32.mrf.mxu0
          %v556 = vadd.f32 0.0, %v555
          %v557 = vpop.f32.mrf.mxu0
          %558 = vdwg.mxu0
          %559 = vmatprep.subr.mxu0 0.0
          %560 = vmatpush1.xpose.msra.mxu0 0.0
          %561 = vmatprep.subr.mxu0 0.0
          %562 = vmatpush1.xpose.msra.mxu0 0.0
          %563 = vmatprep.subr.mxu0 0.0
          %564 = vmatpush1.xpose.msra.mxu0 0.0
          %565 = vmatprep.subr.mxu0 0.0
          %566 = vmatpush1.xpose.msra.mxu0 0.0
          %567 = vmatprep.subr.mxu0 0.0
          %568 = vmatpush1.xpose.msra.mxu0 0.0
          %569 = vmatprep.subr.mxu0 0.0
          %570 = vmatpush1.xpose.msra.mxu0 0.0
          %571 = vmatprep.subr.mxu0 0.0
          %572 = vmatpush1.xpose.msra.mxu0 0.0
          %573 = vmatprep.subr.mxu0 0.0
          %574 = vmatpush1.xpose.msra.mxu0 0.0
          %575 = vmatprep.subr.mxu0 0.0
          %576 = vmatpush1.xpose.msra.mxu0 0.0
          %577 = vmatprep.subr.mxu0 0.0
          %578 = vmatpush1.xpose.msra.mxu0 0.0
          %579 = vmatprep.subr.mxu0 0.0
          %580 = vmatpush1.xpose.msra.mxu0 0.0
          %581 = vmatprep.subr.mxu0 0.0
          %582 = vmatpush1.xpose.msra.mxu0 0.0
          %583 = vmatprep.subr.mxu0 0.0
          %584 = vmatpush1.xpose.msra.mxu0 0.0
          %585 = vmatprep.subr.mxu0 0.0
          %586 = vmatpush1.xpose.msra.mxu0 0.0
          %587 = vmatprep.subr.mxu0 0.0
          %588 = vmatpush1.xpose.msra.mxu0 0.0
          %v589 = vand.u32 %v455, 4294901760
          %v590 = vsub.f32 %v455, %v589
          %v591 = vand.u32 %v590, 4294901760
          %v592 = vsub.f32 %v590, %v591
          %v593 = vand.u32 %v592, 4294901760
          %594 = vmatprep.subr.mxu0 %v593
          %v595 = vand.u32 %v454, 4294901760
          %v596 = vsub.f32 %v454, %v595
          %v597 = vand.u32 %v596, 4294901760
          %v598 = vsub.f32 %v596, %v597
          %v599 = vand.u32 %v598, 4294901760
          %600 = vmatpush1.xpose.msra.mxu0 %v599
          %601 = vmatprep.subr.mxu0 0.0
          %602 = vmatpush2.xpose.msra.mxu0 0.0
          %603 = vmatprep.subr.mxu0 0.0
          %604 = vmatpush2.xpose.msra.mxu0 0.0
          %605 = vmatprep.subr.mxu0 0.0
          %606 = vmatpush2.xpose.msra.mxu0 0.0
          %607 = vmatprep.subr.mxu0 0.0
          %608 = vmatpush2.xpose.msra.mxu0 0.0
          %609 = vmatprep.subr.mxu0 0.0
          %610 = vmatpush2.xpose.msra.mxu0 0.0
          %611 = vmatprep.subr.mxu0 0.0
          %612 = vmatpush2.xpose.msra.mxu0 0.0
          %613 = vmatprep.subr.mxu0 0.0
          %614 = vmatpush2.xpose.msra.mxu0 0.0
          %615 = vmatprep.subr.mxu0 0.0
          %616 = vmatpush2.xpose.msra.mxu0 0.0
          %617 = vmatprep.subr.mxu0 0.0
          %618 = vmatpush2.xpose.msra.mxu0 0.0
          %619 = vmatprep.subr.mxu0 0.0
          %620 = vmatpush2.xpose.msra.mxu0 0.0
          %621 = vmatprep.subr.mxu0 0.0
          %622 = vmatpush2.xpose.msra.mxu0 0.0
          %623 = vmatprep.subr.mxu0 0.0
          %624 = vmatpush2.xpose.msra.mxu0 0.0
          %625 = vmatprep.subr.mxu0 0.0
          %626 = vmatpush2.xpose.msra.mxu0 0.0
          %627 = vmatprep.subr.mxu0 0.0
          %628 = vmatpush2.xpose.msra.mxu0 0.0
          %629 = vmatprep.subr.mxu0 0.0
          %630 = vmatpush2.xpose.msra.mxu0 0.0
          %631 = vmatprep.subr.mxu0 0.0
          %632 = vmatpush2.xpose.msra.mxu0 0.0
          %v633 = vand.u32 %v455, 4294901760
          %634 = vmatprep.mubr.f32.mxu0 %v633
          %v635 = vand.u32 %v454, 4294901760
          %636 = vmatmul.mubr.f32.gmra.mxu0 %v635
          %v637 = vpop.f32.mrf.mxu0
          %v638 = vadd.f32 %v556, %v637
          %v639 = vpop.f32.mrf.mxu0
          %640 = vdwg.mxu0
          %641 = vmatprep.subr.mxu0 0.0
          %642 = vmatpush1.xpose.msra.mxu0 0.0
          %643 = vmatprep.subr.mxu0 0.0
          %644 = vmatpush1.xpose.msra.mxu0 0.0
          %645 = vmatprep.subr.mxu0 0.0
          %646 = vmatpush1.xpose.msra.mxu0 0.0
          %647 = vmatprep.subr.mxu0 0.0
          %648 = vmatpush1.xpose.msra.mxu0 0.0
          %649 = vmatprep.subr.mxu0 0.0
          %650 = vmatpush1.xpose.msra.mxu0 0.0
          %651 = vmatprep.subr.mxu0 0.0
          %652 = vmatpush1.xpose.msra.mxu0 0.0
          %653 = vmatprep.subr.mxu0 0.0
          %654 = vmatpush1.xpose.msra.mxu0 0.0
          %655 = vmatprep.subr.mxu0 0.0
          %656 = vmatpush1.xpose.msra.mxu0 0.0
          %657 = vmatprep.subr.mxu0 0.0
          %658 = vmatpush1.xpose.msra.mxu0 0.0
          %659 = vmatprep.subr.mxu0 0.0
          %660 = vmatpush1.xpose.msra.mxu0 0.0
          %661 = vmatprep.subr.mxu0 0.0
          %662 = vmatpush1.xpose.msra.mxu0 0.0
          %663 = vmatprep.subr.mxu0 0.0
          %664 = vmatpush1.xpose.msra.mxu0 0.0
          %665 = vmatprep.subr.mxu0 0.0
          %666 = vmatpush1.xpose.msra.mxu0 0.0
          %667 = vmatprep.subr.mxu0 0.0
          %668 = vmatpush1.xpose.msra.mxu0 0.0
          %669 = vmatprep.subr.mxu0 0.0
          %670 = vmatpush1.xpose.msra.mxu0 0.0
          %v671 = vand.u32 %v455, 4294901760
          %v672 = vsub.f32 %v455, %v671
          %673 = vmatprep.subr.mxu0 %v672
          %v674 = vand.u32 %v454, 4294901760
          %v675 = vsub.f32 %v454, %v674
          %676 = vmatpush1.xpose.msra.mxu0 %v675
          %677 = vmatprep.subr.mxu0 0.0
          %678 = vmatpush2.xpose.msra.mxu0 0.0
          %679 = vmatprep.subr.mxu0 0.0
          %680 = vmatpush2.xpose.msra.mxu0 0.0
          %681 = vmatprep.subr.mxu0 0.0
          %682 = vmatpush2.xpose.msra.mxu0 0.0
          %683 = vmatprep.subr.mxu0 0.0
          %684 = vmatpush2.xpose.msra.mxu0 0.0
          %685 = vmatprep.subr.mxu0 0.0
          %686 = vmatpush2.xpose.msra.mxu0 0.0
          %687 = vmatprep.subr.mxu0 0.0
          %688 = vmatpush2.xpose.msra.mxu0 0.0
          %689 = vmatprep.subr.mxu0 0.0
          %690 = vmatpush2.xpose.msra.mxu0 0.0
          %691 = vmatprep.subr.mxu0 0.0
          %692 = vmatpush2.xpose.msra.mxu0 0.0
          %693 = vmatprep.subr.mxu0 0.0
          %694 = vmatpush2.xpose.msra.mxu0 0.0
          %695 = vmatprep.subr.mxu0 0.0
          %696 = vmatpush2.xpose.msra.mxu0 0.0
          %697 = vmatprep.subr.mxu0 0.0
          %698 = vmatpush2.xpose.msra.mxu0 0.0
          %699 = vmatprep.subr.mxu0 0.0
          %700 = vmatpush2.xpose.msra.mxu0 0.0
          %701 = vmatprep.subr.mxu0 0.0
          %702 = vmatpush2.xpose.msra.mxu0 0.0
          %703 = vmatprep.subr.mxu0 0.0
          %704 = vmatpush2.xpose.msra.mxu0 0.0
          %705 = vmatprep.subr.mxu0 0.0
          %706 = vmatpush2.xpose.msra.mxu0 0.0
          %707 = vmatprep.subr.mxu0 0.0
          %708 = vmatpush2.xpose.msra.mxu0 0.0
          %v709 = vand.u32 %v455, 4294901760
          %v710 = vsub.f32 %v455, %v709
          %711 = vmatprep.mubr.f32.mxu0 %v710
          %v712 = vand.u32 %v454, 4294901760
          %v713 = vsub.f32 %v454, %v712
          %714 = vmatmul.mubr.f32.gmra.mxu0 %v713
          %v715 = vpop.f32.mrf.mxu0
          %v716 = vadd.f32 %v638, %v715
          %v717 = vpop.f32.mrf.mxu0
          %718 = vdwg.mxu0
          %719 = vmatprep.subr.mxu0 0.0
          %720 = vmatpush1.xpose.msra.mxu0 0.0
          %721 = vmatprep.subr.mxu0 0.0
          %722 = vmatpush1.xpose.msra.mxu0 0.0
          %723 = vmatprep.subr.mxu0 0.0
          %724 = vmatpush1.xpose.msra.mxu0 0.0
          %725 = vmatprep.subr.mxu0 0.0
          %726 = vmatpush1.xpose.msra.mxu0 0.0
          %727 = vmatprep.subr.mxu0 0.0
          %728 = vmatpush1.xpose.msra.mxu0 0.0
          %729 = vmatprep.subr.mxu0 0.0
          %730 = vmatpush1.xpose.msra.mxu0 0.0
          %731 = vmatprep.subr.mxu0 0.0
          %732 = vmatpush1.xpose.msra.mxu0 0.0
          %733 = vmatprep.subr.mxu0 0.0
          %734 = vmatpush1.xpose.msra.mxu0 0.0
          %735 = vmatprep.subr.mxu0 0.0
          %736 = vmatpush1.xpose.msra.mxu0 0.0
          %737 = vmatprep.subr.mxu0 0.0
          %738 = vmatpush1.xpose.msra.mxu0 0.0
          %739 = vmatprep.subr.mxu0 0.0
          %740 = vmatpush1.xpose.msra.mxu0 0.0
          %741 = vmatprep.subr.mxu0 0.0
          %742 = vmatpush1.xpose.msra.mxu0 0.0
          %743 = vmatprep.subr.mxu0 0.0
          %744 = vmatpush1.xpose.msra.mxu0 0.0
          %745 = vmatprep.subr.mxu0 0.0
          %746 = vmatpush1.xpose.msra.mxu0 0.0
          %747 = vmatprep.subr.mxu0 0.0
          %748 = vmatpush1.xpose.msra.mxu0 0.0
          %v749 = vand.u32 %v455, 4294901760
          %750 = vmatprep.subr.mxu0 %v749
          %v751 = vand.u32 %v454, 4294901760
          %752 = vmatpush1.xpose.msra.mxu0 %v751
          %753 = vmatprep.subr.mxu0 0.0
          %754 = vmatpush2.xpose.msra.mxu0 0.0
          %755 = vmatprep.subr.mxu0 0.0
          %756 = vmatpush2.xpose.msra.mxu0 0.0
          %757 = vmatprep.subr.mxu0 0.0
          %758 = vmatpush2.xpose.msra.mxu0 0.0
          %759 = vmatprep.subr.mxu0 0.0
          %760 = vmatpush2.xpose.msra.mxu0 0.0
          %761 = vmatprep.subr.mxu0 0.0
          %762 = vmatpush2.xpose.msra.mxu0 0.0
          %763 = vmatprep.subr.mxu0 0.0
          %764 = vmatpush2.xpose.msra.mxu0 0.0
          %765 = vmatprep.subr.mxu0 0.0
          %766 = vmatpush2.xpose.msra.mxu0 0.0
          %767 = vmatprep.subr.mxu0 0.0
          %768 = vmatpush2.xpose.msra.mxu0 0.0
          %769 = vmatprep.subr.mxu0 0.0
          %770 = vmatpush2.xpose.msra.mxu0 0.0
          %771 = vmatprep.subr.mxu0 0.0
          %772 = vmatpush2.xpose.msra.mxu0 0.0
          %773 = vmatprep.subr.mxu0 0.0
          %774 = vmatpush2.xpose.msra.mxu0 0.0
          %775 = vmatprep.subr.mxu0 0.0
          %776 = vmatpush2.xpose.msra.mxu0 0.0
          %777 = vmatprep.subr.mxu0 0.0
          %778 = vmatpush2.xpose.msra.mxu0 0.0
          %779 = vmatprep.subr.mxu0 0.0
          %780 = vmatpush2.xpose.msra.mxu0 0.0
          %781 = vmatprep.subr.mxu0 0.0
          %782 = vmatpush2.xpose.msra.mxu0 0.0
          %783 = vmatprep.subr.mxu0 0.0
          %784 = vmatpush2.xpose.msra.mxu0 0.0
          %v785 = vand.u32 %v455, 4294901760
          %v786 = vsub.f32 %v455, %v785
          %v787 = vand.u32 %v786, 4294901760
          %788 = vmatprep.mubr.f32.mxu0 %v787
          %v789 = vand.u32 %v454, 4294901760
          %v790 = vsub.f32 %v454, %v789
          %v791 = vand.u32 %v790, 4294901760
          %792 = vmatmul.mubr.f32.gmra.mxu0 %v791
          %v793 = vpop.f32.mrf.mxu0
          %v794 = vadd.f32 %v716, %v793
          %v795 = vpop.f32.mrf.mxu0
          %796 = vdwg.mxu0
          %797 = vmatprep.subr.mxu0 0.0
          %798 = vmatpush1.xpose.msra.mxu0 0.0
          %799 = vmatprep.subr.mxu0 0.0
          %800 = vmatpush1.xpose.msra.mxu0 0.0
          %801 = vmatprep.subr.mxu0 0.0
          %802 = vmatpush1.xpose.msra.mxu0 0.0
          %803 = vmatprep.subr.mxu0 0.0
          %804 = vmatpush1.xpose.msra.mxu0 0.0
          %805 = vmatprep.subr.mxu0 0.0
          %806 = vmatpush1.xpose.msra.mxu0 0.0
          %807 = vmatprep.subr.mxu0 0.0
          %808 = vmatpush1.xpose.msra.mxu0 0.0
          %809 = vmatprep.subr.mxu0 0.0
          %810 = vmatpush1.xpose.msra.mxu0 0.0
          %811 = vmatprep.subr.mxu0 0.0
          %812 = vmatpush1.xpose.msra.mxu0 0.0
          %813 = vmatprep.subr.mxu0 0.0
          %814 = vmatpush1.xpose.msra.mxu0 0.0
          %815 = vmatprep.subr.mxu0 0.0
          %816 = vmatpush1.xpose.msra.mxu0 0.0
          %817 = vmatprep.subr.mxu0 0.0
          %818 = vmatpush1.xpose.msra.mxu0 0.0
          %819 = vmatprep.subr.mxu0 0.0
          %820 = vmatpush1.xpose.msra.mxu0 0.0
          %821 = vmatprep.subr.mxu0 0.0
          %822 = vmatpush1.xpose.msra.mxu0 0.0
          %823 = vmatprep.subr.mxu0 0.0
          %824 = vmatpush1.xpose.msra.mxu0 0.0
          %825 = vmatprep.subr.mxu0 0.0
          %826 = vmatpush1.xpose.msra.mxu0 0.0
          %v827 = vand.u32 %v455, 4294901760
          %v828 = vsub.f32 %v455, %v827
          %v829 = vand.u32 %v828, 4294901760
          %830 = vmatprep.subr.mxu0 %v829
          %v831 = vand.u32 %v454, 4294901760
          %v832 = vsub.f32 %v454, %v831
          %v833 = vand.u32 %v832, 4294901760
          %834 = vmatpush1.xpose.msra.mxu0 %v833
          %835 = vmatprep.subr.mxu0 0.0
          %836 = vmatpush2.xpose.msra.mxu0 0.0
          %837 = vmatprep.subr.mxu0 0.0
          %838 = vmatpush2.xpose.msra.mxu0 0.0
          %839 = vmatprep.subr.mxu0 0.0
          %840 = vmatpush2.xpose.msra.mxu0 0.0
          %841 = vmatprep.subr.mxu0 0.0
          %842 = vmatpush2.xpose.msra.mxu0 0.0
          %843 = vmatprep.subr.mxu0 0.0
          %844 = vmatpush2.xpose.msra.mxu0 0.0
          %845 = vmatprep.subr.mxu0 0.0
          %846 = vmatpush2.xpose.msra.mxu0 0.0
          %847 = vmatprep.subr.mxu0 0.0
          %848 = vmatpush2.xpose.msra.mxu0 0.0
          %849 = vmatprep.subr.mxu0 0.0
          %850 = vmatpush2.xpose.msra.mxu0 0.0
          %851 = vmatprep.subr.mxu0 0.0
          %852 = vmatpush2.xpose.msra.mxu0 0.0
          %853 = vmatprep.subr.mxu0 0.0
          %854 = vmatpush2.xpose.msra.mxu0 0.0
          %855 = vmatprep.subr.mxu0 0.0
          %856 = vmatpush2.xpose.msra.mxu0 0.0
          %857 = vmatprep.subr.mxu0 0.0
          %858 = vmatpush2.xpose.msra.mxu0 0.0
          %859 = vmatprep.subr.mxu0 0.0
          %860 = vmatpush2.xpose.msra.mxu0 0.0
          %861 = vmatprep.subr.mxu0 0.0
          %862 = vmatpush2.xpose.msra.mxu0 0.0
          %863 = vmatprep.subr.mxu0 0.0
          %864 = vmatpush2.xpose.msra.mxu0 0.0
          %865 = vmatprep.subr.mxu0 0.0
          %866 = vmatpush2.xpose.msra.mxu0 0.0
          %v867 = vand.u32 %v455, 4294901760
          %868 = vmatprep.mubr.f32.mxu0 %v867
          %v869 = vand.u32 %v454, 4294901760
          %870 = vmatmul.mubr.f32.gmra.mxu0 %v869
          %v871 = vpop.f32.mrf.mxu0
          %v872 = vadd.f32 %v794, %v871
          %v873 = vpop.f32.mrf.mxu0
          %874 = vdwg.mxu0
          %875 = vmatprep.subr.mxu0 0.0
          %876 = vmatpush1.xpose.msra.mxu0 0.0
          %877 = vmatprep.subr.mxu0 0.0
          %878 = vmatpush1.xpose.msra.mxu0 0.0
          %879 = vmatprep.subr.mxu0 0.0
          %880 = vmatpush1.xpose.msra.mxu0 0.0
          %881 = vmatprep.subr.mxu0 0.0
          %882 = vmatpush1.xpose.msra.mxu0 0.0
          %883 = vmatprep.subr.mxu0 0.0
          %884 = vmatpush1.xpose.msra.mxu0 0.0
          %885 = vmatprep.subr.mxu0 0.0
          %886 = vmatpush1.xpose.msra.mxu0 0.0
          %887 = vmatprep.subr.mxu0 0.0
          %888 = vmatpush1.xpose.msra.mxu0 0.0
          %889 = vmatprep.subr.mxu0 0.0
          %890 = vmatpush1.xpose.msra.mxu0 0.0
          %891 = vmatprep.subr.mxu0 0.0
          %892 = vmatpush1.xpose.msra.mxu0 0.0
          %893 = vmatprep.subr.mxu0 0.0
          %894 = vmatpush1.xpose.msra.mxu0 0.0
          %895 = vmatprep.subr.mxu0 0.0
          %896 = vmatpush1.xpose.msra.mxu0 0.0
          %897 = vmatprep.subr.mxu0 0.0
          %898 = vmatpush1.xpose.msra.mxu0 0.0
          %899 = vmatprep.subr.mxu0 0.0
          %900 = vmatpush1.xpose.msra.mxu0 0.0
          %901 = vmatprep.subr.mxu0 0.0
          %902 = vmatpush1.xpose.msra.mxu0 0.0
          %903 = vmatprep.subr.mxu0 0.0
          %904 = vmatpush1.xpose.msra.mxu0 0.0
          %v905 = vand.u32 %v455, 4294901760
          %906 = vmatprep.subr.mxu0 %v905
          %v907 = vand.u32 %v454, 4294901760
          %908 = vmatpush1.xpose.msra.mxu0 %v907
          %909 = vmatprep.subr.mxu0 0.0
          %910 = vmatpush2.xpose.msra.mxu0 0.0
          %911 = vmatprep.subr.mxu0 0.0
          %912 = vmatpush2.xpose.msra.mxu0 0.0
          %913 = vmatprep.subr.mxu0 0.0
          %914 = vmatpush2.xpose.msra.mxu0 0.0
          %915 = vmatprep.subr.mxu0 0.0
          %916 = vmatpush2.xpose.msra.mxu0 0.0
          %917 = vmatprep.subr.mxu0 0.0
          %918 = vmatpush2.xpose.msra.mxu0 0.0
          %919 = vmatprep.subr.mxu0 0.0
          %920 = vmatpush2.xpose.msra.mxu0 0.0
          %921 = vmatprep.subr.mxu0 0.0
          %922 = vmatpush2.xpose.msra.mxu0 0.0
          %923 = vmatprep.subr.mxu0 0.0
          %924 = vmatpush2.xpose.msra.mxu0 0.0
          %925 = vmatprep.subr.mxu0 0.0
          %926 = vmatpush2.xpose.msra.mxu0 0.0
          %927 = vmatprep.subr.mxu0 0.0
          %928 = vmatpush2.xpose.msra.mxu0 0.0
          %929 = vmatprep.subr.mxu0 0.0
          %930 = vmatpush2.xpose.msra.mxu0 0.0
          %931 = vmatprep.subr.mxu0 0.0
          %932 = vmatpush2.xpose.msra.mxu0 0.0
          %933 = vmatprep.subr.mxu0 0.0
          %934 = vmatpush2.xpose.msra.mxu0 0.0
          %935 = vmatprep.subr.mxu0 0.0
          %936 = vmatpush2.xpose.msra.mxu0 0.0
          %937 = vmatprep.subr.mxu0 0.0
          %938 = vmatpush2.xpose.msra.mxu0 0.0
          %939 = vmatprep.subr.mxu0 0.0
          %940 = vmatpush2.xpose.msra.mxu0 0.0
          %v941 = vand.u32 %v455, 4294901760
          %942 = vmatprep.mubr.f32.mxu0 %v941
          %v943 = vand.u32 %v454, 4294901760
          %944 = vmatmul.mubr.f32.gmra.mxu0 %v943
          %v945 = vpop.f32.mrf.mxu0
          %v946 = vadd.f32 %v872, %v945
          %v947 = vpop.f32.mrf.mxu0
          %948 = vdwg.mxu0
          %v949 = vadd.f32 %v476, %v946
          %vm950 = vcmask 64512
          %951 = vst.msk [vmem:[#allocation4] sm:$0xff] %vm950, %v949
        $region60: #{tpu_custom_call.1} parent=47 // pred_fallthru
          _
        %p952 = scmp.eq.s32.totalorder %s26, 1
        %p953 = pnand %p952, %p323
        %p954 = pneg %p953
        // Predicated region
        $region61: #{tpu_custom_call.1} parent=47 // pred_check
          _
        $region62: #{tpu_custom_call.1} parent=47 // pred_check_branch
          %956 = sbr.rel (%p953) target = $region64
        $region63: #{tpu_custom_call.1} parent=47 // pred_region
          %v957 = vld [vmem:[#allocation2] sm:$0xff]
          %v958 = vld [vmem:[#allocation3] sm:$0xff]
          %v959 = vld [vmem:[#allocation4] sm:$0xff]
          %v961 = vrot.slane %v957, 4
          %v963 = vadd.f32 %v957, %v961
          %v965 = vrot.slane %v958, 4
          %v967 = vadd.f32 %v958, %v965
          %v969 = vrot.slane %v959, 4
          %970 = vrot.lane.b32.xlu0 %v969, 124
          %v971 = vpop.permute.xlu0 %970
          %v973 = vadd.f32 %v959, %v971
          %v974 = vld [vmem:[%s2] sm:$0xf]
          %v975 = vld [vmem:[%s3] sm:$0xf]
          %v976 = vld [vmem:[%s4] sm:$0xf]
          %v977 = vld [vmem:[%s5] sm:$0xff]
          %v978 = vld [vmem:[%s6] sm:$0xff]
          %v979 = vmul.f32 %v963, 0.001953125
          %v980 = vmul.f32 %v967, 0.001953125
          %v981 = vmul.f32 %v979, %v979
          %v982 = vsub.f32 %v980, %v981
          %v983 = vmax.f32 %v982, 0.0
          %v984 = vadd.f32 %v983, 1e-05
          %v985 = vrsqrt.pop %v984
          %v986 = vmul.f32 %v975, %v985
          %988 = vset.pattern.permute.xlu0 0
          %989 = vperm.xlu0 %988, %v986
          %v990 = vpop.permute.xlu0 %989
          %v992 = vmul.f32 %v990, %v974
          %v993 = vmul.f32 %v973, 0.001953125
          %994 = vxpose.xlu0.b32.start [1/16] %v992, 128
          %995 = vxpose.xlu0.b32.cont [2/16] 0.0, 128
          %996 = vxpose.xlu0.b32.cont [3/16] 0.0, 128
          %997 = vxpose.xlu0.b32.cont [4/16] 0.0, 128
          %998 = vxpose.xlu0.b32.cont [5/16] 0.0, 128
          %999 = vxpose.xlu0.b32.cont [6/16] 0.0, 128
          %1000 = vxpose.xlu0.b32.cont [7/16] 0.0, 128
          %1001 = vxpose.xlu0.b32.cont [8/16] 0.0, 128
          %1002 = vxpose.xlu0.b32.cont [9/16] 0.0, 128
          %1003 = vxpose.xlu0.b32.cont [10/16] 0.0, 128
          %1004 = vxpose.xlu0.b32.cont [11/16] 0.0, 128
          %1005 = vxpose.xlu0.b32.cont [12/16] 0.0, 128
          %1006 = vxpose.xlu0.b32.cont [13/16] 0.0, 128
          %1007 = vxpose.xlu0.b32.cont [14/16] 0.0, 128
          %1008 = vxpose.xlu0.b32.cont [15/16] 0.0, 128
          %1009 = vxpose.xlu0.b32.end [16/16] 0.0, 128
          %v1010 = vpop.trf.xlu0
          %v1011 = vpop.trf.xlu0
          %v1012 = vpop.trf.xlu0
          %v1013 = vpop.trf.xlu0
          %v1014 = vpop.trf.xlu0
          %v1015 = vpop.trf.xlu0
          %v1016 = vpop.trf.xlu0
          %v1017 = vpop.trf.xlu0
          %v1018 = vpop.trf.xlu0
          %v1019 = vpop.trf.xlu0
          %v1020 = vpop.trf.xlu0
          %v1021 = vpop.trf.xlu0
          %v1022 = vpop.trf.xlu0
          %v1023 = vpop.trf.xlu0
          %v1024 = vpop.trf.xlu0
          %v1025 = vpop.trf.xlu0
          %vm1026 = vcmask 31744
          %v1028 = vsel %vm1026, %v1010, 0
          %vm1030 = vcmask 1043456
          %v1032 = vsel %vm1030, %v993, 0
          %1034 = vmatprep.subr.mxu0 0.0
          %1035 = vmatpush1.msra.mxu0 0.0
          %1036 = vmatprep.subr.mxu0 0.0
          %1037 = vmatpush1.msra.mxu0 0.0
          %1038 = vmatprep.subr.mxu0 0.0
          %1039 = vmatpush1.msra.mxu0 0.0
          %1040 = vmatprep.subr.mxu0 0.0
          %1041 = vmatpush1.msra.mxu0 0.0
          %1042 = vmatprep.subr.mxu0 0.0
          %1043 = vmatpush1.msra.mxu0 0.0
          %1044 = vmatprep.subr.mxu0 0.0
          %1045 = vmatpush1.msra.mxu0 0.0
          %1046 = vmatprep.subr.mxu0 0.0
          %1047 = vmatpush1.msra.mxu0 0.0
          %1048 = vmatprep.subr.mxu0 0.0
          %1049 = vmatpush1.msra.mxu0 0.0
          %1050 = vmatprep.subr.mxu0 0.0
          %1051 = vmatpush1.msra.mxu0 0.0
          %1052 = vmatprep.subr.mxu0 0.0
          %1053 = vmatpush1.msra.mxu0 0.0
          %1054 = vmatprep.subr.mxu0 0.0
          %1055 = vmatpush1.msra.mxu0 0.0
          %1056 = vmatprep.subr.mxu0 0.0
          %1057 = vmatpush1.msra.mxu0 0.0
          %1058 = vmatprep.subr.mxu0 0.0
          %1059 = vmatpush1.msra.mxu0 0.0
          %1060 = vmatprep.subr.mxu0 0.0
          %1061 = vmatpush1.msra.mxu0 0.0
          %1062 = vmatprep.subr.mxu0 0.0
          %1063 = vmatpush1.msra.mxu0 0.0
          %1064 = vmatprep.subr.mxu0 0.0
          %v1065 = vand.u32 %v1032, 4294901760
          %1066 = vmatpush1.msra.mxu0 %v1065
          %1067 = vmatprep.subr.mxu0 0.0
          %1068 = vmatpush2.msra.mxu0 0.0
          %1069 = vmatprep.subr.mxu0 0.0
          %1070 = vmatpush2.msra.mxu0 0.0
          %1071 = vmatprep.subr.mxu0 0.0
          %1072 = vmatpush2.msra.mxu0 0.0
          %1073 = vmatprep.subr.mxu0 0.0
          %1074 = vmatpush2.msra.mxu0 0.0
          %1075 = vmatprep.subr.mxu0 0.0
          %1076 = vmatpush2.msra.mxu0 0.0
          %1077 = vmatprep.subr.mxu0 0.0
          %1078 = vmatpush2.msra.mxu0 0.0
          %1079 = vmatprep.subr.mxu0 0.0
          %1080 = vmatpush2.msra.mxu0 0.0
          %1081 = vmatprep.subr.mxu0 0.0
          %1082 = vmatpush2.msra.mxu0 0.0
          %1083 = vmatprep.subr.mxu0 0.0
          %1084 = vmatpush2.msra.mxu0 0.0
          %1085 = vmatprep.subr.mxu0 0.0
          %1086 = vmatpush2.msra.mxu0 0.0
          %1087 = vmatprep.subr.mxu0 0.0
          %1088 = vmatpush2.msra.mxu0 0.0
          %1089 = vmatprep.subr.mxu0 0.0
          %1090 = vmatpush2.msra.mxu0 0.0
          %1091 = vmatprep.subr.mxu0 0.0
          %1092 = vmatpush2.msra.mxu0 0.0
          %1093 = vmatprep.subr.mxu0 0.0
          %1094 = vmatpush2.msra.mxu0 0.0
          %1095 = vmatprep.subr.mxu0 0.0
          %1096 = vmatpush2.msra.mxu0 0.0
          %1097 = vmatprep.subr.mxu0 0.0
          %1098 = vmatpush2.msra.mxu0 0.0
          %1099 = vmatprep.mubr.f32.mxu0 0.0
          %v1100 = vand.u32 %v1028, 4294901760
          %v1101 = vsub.f32 %v1028, %v1100
          %v1102 = vand.u32 %v1101, 4294901760
          %v1103 = vsub.f32 %v1101, %v1102
          %v1104 = vand.u32 %v1103, 4294901760
          %1105 = vmatmul.mubr.f32.gmra.mxu0 %v1104
          %v1106 = vpop.f32.mrf.mxu0
          %v1107 = vadd.f32 0.0, %v1106
          %v1108 = vpop.f32.mrf.mxu0
          %1109 = vdwg.mxu0
          %1110 = vmatprep.subr.mxu0 0.0
          %1111 = vmatpush1.msra.mxu0 0.0
          %1112 = vmatprep.subr.mxu0 0.0
          %1113 = vmatpush1.msra.mxu0 0.0
          %1114 = vmatprep.subr.mxu0 0.0
          %1115 = vmatpush1.msra.mxu0 0.0
          %1116 = vmatprep.subr.mxu0 0.0
          %1117 = vmatpush1.msra.mxu0 0.0
          %1118 = vmatprep.subr.mxu0 0.0
          %1119 = vmatpush1.msra.mxu0 0.0
          %1120 = vmatprep.subr.mxu0 0.0
          %1121 = vmatpush1.msra.mxu0 0.0
          %1122 = vmatprep.subr.mxu0 0.0
          %1123 = vmatpush1.msra.mxu0 0.0
          %1124 = vmatprep.subr.mxu0 0.0
          %1125 = vmatpush1.msra.mxu0 0.0
          %1126 = vmatprep.subr.mxu0 0.0
          %1127 = vmatpush1.msra.mxu0 0.0
          %1128 = vmatprep.subr.mxu0 0.0
          %1129 = vmatpush1.msra.mxu0 0.0
          %1130 = vmatprep.subr.mxu0 0.0
          %1131 = vmatpush1.msra.mxu0 0.0
          %1132 = vmatprep.subr.mxu0 0.0
          %1133 = vmatpush1.msra.mxu0 0.0
          %1134 = vmatprep.subr.mxu0 0.0
          %1135 = vmatpush1.msra.mxu0 0.0
          %1136 = vmatprep.subr.mxu0 0.0
          %1137 = vmatpush1.msra.mxu0 0.0
          %1138 = vmatprep.subr.mxu0 0.0
          %1139 = vmatpush1.msra.mxu0 0.0
          %1140 = vmatprep.subr.mxu0 0.0
          %v1141 = vand.u32 %v1032, 4294901760
          %v1142 = vsub.f32 %v1032, %v1141
          %v1143 = vand.u32 %v1142, 4294901760
          %v1144 = vsub.f32 %v1142, %v1143
          %v1145 = vand.u32 %v1144, 4294901760
          %1146 = vmatpush1.msra.mxu0 %v1145
          %1147 = vmatprep.subr.mxu0 0.0
          %1148 = vmatpush2.msra.mxu0 0.0
          %1149 = vmatprep.subr.mxu0 0.0
          %1150 = vmatpush2.msra.mxu0 0.0
          %1151 = vmatprep.subr.mxu0 0.0
          %1152 = vmatpush2.msra.mxu0 0.0
          %1153 = vmatprep.subr.mxu0 0.0
          %1154 = vmatpush2.msra.mxu0 0.0
          %1155 = vmatprep.subr.mxu0 0.0
          %1156 = vmatpush2.msra.mxu0 0.0
          %1157 = vmatprep.subr.mxu0 0.0
          %1158 = vmatpush2.msra.mxu0 0.0
          %1159 = vmatprep.subr.mxu0 0.0
          %1160 = vmatpush2.msra.mxu0 0.0
          %1161 = vmatprep.subr.mxu0 0.0
          %1162 = vmatpush2.msra.mxu0 0.0
          %1163 = vmatprep.subr.mxu0 0.0
          %1164 = vmatpush2.msra.mxu0 0.0
          %1165 = vmatprep.subr.mxu0 0.0
          %1166 = vmatpush2.msra.mxu0 0.0
          %1167 = vmatprep.subr.mxu0 0.0
          %1168 = vmatpush2.msra.mxu0 0.0
          %1169 = vmatprep.subr.mxu0 0.0
          %1170 = vmatpush2.msra.mxu0 0.0
          %1171 = vmatprep.subr.mxu0 0.0
          %1172 = vmatpush2.msra.mxu0 0.0
          %1173 = vmatprep.subr.mxu0 0.0
          %1174 = vmatpush2.msra.mxu0 0.0
          %1175 = vmatprep.subr.mxu0 0.0
          %1176 = vmatpush2.msra.mxu0 0.0
          %1177 = vmatprep.subr.mxu0 0.0
          %1178 = vmatpush2.msra.mxu0 0.0
          %1179 = vmatprep.mubr.f32.mxu0 0.0
          %v1180 = vand.u32 %v1028, 4294901760
          %1181 = vmatmul.mubr.f32.gmra.mxu0 %v1180
          %v1182 = vpop.f32.mrf.mxu0
          %v1183 = vadd.f32 %v1107, %v1182
          %v1184 = vpop.f32.mrf.mxu0
          %1185 = vdwg.mxu0
          %1186 = vmatprep.subr.mxu0 0.0
          %1187 = vmatpush1.msra.mxu0 0.0
          %1188 = vmatprep.subr.mxu0 0.0
          %1189 = vmatpush1.msra.mxu0 0.0
          %1190 = vmatprep.subr.mxu0 0.0
          %1191 = vmatpush1.msra.mxu0 0.0
          %1192 = vmatprep.subr.mxu0 0.0
          %1193 = vmatpush1.msra.mxu0 0.0
          %1194 = vmatprep.subr.mxu0 0.0
          %1195 = vmatpush1.msra.mxu0 0.0
          %1196 = vmatprep.subr.mxu0 0.0
          %1197 = vmatpush1.msra.mxu0 0.0
          %1198 = vmatprep.subr.mxu0 0.0
          %1199 = vmatpush1.msra.mxu0 0.0
          %1200 = vmatprep.subr.mxu0 0.0
          %1201 = vmatpush1.msra.mxu0 0.0
          %1202 = vmatprep.subr.mxu0 0.0
          %1203 = vmatpush1.msra.mxu0 0.0
          %1204 = vmatprep.subr.mxu0 0.0
          %1205 = vmatpush1.msra.mxu0 0.0
          %1206 = vmatprep.subr.mxu0 0.0
          %1207 = vmatpush1.msra.mxu0 0.0
          %1208 = vmatprep.subr.mxu0 0.0
          %1209 = vmatpush1.msra.mxu0 0.0
          %1210 = vmatprep.subr.mxu0 0.0
          %1211 = vmatpush1.msra.mxu0 0.0
          %1212 = vmatprep.subr.mxu0 0.0
          %1213 = vmatpush1.msra.mxu0 0.0
          %1214 = vmatprep.subr.mxu0 0.0
          %1215 = vmatpush1.msra.mxu0 0.0
          %1216 = vmatprep.subr.mxu0 0.0
          %v1217 = vand.u32 %v1032, 4294901760
          %v1218 = vsub.f32 %v1032, %v1217
          %1219 = vmatpush1.msra.mxu0 %v1218
          %1220 = vmatprep.subr.mxu0 0.0
          %1221 = vmatpush2.msra.mxu0 0.0
          %1222 = vmatprep.subr.mxu0 0.0
          %1223 = vmatpush2.msra.mxu0 0.0
          %1224 = vmatprep.subr.mxu0 0.0
          %1225 = vmatpush2.msra.mxu0 0.0
          %1226 = vmatprep.subr.mxu0 0.0
          %1227 = vmatpush2.msra.mxu0 0.0
          %1228 = vmatprep.subr.mxu0 0.0
          %1229 = vmatpush2.msra.mxu0 0.0
          %1230 = vmatprep.subr.mxu0 0.0
          %1231 = vmatpush2.msra.mxu0 0.0
          %1232 = vmatprep.subr.mxu0 0.0
          %1233 = vmatpush2.msra.mxu0 0.0
          %1234 = vmatprep.subr.mxu0 0.0
          %1235 = vmatpush2.msra.mxu0 0.0
          %1236 = vmatprep.subr.mxu0 0.0
          %1237 = vmatpush2.msra.mxu0 0.0
          %1238 = vmatprep.subr.mxu0 0.0
          %1239 = vmatpush2.msra.mxu0 0.0
          %1240 = vmatprep.subr.mxu0 0.0
          %1241 = vmatpush2.msra.mxu0 0.0
          %1242 = vmatprep.subr.mxu0 0.0
          %1243 = vmatpush2.msra.mxu0 0.0
          %1244 = vmatprep.subr.mxu0 0.0
          %1245 = vmatpush2.msra.mxu0 0.0
          %1246 = vmatprep.subr.mxu0 0.0
          %1247 = vmatpush2.msra.mxu0 0.0
          %1248 = vmatprep.subr.mxu0 0.0
          %1249 = vmatpush2.msra.mxu0 0.0
          %1250 = vmatprep.subr.mxu0 0.0
          %1251 = vmatpush2.msra.mxu0 0.0
          %1252 = vmatprep.mubr.f32.mxu0 0.0
          %v1253 = vand.u32 %v1028, 4294901760
          %v1254 = vsub.f32 %v1028, %v1253
          %1255 = vmatmul.mubr.f32.gmra.mxu0 %v1254
          %v1256 = vpop.f32.mrf.mxu0
          %v1257 = vadd.f32 %v1183, %v1256
          %v1258 = vpop.f32.mrf.mxu0
          %1259 = vdwg.mxu0
          %1260 = vmatprep.subr.mxu0 0.0
          %1261 = vmatpush1.msra.mxu0 0.0
          %1262 = vmatprep.subr.mxu0 0.0
          %1263 = vmatpush1.msra.mxu0 0.0
          %1264 = vmatprep.subr.mxu0 0.0
          %1265 = vmatpush1.msra.mxu0 0.0
          %1266 = vmatprep.subr.mxu0 0.0
          %1267 = vmatpush1.msra.mxu0 0.0
          %1268 = vmatprep.subr.mxu0 0.0
          %1269 = vmatpush1.msra.mxu0 0.0
          %1270 = vmatprep.subr.mxu0 0.0
          %1271 = vmatpush1.msra.mxu0 0.0
          %1272 = vmatprep.subr.mxu0 0.0
          %1273 = vmatpush1.msra.mxu0 0.0
          %1274 = vmatprep.subr.mxu0 0.0
          %1275 = vmatpush1.msra.mxu0 0.0
          %1276 = vmatprep.subr.mxu0 0.0
          %1277 = vmatpush1.msra.mxu0 0.0
          %1278 = vmatprep.subr.mxu0 0.0
          %1279 = vmatpush1.msra.mxu0 0.0
          %1280 = vmatprep.subr.mxu0 0.0
          %1281 = vmatpush1.msra.mxu0 0.0
          %1282 = vmatprep.subr.mxu0 0.0
          %1283 = vmatpush1.msra.mxu0 0.0
          %1284 = vmatprep.subr.mxu0 0.0
          %1285 = vmatpush1.msra.mxu0 0.0
          %1286 = vmatprep.subr.mxu0 0.0
          %1287 = vmatpush1.msra.mxu0 0.0
          %1288 = vmatprep.subr.mxu0 0.0
          %1289 = vmatpush1.msra.mxu0 0.0
          %1290 = vmatprep.subr.mxu0 0.0
          %v1291 = vand.u32 %v1032, 4294901760
          %1292 = vmatpush1.msra.mxu0 %v1291
          %1293 = vmatprep.subr.mxu0 0.0
          %1294 = vmatpush2.msra.mxu0 0.0
          %1295 = vmatprep.subr.mxu0 0.0
          %1296 = vmatpush2.msra.mxu0 0.0
          %1297 = vmatprep.subr.mxu0 0.0
          %1298 = vmatpush2.msra.mxu0 0.0
          %1299 = vmatprep.subr.mxu0 0.0
          %1300 = vmatpush2.msra.mxu0 0.0
          %1301 = vmatprep.subr.mxu0 0.0
          %1302 = vmatpush2.msra.mxu0 0.0
          %1303 = vmatprep.subr.mxu0 0.0
          %1304 = vmatpush2.msra.mxu0 0.0
          %1305 = vmatprep.subr.mxu0 0.0
          %1306 = vmatpush2.msra.mxu0 0.0
          %1307 = vmatprep.subr.mxu0 0.0
          %1308 = vmatpush2.msra.mxu0 0.0
          %1309 = vmatprep.subr.mxu0 0.0
          %1310 = vmatpush2.msra.mxu0 0.0
          %1311 = vmatprep.subr.mxu0 0.0
          %1312 = vmatpush2.msra.mxu0 0.0
          %1313 = vmatprep.subr.mxu0 0.0
          %1314 = vmatpush2.msra.mxu0 0.0
          %1315 = vmatprep.subr.mxu0 0.0
          %1316 = vmatpush2.msra.mxu0 0.0
          %1317 = vmatprep.subr.mxu0 0.0
          %1318 = vmatpush2.msra.mxu0 0.0
          %1319 = vmatprep.subr.mxu0 0.0
          %1320 = vmatpush2.msra.mxu0 0.0
          %1321 = vmatprep.subr.mxu0 0.0
          %1322 = vmatpush2.msra.mxu0 0.0
          %1323 = vmatprep.subr.mxu0 0.0
          %1324 = vmatpush2.msra.mxu0 0.0
          %1325 = vmatprep.mubr.f32.mxu0 0.0
          %v1326 = vand.u32 %v1028, 4294901760
          %v1327 = vsub.f32 %v1028, %v1326
          %v1328 = vand.u32 %v1327, 4294901760
          %1329 = vmatmul.mubr.f32.gmra.mxu0 %v1328
          %v1330 = vpop.f32.mrf.mxu0
          %v1331 = vadd.f32 %v1257, %v1330
          %v1332 = vpop.f32.mrf.mxu0
          %1333 = vdwg.mxu0
          %1334 = vmatprep.subr.mxu0 0.0
          %1335 = vmatpush1.msra.mxu0 0.0
          %1336 = vmatprep.subr.mxu0 0.0
          %1337 = vmatpush1.msra.mxu0 0.0
          %1338 = vmatprep.subr.mxu0 0.0
          %1339 = vmatpush1.msra.mxu0 0.0
          %1340 = vmatprep.subr.mxu0 0.0
          %1341 = vmatpush1.msra.mxu0 0.0
          %1342 = vmatprep.subr.mxu0 0.0
          %1343 = vmatpush1.msra.mxu0 0.0
          %1344 = vmatprep.subr.mxu0 0.0
          %1345 = vmatpush1.msra.mxu0 0.0
          %1346 = vmatprep.subr.mxu0 0.0
          %1347 = vmatpush1.msra.mxu0 0.0
          %1348 = vmatprep.subr.mxu0 0.0
          %1349 = vmatpush1.msra.mxu0 0.0
          %1350 = vmatprep.subr.mxu0 0.0
          %1351 = vmatpush1.msra.mxu0 0.0
          %1352 = vmatprep.subr.mxu0 0.0
          %1353 = vmatpush1.msra.mxu0 0.0
          %1354 = vmatprep.subr.mxu0 0.0
          %1355 = vmatpush1.msra.mxu0 0.0
          %1356 = vmatprep.subr.mxu0 0.0
          %1357 = vmatpush1.msra.mxu0 0.0
          %1358 = vmatprep.subr.mxu0 0.0
          %1359 = vmatpush1.msra.mxu0 0.0
          %1360 = vmatprep.subr.mxu0 0.0
          %1361 = vmatpush1.msra.mxu0 0.0
          %1362 = vmatprep.subr.mxu0 0.0
          %1363 = vmatpush1.msra.mxu0 0.0
          %1364 = vmatprep.subr.mxu0 0.0
          %v1365 = vand.u32 %v1032, 4294901760
          %v1366 = vsub.f32 %v1032, %v1365
          %v1367 = vand.u32 %v1366, 4294901760
          %1368 = vmatpush1.msra.mxu0 %v1367
          %1369 = vmatprep.subr.mxu0 0.0
          %1370 = vmatpush2.msra.mxu0 0.0
          %1371 = vmatprep.subr.mxu0 0.0
          %1372 = vmatpush2.msra.mxu0 0.0
          %1373 = vmatprep.subr.mxu0 0.0
          %1374 = vmatpush2.msra.mxu0 0.0
          %1375 = vmatprep.subr.mxu0 0.0
          %1376 = vmatpush2.msra.mxu0 0.0
          %1377 = vmatprep.subr.mxu0 0.0
          %1378 = vmatpush2.msra.mxu0 0.0
          %1379 = vmatprep.subr.mxu0 0.0
          %1380 = vmatpush2.msra.mxu0 0.0
          %1381 = vmatprep.subr.mxu0 0.0
          %1382 = vmatpush2.msra.mxu0 0.0
          %1383 = vmatprep.subr.mxu0 0.0
          %1384 = vmatpush2.msra.mxu0 0.0
          %1385 = vmatprep.subr.mxu0 0.0
          %1386 = vmatpush2.msra.mxu0 0.0
          %1387 = vmatprep.subr.mxu0 0.0
          %1388 = vmatpush2.msra.mxu0 0.0
          %1389 = vmatprep.subr.mxu0 0.0
          %1390 = vmatpush2.msra.mxu0 0.0
          %1391 = vmatprep.subr.mxu0 0.0
          %1392 = vmatpush2.msra.mxu0 0.0
          %1393 = vmatprep.subr.mxu0 0.0
          %1394 = vmatpush2.msra.mxu0 0.0
          %1395 = vmatprep.subr.mxu0 0.0
          %1396 = vmatpush2.msra.mxu0 0.0
          %1397 = vmatprep.subr.mxu0 0.0
          %1398 = vmatpush2.msra.mxu0 0.0
          %1399 = vmatprep.subr.mxu0 0.0
          %1400 = vmatpush2.msra.mxu0 0.0
          %1401 = vmatprep.mubr.f32.mxu0 0.0
          %v1402 = vand.u32 %v1028, 4294901760
          %1403 = vmatmul.mubr.f32.gmra.mxu0 %v1402
          %v1404 = vpop.f32.mrf.mxu0
          %v1405 = vadd.f32 %v1331, %v1404
          %v1406 = vpop.f32.mrf.mxu0
          %1407 = vdwg.mxu0
          %1408 = vmatprep.subr.mxu0 0.0
          %1409 = vmatpush1.msra.mxu0 0.0
          %1410 = vmatprep.subr.mxu0 0.0
          %1411 = vmatpush1.msra.mxu0 0.0
          %1412 = vmatprep.subr.mxu0 0.0
          %1413 = vmatpush1.msra.mxu0 0.0
          %1414 = vmatprep.subr.mxu0 0.0
          %1415 = vmatpush1.msra.mxu0 0.0
          %1416 = vmatprep.subr.mxu0 0.0
          %1417 = vmatpush1.msra.mxu0 0.0
          %1418 = vmatprep.subr.mxu0 0.0
          %1419 = vmatpush1.msra.mxu0 0.0
          %1420 = vmatprep.subr.mxu0 0.0
          %1421 = vmatpush1.msra.mxu0 0.0
          %1422 = vmatprep.subr.mxu0 0.0
          %1423 = vmatpush1.msra.mxu0 0.0
          %1424 = vmatprep.subr.mxu0 0.0
          %1425 = vmatpush1.msra.mxu0 0.0
          %1426 = vmatprep.subr.mxu0 0.0
          %1427 = vmatpush1.msra.mxu0 0.0
          %1428 = vmatprep.subr.mxu0 0.0
          %1429 = vmatpush1.msra.mxu0 0.0
          %1430 = vmatprep.subr.mxu0 0.0
          %1431 = vmatpush1.msra.mxu0 0.0
          %1432 = vmatprep.subr.mxu0 0.0
          %1433 = vmatpush1.msra.mxu0 0.0
          %1434 = vmatprep.subr.mxu0 0.0
          %1435 = vmatpush1.msra.mxu0 0.0
          %1436 = vmatprep.subr.mxu0 0.0
          %1437 = vmatpush1.msra.mxu0 0.0
          %1438 = vmatprep.subr.mxu0 0.0
          %v1439 = vand.u32 %v1032, 4294901760
          %1440 = vmatpush1.msra.mxu0 %v1439
          %1441 = vmatprep.subr.mxu0 0.0
          %1442 = vmatpush2.msra.mxu0 0.0
          %1443 = vmatprep.subr.mxu0 0.0
          %1444 = vmatpush2.msra.mxu0 0.0
          %1445 = vmatprep.subr.mxu0 0.0
          %1446 = vmatpush2.msra.mxu0 0.0
          %1447 = vmatprep.subr.mxu0 0.0
          %1448 = vmatpush2.msra.mxu0 0.0
          %1449 = vmatprep.subr.mxu0 0.0
          %1450 = vmatpush2.msra.mxu0 0.0
          %1451 = vmatprep.subr.mxu0 0.0
          %1452 = vmatpush2.msra.mxu0 0.0
          %1453 = vmatprep.subr.mxu0 0.0
          %1454 = vmatpush2.msra.mxu0 0.0
          %1455 = vmatprep.subr.mxu0 0.0
          %1456 = vmatpush2.msra.mxu0 0.0
          %1457 = vmatprep.subr.mxu0 0.0
          %1458 = vmatpush2.msra.mxu0 0.0
          %1459 = vmatprep.subr.mxu0 0.0
          %1460 = vmatpush2.msra.mxu0 0.0
          %1461 = vmatprep.subr.mxu0 0.0
          %1462 = vmatpush2.msra.mxu0 0.0
          %1463 = vmatprep.subr.mxu0 0.0
          %1464 = vmatpush2.msra.mxu0 0.0
          %1465 = vmatprep.subr.mxu0 0.0
          %1466 = vmatpush2.msra.mxu0 0.0
          %1467 = vmatprep.subr.mxu0 0.0
          %1468 = vmatpush2.msra.mxu0 0.0
          %1469 = vmatprep.subr.mxu0 0.0
          %1470 = vmatpush2.msra.mxu0 0.0
          %1471 = vmatprep.subr.mxu0 0.0
          %1472 = vmatpush2.msra.mxu0 0.0
          %1473 = vmatprep.mubr.f32.mxu0 0.0
          %v1474 = vand.u32 %v1028, 4294901760
          %1475 = vmatmul.mubr.f32.gmra.mxu0 %v1474
          %v1476 = vpop.f32.mrf.mxu0
          %v1477 = vadd.f32 %v1405, %v1476
          %v1478 = vpop.f32.mrf.mxu0
          %1479 = vdwg.mxu0
          %v1481 = vsel %vm1026, %v1477, 0
          %v1484 = vsel %vm1030, %v992, 0
          %1486 = vmatprep.subr.mxu0 0.0
          %1487 = vmatpush1.msra.mxu0 0.0
          %1488 = vmatprep.subr.mxu0 0.0
          %1489 = vmatpush1.msra.mxu0 0.0
          %1490 = vmatprep.subr.mxu0 0.0
          %1491 = vmatpush1.msra.mxu0 0.0
          %1492 = vmatprep.subr.mxu0 0.0
          %1493 = vmatpush1.msra.mxu0 0.0
          %1494 = vmatprep.subr.mxu0 0.0
          %1495 = vmatpush1.msra.mxu0 0.0
          %1496 = vmatprep.subr.mxu0 0.0
          %1497 = vmatpush1.msra.mxu0 0.0
          %1498 = vmatprep.subr.mxu0 0.0
          %1499 = vmatpush1.msra.mxu0 0.0
          %1500 = vmatprep.subr.mxu0 0.0
          %1501 = vmatpush1.msra.mxu0 0.0
          %1502 = vmatprep.subr.mxu0 0.0
          %1503 = vmatpush1.msra.mxu0 0.0
          %1504 = vmatprep.subr.mxu0 0.0
          %1505 = vmatpush1.msra.mxu0 0.0
          %1506 = vmatprep.subr.mxu0 0.0
          %1507 = vmatpush1.msra.mxu0 0.0
          %1508 = vmatprep.subr.mxu0 0.0
          %1509 = vmatpush1.msra.mxu0 0.0
          %1510 = vmatprep.subr.mxu0 0.0
          %1511 = vmatpush1.msra.mxu0 0.0
          %1512 = vmatprep.subr.mxu0 0.0
          %1513 = vmatpush1.msra.mxu0 0.0
          %1514 = vmatprep.subr.mxu0 0.0
          %1515 = vmatpush1.msra.mxu0 0.0
          %1516 = vmatprep.subr.mxu0 0.0
          %v1517 = vand.u32 %v1484, 4294901760
          %1518 = vmatpush1.msra.mxu0 %v1517
          %1519 = vmatprep.subr.mxu0 0.0
          %1520 = vmatpush2.msra.mxu0 0.0
          %1521 = vmatprep.subr.mxu0 0.0
          %1522 = vmatpush2.msra.mxu0 0.0
          %1523 = vmatprep.subr.mxu0 0.0
          %1524 = vmatpush2.msra.mxu0 0.0
          %1525 = vmatprep.subr.mxu0 0.0
          %1526 = vmatpush2.msra.mxu0 0.0
          %1527 = vmatprep.subr.mxu0 0.0
          %1528 = vmatpush2.msra.mxu0 0.0
          %1529 = vmatprep.subr.mxu0 0.0
          %1530 = vmatpush2.msra.mxu0 0.0
          %1531 = vmatprep.subr.mxu0 0.0
          %1532 = vmatpush2.msra.mxu0 0.0
          %1533 = vmatprep.subr.mxu0 0.0
          %1534 = vmatpush2.msra.mxu0 0.0
          %1535 = vmatprep.subr.mxu0 0.0
          %1536 = vmatpush2.msra.mxu0 0.0
          %1537 = vmatprep.subr.mxu0 0.0
          %1538 = vmatpush2.msra.mxu0 0.0
          %1539 = vmatprep.subr.mxu0 0.0
          %1540 = vmatpush2.msra.mxu0 0.0
          %1541 = vmatprep.subr.mxu0 0.0
          %1542 = vmatpush2.msra.mxu0 0.0
          %1543 = vmatprep.subr.mxu0 0.0
          %1544 = vmatpush2.msra.mxu0 0.0
          %1545 = vmatprep.subr.mxu0 0.0
          %1546 = vmatpush2.msra.mxu0 0.0
          %1547 = vmatprep.subr.mxu0 0.0
          %1548 = vmatpush2.msra.mxu0 0.0
          %1549 = vmatprep.subr.mxu0 0.0
          %1550 = vmatpush2.msra.mxu0 0.0
          %1551 = vmatprep.mubr.f32.mxu0 0.0
          %v1552 = vand.u32 %v1481, 4294901760
          %v1553 = vsub.f32 %v1481, %v1552
          %v1554 = vand.u32 %v1553, 4294901760
          %v1555 = vsub.f32 %v1553, %v1554
          %v1556 = vand.u32 %v1555, 4294901760
          %1557 = vmatmul.mubr.f32.gmra.mxu0 %v1556
          %v1558 = vpop.f32.mrf.mxu0
          %v1559 = vadd.f32 0.0, %v1558
          %v1560 = vpop.f32.mrf.mxu0
          %1561 = vdwg.mxu0
          %1562 = vmatprep.subr.mxu0 0.0
          %1563 = vmatpush1.msra.mxu0 0.0
          %1564 = vmatprep.subr.mxu0 0.0
          %1565 = vmatpush1.msra.mxu0 0.0
          %1566 = vmatprep.subr.mxu0 0.0
          %1567 = vmatpush1.msra.mxu0 0.0
          %1568 = vmatprep.subr.mxu0 0.0
          %1569 = vmatpush1.msra.mxu0 0.0
          %1570 = vmatprep.subr.mxu0 0.0
          %1571 = vmatpush1.msra.mxu0 0.0
          %1572 = vmatprep.subr.mxu0 0.0
          %1573 = vmatpush1.msra.mxu0 0.0
          %1574 = vmatprep.subr.mxu0 0.0
          %1575 = vmatpush1.msra.mxu0 0.0
          %1576 = vmatprep.subr.mxu0 0.0
          %1577 = vmatpush1.msra.mxu0 0.0
          %1578 = vmatprep.subr.mxu0 0.0
          %1579 = vmatpush1.msra.mxu0 0.0
          %1580 = vmatprep.subr.mxu0 0.0
          %1581 = vmatpush1.msra.mxu0 0.0
          %1582 = vmatprep.subr.mxu0 0.0
          %1583 = vmatpush1.msra.mxu0 0.0
          %1584 = vmatprep.subr.mxu0 0.0
          %1585 = vmatpush1.msra.mxu0 0.0
          %1586 = vmatprep.subr.mxu0 0.0
          %1587 = vmatpush1.msra.mxu0 0.0
          %1588 = vmatprep.subr.mxu0 0.0
          %1589 = vmatpush1.msra.mxu0 0.0
          %1590 = vmatprep.subr.mxu0 0.0
          %1591 = vmatpush1.msra.mxu0 0.0
          %1592 = vmatprep.subr.mxu0 0.0
          %v1593 = vand.u32 %v1484, 4294901760
          %v1594 = vsub.f32 %v1484, %v1593
          %v1595 = vand.u32 %v1594, 4294901760
          %v1596 = vsub.f32 %v1594, %v1595
          %v1597 = vand.u32 %v1596, 4294901760
          %1598 = vmatpush1.msra.mxu0 %v1597
          %1599 = vmatprep.subr.mxu0 0.0
          %1600 = vmatpush2.msra.mxu0 0.0
          %1601 = vmatprep.subr.mxu0 0.0
          %1602 = vmatpush2.msra.mxu0 0.0
          %1603 = vmatprep.subr.mxu0 0.0
          %1604 = vmatpush2.msra.mxu0 0.0
          %1605 = vmatprep.subr.mxu0 0.0
          %1606 = vmatpush2.msra.mxu0 0.0
          %1607 = vmatprep.subr.mxu0 0.0
          %1608 = vmatpush2.msra.mxu0 0.0
          %1609 = vmatprep.subr.mxu0 0.0
          %1610 = vmatpush2.msra.mxu0 0.0
          %1611 = vmatprep.subr.mxu0 0.0
          %1612 = vmatpush2.msra.mxu0 0.0
          %1613 = vmatprep.subr.mxu0 0.0
          %1614 = vmatpush2.msra.mxu0 0.0
          %1615 = vmatprep.subr.mxu0 0.0
          %1616 = vmatpush2.msra.mxu0 0.0
          %1617 = vmatprep.subr.mxu0 0.0
          %1618 = vmatpush2.msra.mxu0 0.0
          %1619 = vmatprep.subr.mxu0 0.0
          %1620 = vmatpush2.msra.mxu0 0.0
          %1621 = vmatprep.subr.mxu0 0.0
          %1622 = vmatpush2.msra.mxu0 0.0
          %1623 = vmatprep.subr.mxu0 0.0
          %1624 = vmatpush2.msra.mxu0 0.0
          %1625 = vmatprep.subr.mxu0 0.0
          %1626 = vmatpush2.msra.mxu0 0.0
          %1627 = vmatprep.subr.mxu0 0.0
          %1628 = vmatpush2.msra.mxu0 0.0
          %1629 = vmatprep.subr.mxu0 0.0
          %1630 = vmatpush2.msra.mxu0 0.0
          %1631 = vmatprep.mubr.f32.mxu0 0.0
          %v1632 = vand.u32 %v1481, 4294901760
          %1633 = vmatmul.mubr.f32.gmra.mxu0 %v1632
          %v1634 = vpop.f32.mrf.mxu0
          %v1635 = vadd.f32 %v1559, %v1634
          %v1636 = vpop.f32.mrf.mxu0
          %1637 = vdwg.mxu0
          %1638 = vmatprep.subr.mxu0 0.0
          %1639 = vmatpush1.msra.mxu0 0.0
          %1640 = vmatprep.subr.mxu0 0.0
          %1641 = vmatpush1.msra.mxu0 0.0
          %1642 = vmatprep.subr.mxu0 0.0
          %1643 = vmatpush1.msra.mxu0 0.0
          %1644 = vmatprep.subr.mxu0 0.0
          %1645 = vmatpush1.msra.mxu0 0.0
          %1646 = vmatprep.subr.mxu0 0.0
          %1647 = vmatpush1.msra.mxu0 0.0
          %1648 = vmatprep.subr.mxu0 0.0
          %1649 = vmatpush1.msra.mxu0 0.0
          %1650 = vmatprep.subr.mxu0 0.0
          %1651 = vmatpush1.msra.mxu0 0.0
          %1652 = vmatprep.subr.mxu0 0.0
          %1653 = vmatpush1.msra.mxu0 0.0
          %1654 = vmatprep.subr.mxu0 0.0
          %1655 = vmatpush1.msra.mxu0 0.0
          %1656 = vmatprep.subr.mxu0 0.0
          %1657 = vmatpush1.msra.mxu0 0.0
          %1658 = vmatprep.subr.mxu0 0.0
          %1659 = vmatpush1.msra.mxu0 0.0
          %1660 = vmatprep.subr.mxu0 0.0
          %1661 = vmatpush1.msra.mxu0 0.0
          %1662 = vmatprep.subr.mxu0 0.0
          %1663 = vmatpush1.msra.mxu0 0.0
          %1664 = vmatprep.subr.mxu0 0.0
          %1665 = vmatpush1.msra.mxu0 0.0
          %1666 = vmatprep.subr.mxu0 0.0
          %1667 = vmatpush1.msra.mxu0 0.0
          %1668 = vmatprep.subr.mxu0 0.0
          %v1669 = vand.u32 %v1484, 4294901760
          %v1670 = vsub.f32 %v1484, %v1669
          %1671 = vmatpush1.msra.mxu0 %v1670
          %1672 = vmatprep.subr.mxu0 0.0
          %1673 = vmatpush2.msra.mxu0 0.0
          %1674 = vmatprep.subr.mxu0 0.0
          %1675 = vmatpush2.msra.mxu0 0.0
          %1676 = vmatprep.subr.mxu0 0.0
          %1677 = vmatpush2.msra.mxu0 0.0
          %1678 = vmatprep.subr.mxu0 0.0
          %1679 = vmatpush2.msra.mxu0 0.0
          %1680 = vmatprep.subr.mxu0 0.0
          %1681 = vmatpush2.msra.mxu0 0.0
          %1682 = vmatprep.subr.mxu0 0.0
          %1683 = vmatpush2.msra.mxu0 0.0
          %1684 = vmatprep.subr.mxu0 0.0
          %1685 = vmatpush2.msra.mxu0 0.0
          %1686 = vmatprep.subr.mxu0 0.0
          %1687 = vmatpush2.msra.mxu0 0.0
          %1688 = vmatprep.subr.mxu0 0.0
          %1689 = vmatpush2.msra.mxu0 0.0
          %1690 = vmatprep.subr.mxu0 0.0
          %1691 = vmatpush2.msra.mxu0 0.0
          %1692 = vmatprep.subr.mxu0 0.0
          %1693 = vmatpush2.msra.mxu0 0.0
          %1694 = vmatprep.subr.mxu0 0.0
          %1695 = vmatpush2.msra.mxu0 0.0
          %1696 = vmatprep.subr.mxu0 0.0
          %1697 = vmatpush2.msra.mxu0 0.0
          %1698 = vmatprep.subr.mxu0 0.0
          %1699 = vmatpush2.msra.mxu0 0.0
          %1700 = vmatprep.subr.mxu0 0.0
          %1701 = vmatpush2.msra.mxu0 0.0
          %1702 = vmatprep.subr.mxu0 0.0
          %1703 = vmatpush2.msra.mxu0 0.0
          %1704 = vmatprep.mubr.f32.mxu0 0.0
          %v1705 = vand.u32 %v1481, 4294901760
          %v1706 = vsub.f32 %v1481, %v1705
          %1707 = vmatmul.mubr.f32.gmra.mxu0 %v1706
          %v1708 = vpop.f32.mrf.mxu0
          %v1709 = vadd.f32 %v1635, %v1708
          %v1710 = vpop.f32.mrf.mxu0
          %1711 = vdwg.mxu0
          %1712 = vmatprep.subr.mxu0 0.0
          %1713 = vmatpush1.msra.mxu0 0.0
          %1714 = vmatprep.subr.mxu0 0.0
          %1715 = vmatpush1.msra.mxu0 0.0
          %1716 = vmatprep.subr.mxu0 0.0
          %1717 = vmatpush1.msra.mxu0 0.0
          %1718 = vmatprep.subr.mxu0 0.0
          %1719 = vmatpush1.msra.mxu0 0.0
          %1720 = vmatprep.subr.mxu0 0.0
          %1721 = vmatpush1.msra.mxu0 0.0
          %1722 = vmatprep.subr.mxu0 0.0
          %1723 = vmatpush1.msra.mxu0 0.0
          %1724 = vmatprep.subr.mxu0 0.0
          %1725 = vmatpush1.msra.mxu0 0.0
          %1726 = vmatprep.subr.mxu0 0.0
          %1727 = vmatpush1.msra.mxu0 0.0
          %1728 = vmatprep.subr.mxu0 0.0
          %1729 = vmatpush1.msra.mxu0 0.0
          %1730 = vmatprep.subr.mxu0 0.0
          %1731 = vmatpush1.msra.mxu0 0.0
          %1732 = vmatprep.subr.mxu0 0.0
          %1733 = vmatpush1.msra.mxu0 0.0
          %1734 = vmatprep.subr.mxu0 0.0
          %1735 = vmatpush1.msra.mxu0 0.0
          %1736 = vmatprep.subr.mxu0 0.0
          %1737 = vmatpush1.msra.mxu0 0.0
          %1738 = vmatprep.subr.mxu0 0.0
          %1739 = vmatpush1.msra.mxu0 0.0
          %1740 = vmatprep.subr.mxu0 0.0
          %1741 = vmatpush1.msra.mxu0 0.0
          %1742 = vmatprep.subr.mxu0 0.0
          %v1743 = vand.u32 %v1484, 4294901760
          %1744 = vmatpush1.msra.mxu0 %v1743
          %1745 = vmatprep.subr.mxu0 0.0
          %1746 = vmatpush2.msra.mxu0 0.0
          %1747 = vmatprep.subr.mxu0 0.0
          %1748 = vmatpush2.msra.mxu0 0.0
          %1749 = vmatprep.subr.mxu0 0.0
          %1750 = vmatpush2.msra.mxu0 0.0
          %1751 = vmatprep.subr.mxu0 0.0
          %1752 = vmatpush2.msra.mxu0 0.0
          %1753 = vmatprep.subr.mxu0 0.0
          %1754 = vmatpush2.msra.mxu0 0.0
          %1755 = vmatprep.subr.mxu0 0.0
          %1756 = vmatpush2.msra.mxu0 0.0
          %1757 = vmatprep.subr.mxu0 0.0
          %1758 = vmatpush2.msra.mxu0 0.0
          %1759 = vmatprep.subr.mxu0 0.0
          %1760 = vmatpush2.msra.mxu0 0.0
          %1761 = vmatprep.subr.mxu0 0.0
          %1762 = vmatpush2.msra.mxu0 0.0
          %1763 = vmatprep.subr.mxu0 0.0
          %1764 = vmatpush2.msra.mxu0 0.0
          %1765 = vmatprep.subr.mxu0 0.0
          %1766 = vmatpush2.msra.mxu0 0.0
          %1767 = vmatprep.subr.mxu0 0.0
          %1768 = vmatpush2.msra.mxu0 0.0
          %1769 = vmatprep.subr.mxu0 0.0
          %1770 = vmatpush2.msra.mxu0 0.0
          %1771 = vmatprep.subr.mxu0 0.0
          %1772 = vmatpush2.msra.mxu0 0.0
          %1773 = vmatprep.subr.mxu0 0.0
          %1774 = vmatpush2.msra.mxu0 0.0
          %1775 = vmatprep.subr.mxu0 0.0
          %1776 = vmatpush2.msra.mxu0 0.0
          %1777 = vmatprep.mubr.f32.mxu0 0.0
          %v1778 = vand.u32 %v1481, 4294901760
          %v1779 = vsub.f32 %v1481, %v1778
          %v1780 = vand.u32 %v1779, 4294901760
          %1781 = vmatmul.mubr.f32.gmra.mxu0 %v1780
          %v1782 = vpop.f32.mrf.mxu0
          %v1783 = vadd.f32 %v1709, %v1782
          %v1784 = vpop.f32.mrf.mxu0
          %1785 = vdwg.mxu0
          %1786 = vmatprep.subr.mxu0 0.0
          %1787 = vmatpush1.msra.mxu0 0.0
          %1788 = vmatprep.subr.mxu0 0.0
          %1789 = vmatpush1.msra.mxu0 0.0
          %1790 = vmatprep.subr.mxu0 0.0
          %1791 = vmatpush1.msra.mxu0 0.0
          %1792 = vmatprep.subr.mxu0 0.0
          %1793 = vmatpush1.msra.mxu0 0.0
          %1794 = vmatprep.subr.mxu0 0.0
          %1795 = vmatpush1.msra.mxu0 0.0
          %1796 = vmatprep.subr.mxu0 0.0
          %1797 = vmatpush1.msra.mxu0 0.0
          %1798 = vmatprep.subr.mxu0 0.0
          %1799 = vmatpush1.msra.mxu0 0.0
          %1800 = vmatprep.subr.mxu0 0.0
          %1801 = vmatpush1.msra.mxu0 0.0
          %1802 = vmatprep.subr.mxu0 0.0
          %1803 = vmatpush1.msra.mxu0 0.0
          %1804 = vmatprep.subr.mxu0 0.0
          %1805 = vmatpush1.msra.mxu0 0.0
          %1806 = vmatprep.subr.mxu0 0.0
          %1807 = vmatpush1.msra.mxu0 0.0
          %1808 = vmatprep.subr.mxu0 0.0
          %1809 = vmatpush1.msra.mxu0 0.0
          %1810 = vmatprep.subr.mxu0 0.0
          %1811 = vmatpush1.msra.mxu0 0.0
          %1812 = vmatprep.subr.mxu0 0.0
          %1813 = vmatpush1.msra.mxu0 0.0
          %1814 = vmatprep.subr.mxu0 0.0
          %1815 = vmatpush1.msra.mxu0 0.0
          %1816 = vmatprep.subr.mxu0 0.0
          %v1817 = vand.u32 %v1484, 4294901760
          %v1818 = vsub.f32 %v1484, %v1817
          %v1819 = vand.u32 %v1818, 4294901760
          %1820 = vmatpush1.msra.mxu0 %v1819
          %1821 = vmatprep.subr.mxu0 0.0
          %1822 = vmatpush2.msra.mxu0 0.0
          %1823 = vmatprep.subr.mxu0 0.0
          %1824 = vmatpush2.msra.mxu0 0.0
          %1825 = vmatprep.subr.mxu0 0.0
          %1826 = vmatpush2.msra.mxu0 0.0
          %1827 = vmatprep.subr.mxu0 0.0
          %1828 = vmatpush2.msra.mxu0 0.0
          %1829 = vmatprep.subr.mxu0 0.0
          %1830 = vmatpush2.msra.mxu0 0.0
          %1831 = vmatprep.subr.mxu0 0.0
          %1832 = vmatpush2.msra.mxu0 0.0
          %1833 = vmatprep.subr.mxu0 0.0
          %1834 = vmatpush2.msra.mxu0 0.0
          %1835 = vmatprep.subr.mxu0 0.0
          %1836 = vmatpush2.msra.mxu0 0.0
          %1837 = vmatprep.subr.mxu0 0.0
          %1838 = vmatpush2.msra.mxu0 0.0
          %1839 = vmatprep.subr.mxu0 0.0
          %1840 = vmatpush2.msra.mxu0 0.0
          %1841 = vmatprep.subr.mxu0 0.0
          %1842 = vmatpush2.msra.mxu0 0.0
          %1843 = vmatprep.subr.mxu0 0.0
          %1844 = vmatpush2.msra.mxu0 0.0
          %1845 = vmatprep.subr.mxu0 0.0
          %1846 = vmatpush2.msra.mxu0 0.0
          %1847 = vmatprep.subr.mxu0 0.0
          %1848 = vmatpush2.msra.mxu0 0.0
          %1849 = vmatprep.subr.mxu0 0.0
          %1850 = vmatpush2.msra.mxu0 0.0
          %1851 = vmatprep.subr.mxu0 0.0
          %1852 = vmatpush2.msra.mxu0 0.0
          %1853 = vmatprep.mubr.f32.mxu0 0.0
          %v1854 = vand.u32 %v1481, 4294901760
          %1855 = vmatmul.mubr.f32.gmra.mxu0 %v1854
          %v1856 = vpop.f32.mrf.mxu0
          %v1857 = vadd.f32 %v1783, %v1856
          %v1858 = vpop.f32.mrf.mxu0
          %1859 = vdwg.mxu0
          %1860 = vmatprep.subr.mxu0 0.0
          %1861 = vmatpush1.msra.mxu0 0.0
          %1862 = vmatprep.subr.mxu0 0.0
          %1863 = vmatpush1.msra.mxu0 0.0
          %1864 = vmatprep.subr.mxu0 0.0
          %1865 = vmatpush1.msra.mxu0 0.0
          %1866 = vmatprep.subr.mxu0 0.0
          %1867 = vmatpush1.msra.mxu0 0.0
          %1868 = vmatprep.subr.mxu0 0.0
          %1869 = vmatpush1.msra.mxu0 0.0
          %1870 = vmatprep.subr.mxu0 0.0
          %1871 = vmatpush1.msra.mxu0 0.0
          %1872 = vmatprep.subr.mxu0 0.0
          %1873 = vmatpush1.msra.mxu0 0.0
          %1874 = vmatprep.subr.mxu0 0.0
          %1875 = vmatpush1.msra.mxu0 0.0
          %1876 = vmatprep.subr.mxu0 0.0
          %1877 = vmatpush1.msra.mxu0 0.0
          %1878 = vmatprep.subr.mxu0 0.0
          %1879 = vmatpush1.msra.mxu0 0.0
          %1880 = vmatprep.subr.mxu0 0.0
          %1881 = vmatpush1.msra.mxu0 0.0
          %1882 = vmatprep.subr.mxu0 0.0
          %1883 = vmatpush1.msra.mxu0 0.0
          %1884 = vmatprep.subr.mxu0 0.0
          %1885 = vmatpush1.msra.mxu0 0.0
          %1886 = vmatprep.subr.mxu0 0.0
          %1887 = vmatpush1.msra.mxu0 0.0
          %1888 = vmatprep.subr.mxu0 0.0
          %1889 = vmatpush1.msra.mxu0 0.0
          %1890 = vmatprep.subr.mxu0 0.0
          %v1891 = vand.u32 %v1484, 4294901760
          %1892 = vmatpush1.msra.mxu0 %v1891
          %1893 = vmatprep.subr.mxu0 0.0
          %1894 = vmatpush2.msra.mxu0 0.0
          %1895 = vmatprep.subr.mxu0 0.0
          %1896 = vmatpush2.msra.mxu0 0.0
          %1897 = vmatprep.subr.mxu0 0.0
          %1898 = vmatpush2.msra.mxu0 0.0
          %1899 = vmatprep.subr.mxu0 0.0
          %1900 = vmatpush2.msra.mxu0 0.0
          %1901 = vmatprep.subr.mxu0 0.0
          %1902 = vmatpush2.msra.mxu0 0.0
          %1903 = vmatprep.subr.mxu0 0.0
          %1904 = vmatpush2.msra.mxu0 0.0
          %1905 = vmatprep.subr.mxu0 0.0
          %1906 = vmatpush2.msra.mxu0 0.0
          %1907 = vmatprep.subr.mxu0 0.0
          %1908 = vmatpush2.msra.mxu0 0.0
          %1909 = vmatprep.subr.mxu0 0.0
          %1910 = vmatpush2.msra.mxu0 0.0
          %1911 = vmatprep.subr.mxu0 0.0
          %1912 = vmatpush2.msra.mxu0 0.0
          %1913 = vmatprep.subr.mxu0 0.0
          %1914 = vmatpush2.msra.mxu0 0.0
          %1915 = vmatprep.subr.mxu0 0.0
          %1916 = vmatpush2.msra.mxu0 0.0
          %1917 = vmatprep.subr.mxu0 0.0
          %1918 = vmatpush2.msra.mxu0 0.0
          %1919 = vmatprep.subr.mxu0 0.0
          %1920 = vmatpush2.msra.mxu0 0.0
          %1921 = vmatprep.subr.mxu0 0.0
          %1922 = vmatpush2.msra.mxu0 0.0
          %1923 = vmatprep.subr.mxu0 0.0
          %1924 = vmatpush2.msra.mxu0 0.0
          %1925 = vmatprep.mubr.f32.mxu0 0.0
          %v1926 = vand.u32 %v1481, 4294901760
          %1927 = vmatmul.mubr.f32.gmra.mxu0 %v1926
          %v1928 = vpop.f32.mrf.mxu0
          %v1929 = vadd.f32 %v1857, %v1928
          %v1930 = vpop.f32.mrf.mxu0
          %1931 = vdwg.mxu0
          %v1932 = vlaneseq
          %v1933 = vshrl.u32 %v1932, 7
          %v1934 = vlaneseq
          %v1935 = vand.u32 %v1934, 127
          %vm1936 = vcmp.eq.s32.totalorder %v1933, %v1935
          %v1937 = vsel %vm1936, %v1929, 0.0
          %vm1938 = vcmask 64512
          %v1939 = vsel %vm1938, %v1937, 0.0
          %1940 = vadd.xlane.f32.xlu0 %v1939
          %v1941 = vpop.xlane.xlu0 %1940
          %v1943 = vsel %vm1030, %v979, 0
          %1945 = vmatprep.subr.mxu0 0.0
          %1946 = vmatpush1.msra.mxu0 0.0
          %1947 = vmatprep.subr.mxu0 0.0
          %1948 = vmatpush1.msra.mxu0 0.0
          %1949 = vmatprep.subr.mxu0 0.0
          %1950 = vmatpush1.msra.mxu0 0.0
          %1951 = vmatprep.subr.mxu0 0.0
          %1952 = vmatpush1.msra.mxu0 0.0
          %1953 = vmatprep.subr.mxu0 0.0
          %1954 = vmatpush1.msra.mxu0 0.0
          %1955 = vmatprep.subr.mxu0 0.0
          %1956 = vmatpush1.msra.mxu0 0.0
          %1957 = vmatprep.subr.mxu0 0.0
          %1958 = vmatpush1.msra.mxu0 0.0
          %1959 = vmatprep.subr.mxu0 0.0
          %1960 = vmatpush1.msra.mxu0 0.0
          %1961 = vmatprep.subr.mxu0 0.0
          %1962 = vmatpush1.msra.mxu0 0.0
          %1963 = vmatprep.subr.mxu0 0.0
          %1964 = vmatpush1.msra.mxu0 0.0
          %1965 = vmatprep.subr.mxu0 0.0
          %1966 = vmatpush1.msra.mxu0 0.0
          %1967 = vmatprep.subr.mxu0 0.0
          %1968 = vmatpush1.msra.mxu0 0.0
          %1969 = vmatprep.subr.mxu0 0.0
          %1970 = vmatpush1.msra.mxu0 0.0
          %1971 = vmatprep.subr.mxu0 0.0
          %1972 = vmatpush1.msra.mxu0 0.0
          %1973 = vmatprep.subr.mxu0 0.0
          %1974 = vmatpush1.msra.mxu0 0.0
          %1975 = vmatprep.subr.mxu0 0.0
          %v1976 = vand.u32 %v1943, 4294901760
          %1977 = vmatpush1.msra.mxu0 %v1976
          %1978 = vmatprep.subr.mxu0 0.0
          %1979 = vmatpush2.msra.mxu0 0.0
          %1980 = vmatprep.subr.mxu0 0.0
          %1981 = vmatpush2.msra.mxu0 0.0
          %1982 = vmatprep.subr.mxu0 0.0
          %1983 = vmatpush2.msra.mxu0 0.0
          %1984 = vmatprep.subr.mxu0 0.0
          %1985 = vmatpush2.msra.mxu0 0.0
          %1986 = vmatprep.subr.mxu0 0.0
          %1987 = vmatpush2.msra.mxu0 0.0
          %1988 = vmatprep.subr.mxu0 0.0
          %1989 = vmatpush2.msra.mxu0 0.0
          %1990 = vmatprep.subr.mxu0 0.0
          %1991 = vmatpush2.msra.mxu0 0.0
          %1992 = vmatprep.subr.mxu0 0.0
          %1993 = vmatpush2.msra.mxu0 0.0
          %1994 = vmatprep.subr.mxu0 0.0
          %1995 = vmatpush2.msra.mxu0 0.0
          %1996 = vmatprep.subr.mxu0 0.0
          %1997 = vmatpush2.msra.mxu0 0.0
          %1998 = vmatprep.subr.mxu0 0.0
          %1999 = vmatpush2.msra.mxu0 0.0
          %2000 = vmatprep.subr.mxu0 0.0
          %2001 = vmatpush2.msra.mxu0 0.0
          %2002 = vmatprep.subr.mxu0 0.0
          %2003 = vmatpush2.msra.mxu0 0.0
          %2004 = vmatprep.subr.mxu0 0.0
          %2005 = vmatpush2.msra.mxu0 0.0
          %2006 = vmatprep.subr.mxu0 0.0
          %2007 = vmatpush2.msra.mxu0 0.0
          %2008 = vmatprep.subr.mxu0 0.0
          %2009 = vmatpush2.msra.mxu0 0.0
          %2010 = vmatprep.mubr.f32.mxu0 0.0
          %v2011 = vand.u32 %v1028, 4294901760
          %v2012 = vsub.f32 %v1028, %v2011
          %v2013 = vand.u32 %v2012, 4294901760
          %v2014 = vsub.f32 %v2012, %v2013
          %v2015 = vand.u32 %v2014, 4294901760
          %2016 = vmatmul.mubr.f32.gmra.mxu0 %v2015
          %v2017 = vpop.f32.mrf.mxu0
          %v2018 = vadd.f32 0.0, %v2017
          %v2019 = vpop.f32.mrf.mxu0
          %2020 = vdwg.mxu0
          %2021 = vmatprep.subr.mxu0 0.0
          %2022 = vmatpush1.msra.mxu0 0.0
          %2023 = vmatprep.subr.mxu0 0.0
          %2024 = vmatpush1.msra.mxu0 0.0
          %2025 = vmatprep.subr.mxu0 0.0
          %2026 = vmatpush1.msra.mxu0 0.0
          %2027 = vmatprep.subr.mxu0 0.0
          %2028 = vmatpush1.msra.mxu0 0.0
          %2029 = vmatprep.subr.mxu0 0.0
          %2030 = vmatpush1.msra.mxu0 0.0
          %2031 = vmatprep.subr.mxu0 0.0
          %2032 = vmatpush1.msra.mxu0 0.0
          %2033 = vmatprep.subr.mxu0 0.0
          %2034 = vmatpush1.msra.mxu0 0.0
          %2035 = vmatprep.subr.mxu0 0.0
          %2036 = vmatpush1.msra.mxu0 0.0
          %2037 = vmatprep.subr.mxu0 0.0
          %2038 = vmatpush1.msra.mxu0 0.0
          %2039 = vmatprep.subr.mxu0 0.0
          %2040 = vmatpush1.msra.mxu0 0.0
          %2041 = vmatprep.subr.mxu0 0.0
          %2042 = vmatpush1.msra.mxu0 0.0
          %2043 = vmatprep.subr.mxu0 0.0
          %2044 = vmatpush1.msra.mxu0 0.0
          %2045 = vmatprep.subr.mxu0 0.0
          %2046 = vmatpush1.msra.mxu0 0.0
          %2047 = vmatprep.subr.mxu0 0.0
          %2048 = vmatpush1.msra.mxu0 0.0
          %2049 = vmatprep.subr.mxu0 0.0
          %2050 = vmatpush1.msra.mxu0 0.0
          %2051 = vmatprep.subr.mxu0 0.0
          %v2052 = vand.u32 %v1943, 4294901760
          %v2053 = vsub.f32 %v1943, %v2052
          %v2054 = vand.u32 %v2053, 4294901760
          %v2055 = vsub.f32 %v2053, %v2054
          %v2056 = vand.u32 %v2055, 4294901760
          %2057 = vmatpush1.msra.mxu0 %v2056
          %2058 = vmatprep.subr.mxu0 0.0
          %2059 = vmatpush2.msra.mxu0 0.0
          %2060 = vmatprep.subr.mxu0 0.0
          %2061 = vmatpush2.msra.mxu0 0.0
          %2062 = vmatprep.subr.mxu0 0.0
          %2063 = vmatpush2.msra.mxu0 0.0
          %2064 = vmatprep.subr.mxu0 0.0
          %2065 = vmatpush2.msra.mxu0 0.0
          %2066 = vmatprep.subr.mxu0 0.0
          %2067 = vmatpush2.msra.mxu0 0.0
          %2068 = vmatprep.subr.mxu0 0.0
          %2069 = vmatpush2.msra.mxu0 0.0
          %2070 = vmatprep.subr.mxu0 0.0
          %2071 = vmatpush2.msra.mxu0 0.0
          %2072 = vmatprep.subr.mxu0 0.0
          %2073 = vmatpush2.msra.mxu0 0.0
          %2074 = vmatprep.subr.mxu0 0.0
          %2075 = vmatpush2.msra.mxu0 0.0
          %2076 = vmatprep.subr.mxu0 0.0
          %2077 = vmatpush2.msra.mxu0 0.0
          %2078 = vmatprep.subr.mxu0 0.0
          %2079 = vmatpush2.msra.mxu0 0.0
          %2080 = vmatprep.subr.mxu0 0.0
          %2081 = vmatpush2.msra.mxu0 0.0
          %2082 = vmatprep.subr.mxu0 0.0
          %2083 = vmatpush2.msra.mxu0 0.0
          %2084 = vmatprep.subr.mxu0 0.0
          %2085 = vmatpush2.msra.mxu0 0.0
          %2086 = vmatprep.subr.mxu0 0.0
          %2087 = vmatpush2.msra.mxu0 0.0
          %2088 = vmatprep.subr.mxu0 0.0
          %2089 = vmatpush2.msra.mxu0 0.0
          %2090 = vmatprep.mubr.f32.mxu0 0.0
          %v2091 = vand.u32 %v1028, 4294901760
          %2092 = vmatmul.mubr.f32.gmra.mxu0 %v2091
          %v2093 = vpop.f32.mrf.mxu0
          %v2094 = vadd.f32 %v2018, %v2093
          %v2095 = vpop.f32.mrf.mxu0
          %2096 = vdwg.mxu0
          %2097 = vmatprep.subr.mxu0 0.0
          %2098 = vmatpush1.msra.mxu0 0.0
          %2099 = vmatprep.subr.mxu0 0.0
          %2100 = vmatpush1.msra.mxu0 0.0
          %2101 = vmatprep.subr.mxu0 0.0
          %2102 = vmatpush1.msra.mxu0 0.0
          %2103 = vmatprep.subr.mxu0 0.0
          %2104 = vmatpush1.msra.mxu0 0.0
          %2105 = vmatprep.subr.mxu0 0.0
          %2106 = vmatpush1.msra.mxu0 0.0
          %2107 = vmatprep.subr.mxu0 0.0
          %2108 = vmatpush1.msra.mxu0 0.0
          %2109 = vmatprep.subr.mxu0 0.0
          %2110 = vmatpush1.msra.mxu0 0.0
          %2111 = vmatprep.subr.mxu0 0.0
          %2112 = vmatpush1.msra.mxu0 0.0
          %2113 = vmatprep.subr.mxu0 0.0
          %2114 = vmatpush1.msra.mxu0 0.0
          %2115 = vmatprep.subr.mxu0 0.0
          %2116 = vmatpush1.msra.mxu0 0.0
          %2117 = vmatprep.subr.mxu0 0.0
          %2118 = vmatpush1.msra.mxu0 0.0
          %2119 = vmatprep.subr.mxu0 0.0
          %2120 = vmatpush1.msra.mxu0 0.0
          %2121 = vmatprep.subr.mxu0 0.0
          %2122 = vmatpush1.msra.mxu0 0.0
          %2123 = vmatprep.subr.mxu0 0.0
          %2124 = vmatpush1.msra.mxu0 0.0
          %2125 = vmatprep.subr.mxu0 0.0
          %2126 = vmatpush1.msra.mxu0 0.0
          %2127 = vmatprep.subr.mxu0 0.0
          %v2128 = vand.u32 %v1943, 4294901760
          %v2129 = vsub.f32 %v1943, %v2128
          %2130 = vmatpush1.msra.mxu0 %v2129
          %2131 = vmatprep.subr.mxu0 0.0
          %2132 = vmatpush2.msra.mxu0 0.0
          %2133 = vmatprep.subr.mxu0 0.0
          %2134 = vmatpush2.msra.mxu0 0.0
          %2135 = vmatprep.subr.mxu0 0.0
          %2136 = vmatpush2.msra.mxu0 0.0
          %2137 = vmatprep.subr.mxu0 0.0
          %2138 = vmatpush2.msra.mxu0 0.0
          %2139 = vmatprep.subr.mxu0 0.0
          %2140 = vmatpush2.msra.mxu0 0.0
          %2141 = vmatprep.subr.mxu0 0.0
          %2142 = vmatpush2.msra.mxu0 0.0
          %2143 = vmatprep.subr.mxu0 0.0
          %2144 = vmatpush2.msra.mxu0 0.0
          %2145 = vmatprep.subr.mxu0 0.0
          %2146 = vmatpush2.msra.mxu0 0.0
          %2147 = vmatprep.subr.mxu0 0.0
          %2148 = vmatpush2.msra.mxu0 0.0
          %2149 = vmatprep.subr.mxu0 0.0
          %2150 = vmatpush2.msra.mxu0 0.0
          %2151 = vmatprep.subr.mxu0 0.0
          %2152 = vmatpush2.msra.mxu0 0.0
          %2153 = vmatprep.subr.mxu0 0.0
          %2154 = vmatpush2.msra.mxu0 0.0
          %2155 = vmatprep.subr.mxu0 0.0
          %2156 = vmatpush2.msra.mxu0 0.0
          %2157 = vmatprep.subr.mxu0 0.0
          %2158 = vmatpush2.msra.mxu0 0.0
          %2159 = vmatprep.subr.mxu0 0.0
          %2160 = vmatpush2.msra.mxu0 0.0
          %2161 = vmatprep.subr.mxu0 0.0
          %2162 = vmatpush2.msra.mxu0 0.0
          %2163 = vmatprep.mubr.f32.mxu0 0.0
          %v2164 = vand.u32 %v1028, 4294901760
          %v2165 = vsub.f32 %v1028, %v2164
          %2166 = vmatmul.mubr.f32.gmra.mxu0 %v2165
          %v2167 = vpop.f32.mrf.mxu0
          %v2168 = vadd.f32 %v2094, %v2167
          %v2169 = vpop.f32.mrf.mxu0
          %2170 = vdwg.mxu0
          %2171 = vmatprep.subr.mxu0 0.0
          %2172 = vmatpush1.msra.mxu0 0.0
          %2173 = vmatprep.subr.mxu0 0.0
          %2174 = vmatpush1.msra.mxu0 0.0
          %2175 = vmatprep.subr.mxu0 0.0
          %2176 = vmatpush1.msra.mxu0 0.0
          %2177 = vmatprep.subr.mxu0 0.0
          %2178 = vmatpush1.msra.mxu0 0.0
          %2179 = vmatprep.subr.mxu0 0.0
          %2180 = vmatpush1.msra.mxu0 0.0
          %2181 = vmatprep.subr.mxu0 0.0
          %2182 = vmatpush1.msra.mxu0 0.0
          %2183 = vmatprep.subr.mxu0 0.0
          %2184 = vmatpush1.msra.mxu0 0.0
          %2185 = vmatprep.subr.mxu0 0.0
          %2186 = vmatpush1.msra.mxu0 0.0
          %2187 = vmatprep.subr.mxu0 0.0
          %2188 = vmatpush1.msra.mxu0 0.0
          %2189 = vmatprep.subr.mxu0 0.0
          %2190 = vmatpush1.msra.mxu0 0.0
          %2191 = vmatprep.subr.mxu0 0.0
          %2192 = vmatpush1.msra.mxu0 0.0
          %2193 = vmatprep.subr.mxu0 0.0
          %2194 = vmatpush1.msra.mxu0 0.0
          %2195 = vmatprep.subr.mxu0 0.0
          %2196 = vmatpush1.msra.mxu0 0.0
          %2197 = vmatprep.subr.mxu0 0.0
          %2198 = vmatpush1.msra.mxu0 0.0
          %2199 = vmatprep.subr.mxu0 0.0
          %2200 = vmatpush1.msra.mxu0 0.0
          %2201 = vmatprep.subr.mxu0 0.0
          %v2202 = vand.u32 %v1943, 4294901760
          %2203 = vmatpush1.msra.mxu0 %v2202
          %2204 = vmatprep.subr.mxu0 0.0
          %2205 = vmatpush2.msra.mxu0 0.0
          %2206 = vmatprep.subr.mxu0 0.0
          %2207 = vmatpush2.msra.mxu0 0.0
          %2208 = vmatprep.subr.mxu0 0.0
          %2209 = vmatpush2.msra.mxu0 0.0
          %2210 = vmatprep.subr.mxu0 0.0
          %2211 = vmatpush2.msra.mxu0 0.0
          %2212 = vmatprep.subr.mxu0 0.0
          %2213 = vmatpush2.msra.mxu0 0.0
          %2214 = vmatprep.subr.mxu0 0.0
          %2215 = vmatpush2.msra.mxu0 0.0
          %2216 = vmatprep.subr.mxu0 0.0
          %2217 = vmatpush2.msra.mxu0 0.0
          %2218 = vmatprep.subr.mxu0 0.0
          %2219 = vmatpush2.msra.mxu0 0.0
          %2220 = vmatprep.subr.mxu0 0.0
          %2221 = vmatpush2.msra.mxu0 0.0
          %2222 = vmatprep.subr.mxu0 0.0
          %2223 = vmatpush2.msra.mxu0 0.0
          %2224 = vmatprep.subr.mxu0 0.0
          %2225 = vmatpush2.msra.mxu0 0.0
          %2226 = vmatprep.subr.mxu0 0.0
          %2227 = vmatpush2.msra.mxu0 0.0
          %2228 = vmatprep.subr.mxu0 0.0
          %2229 = vmatpush2.msra.mxu0 0.0
          %2230 = vmatprep.subr.mxu0 0.0
          %2231 = vmatpush2.msra.mxu0 0.0
          %2232 = vmatprep.subr.mxu0 0.0
          %2233 = vmatpush2.msra.mxu0 0.0
          %2234 = vmatprep.subr.mxu0 0.0
          %2235 = vmatpush2.msra.mxu0 0.0
          %2236 = vmatprep.mubr.f32.mxu0 0.0
          %v2237 = vand.u32 %v1028, 4294901760
          %v2238 = vsub.f32 %v1028, %v2237
          %v2239 = vand.u32 %v2238, 4294901760
          %2240 = vmatmul.mubr.f32.gmra.mxu0 %v2239
          %v2241 = vpop.f32.mrf.mxu0
          %v2242 = vadd.f32 %v2168, %v2241
          %v2243 = vpop.f32.mrf.mxu0
          %2244 = vdwg.mxu0
          %2245 = vmatprep.subr.mxu0 0.0
          %2246 = vmatpush1.msra.mxu0 0.0
          %2247 = vmatprep.subr.mxu0 0.0
          %2248 = vmatpush1.msra.mxu0 0.0
          %2249 = vmatprep.subr.mxu0 0.0
          %2250 = vmatpush1.msra.mxu0 0.0
          %2251 = vmatprep.subr.mxu0 0.0
          %2252 = vmatpush1.msra.mxu0 0.0
          %2253 = vmatprep.subr.mxu0 0.0
          %2254 = vmatpush1.msra.mxu0 0.0
          %2255 = vmatprep.subr.mxu0 0.0
          %2256 = vmatpush1.msra.mxu0 0.0
          %2257 = vmatprep.subr.mxu0 0.0
          %2258 = vmatpush1.msra.mxu0 0.0
          %2259 = vmatprep.subr.mxu0 0.0
          %2260 = vmatpush1.msra.mxu0 0.0
          %2261 = vmatprep.subr.mxu0 0.0
          %2262 = vmatpush1.msra.mxu0 0.0
          %2263 = vmatprep.subr.mxu0 0.0
          %2264 = vmatpush1.msra.mxu0 0.0
          %2265 = vmatprep.subr.mxu0 0.0
          %2266 = vmatpush1.msra.mxu0 0.0
          %2267 = vmatprep.subr.mxu0 0.0
          %2268 = vmatpush1.msra.mxu0 0.0
          %2269 = vmatprep.subr.mxu0 0.0
          %2270 = vmatpush1.msra.mxu0 0.0
          %2271 = vmatprep.subr.mxu0 0.0
          %2272 = vmatpush1.msra.mxu0 0.0
          %2273 = vmatprep.subr.mxu0 0.0
          %2274 = vmatpush1.msra.mxu0 0.0
          %2275 = vmatprep.subr.mxu0 0.0
          %v2276 = vand.u32 %v1943, 4294901760
          %v2277 = vsub.f32 %v1943, %v2276
          %v2278 = vand.u32 %v2277, 4294901760
          %2279 = vmatpush1.msra.mxu0 %v2278
          %2280 = vmatprep.subr.mxu0 0.0
          %2281 = vmatpush2.msra.mxu0 0.0
          %2282 = vmatprep.subr.mxu0 0.0
          %2283 = vmatpush2.msra.mxu0 0.0
          %2284 = vmatprep.subr.mxu0 0.0
          %2285 = vmatpush2.msra.mxu0 0.0
          %2286 = vmatprep.subr.mxu0 0.0
          %2287 = vmatpush2.msra.mxu0 0.0
          %2288 = vmatprep.subr.mxu0 0.0
          %2289 = vmatpush2.msra.mxu0 0.0
          %2290 = vmatprep.subr.mxu0 0.0
          %2291 = vmatpush2.msra.mxu0 0.0
          %2292 = vmatprep.subr.mxu0 0.0
          %2293 = vmatpush2.msra.mxu0 0.0
          %2294 = vmatprep.subr.mxu0 0.0
          %2295 = vmatpush2.msra.mxu0 0.0
          %2296 = vmatprep.subr.mxu0 0.0
          %2297 = vmatpush2.msra.mxu0 0.0
          %2298 = vmatprep.subr.mxu0 0.0
          %2299 = vmatpush2.msra.mxu0 0.0
          %2300 = vmatprep.subr.mxu0 0.0
          %2301 = vmatpush2.msra.mxu0 0.0
          %2302 = vmatprep.subr.mxu0 0.0
          %2303 = vmatpush2.msra.mxu0 0.0
          %2304 = vmatprep.subr.mxu0 0.0
          %2305 = vmatpush2.msra.mxu0 0.0
          %2306 = vmatprep.subr.mxu0 0.0
          %2307 = vmatpush2.msra.mxu0 0.0
          %2308 = vmatprep.subr.mxu0 0.0
          %2309 = vmatpush2.msra.mxu0 0.0
          %2310 = vmatprep.subr.mxu0 0.0
          %2311 = vmatpush2.msra.mxu0 0.0
          %2312 = vmatprep.mubr.f32.mxu0 0.0
          %v2313 = vand.u32 %v1028, 4294901760
          %2314 = vmatmul.mubr.f32.gmra.mxu0 %v2313
          %v2315 = vpop.f32.mrf.mxu0
          %v2316 = vadd.f32 %v2242, %v2315
          %v2317 = vpop.f32.mrf.mxu0
          %2318 = vdwg.mxu0
          %2319 = vmatprep.subr.mxu0 0.0
          %2320 = vmatpush1.msra.mxu0 0.0
          %2321 = vmatprep.subr.mxu0 0.0
          %2322 = vmatpush1.msra.mxu0 0.0
          %2323 = vmatprep.subr.mxu0 0.0
          %2324 = vmatpush1.msra.mxu0 0.0
          %2325 = vmatprep.subr.mxu0 0.0
          %2326 = vmatpush1.msra.mxu0 0.0
          %2327 = vmatprep.subr.mxu0 0.0
          %2328 = vmatpush1.msra.mxu0 0.0
          %2329 = vmatprep.subr.mxu0 0.0
          %2330 = vmatpush1.msra.mxu0 0.0
          %2331 = vmatprep.subr.mxu0 0.0
          %2332 = vmatpush1.msra.mxu0 0.0
          %2333 = vmatprep.subr.mxu0 0.0
          %2334 = vmatpush1.msra.mxu0 0.0
          %2335 = vmatprep.subr.mxu0 0.0
          %2336 = vmatpush1.msra.mxu0 0.0
          %2337 = vmatprep.subr.mxu0 0.0
          %2338 = vmatpush1.msra.mxu0 0.0
          %2339 = vmatprep.subr.mxu0 0.0
          %2340 = vmatpush1.msra.mxu0 0.0
          %2341 = vmatprep.subr.mxu0 0.0
          %2342 = vmatpush1.msra.mxu0 0.0
          %2343 = vmatprep.subr.mxu0 0.0
          %2344 = vmatpush1.msra.mxu0 0.0
          %2345 = vmatprep.subr.mxu0 0.0
          %2346 = vmatpush1.msra.mxu0 0.0
          %2347 = vmatprep.subr.mxu0 0.0
          %2348 = vmatpush1.msra.mxu0 0.0
          %2349 = vmatprep.subr.mxu0 0.0
          %v2350 = vand.u32 %v1943, 4294901760
          %2351 = vmatpush1.msra.mxu0 %v2350
          %2352 = vmatprep.subr.mxu0 0.0
          %2353 = vmatpush2.msra.mxu0 0.0
          %2354 = vmatprep.subr.mxu0 0.0
          %2355 = vmatpush2.msra.mxu0 0.0
          %2356 = vmatprep.subr.mxu0 0.0
          %2357 = vmatpush2.msra.mxu0 0.0
          %2358 = vmatprep.subr.mxu0 0.0
          %2359 = vmatpush2.msra.mxu0 0.0
          %2360 = vmatprep.subr.mxu0 0.0
          %2361 = vmatpush2.msra.mxu0 0.0
          %2362 = vmatprep.subr.mxu0 0.0
          %2363 = vmatpush2.msra.mxu0 0.0
          %2364 = vmatprep.subr.mxu0 0.0
          %2365 = vmatpush2.msra.mxu0 0.0
          %2366 = vmatprep.subr.mxu0 0.0
          %2367 = vmatpush2.msra.mxu0 0.0
          %2368 = vmatprep.subr.mxu0 0.0
          %2369 = vmatpush2.msra.mxu0 0.0
          %2370 = vmatprep.subr.mxu0 0.0
          %2371 = vmatpush2.msra.mxu0 0.0
          %2372 = vmatprep.subr.mxu0 0.0
          %2373 = vmatpush2.msra.mxu0 0.0
          %2374 = vmatprep.subr.mxu0 0.0
          %2375 = vmatpush2.msra.mxu0 0.0
          %2376 = vmatprep.subr.mxu0 0.0
          %2377 = vmatpush2.msra.mxu0 0.0
          %2378 = vmatprep.subr.mxu0 0.0
          %2379 = vmatpush2.msra.mxu0 0.0
          %2380 = vmatprep.subr.mxu0 0.0
          %2381 = vmatpush2.msra.mxu0 0.0
          %2382 = vmatprep.subr.mxu0 0.0
          %2383 = vmatpush2.msra.mxu0 0.0
          %2384 = vmatprep.mubr.f32.mxu0 0.0
          %v2385 = vand.u32 %v1028, 4294901760
          %2386 = vmatmul.mubr.f32.gmra.mxu0 %v2385
          %v2387 = vpop.f32.mrf.mxu0
          %v2388 = vadd.f32 %v2316, %v2387
          %v2389 = vpop.f32.mrf.mxu0
          %2390 = vdwg.mxu0
          %v2391 = vmul.f32 %v2388, %v2388
          %v2392 = vsub.f32 %v1941, %v2391
          %v2393 = vmax.f32 %v2392, 0.0
          %v2394 = vadd.f32 %v2393, 1e-05
          %v2395 = vrsqrt.pop %v2394
          %v2396 = vmul.f32 %v977, %v2395
          %2397 = vxpose.xlu0.b32.start [1/16] %v974, 128
          %2398 = vxpose.xlu0.b32.cont [2/16] 0.0, 128
          %2399 = vxpose.xlu0.b32.cont [3/16] 0.0, 128
          %2400 = vxpose.xlu0.b32.cont [4/16] 0.0, 128
          %2401 = vxpose.xlu0.b32.cont [5/16] 0.0, 128
          %2402 = vxpose.xlu0.b32.cont [6/16] 0.0, 128
          %2403 = vxpose.xlu0.b32.cont [7/16] 0.0, 128
          %2404 = vxpose.xlu0.b32.cont [8/16] 0.0, 128
          %2405 = vxpose.xlu0.b32.cont [9/16] 0.0, 128
          %2406 = vxpose.xlu0.b32.cont [10/16] 0.0, 128
          %2407 = vxpose.xlu0.b32.cont [11/16] 0.0, 128
          %2408 = vxpose.xlu0.b32.cont [12/16] 0.0, 128
          %2409 = vxpose.xlu0.b32.cont [13/16] 0.0, 128
          %2410 = vxpose.xlu0.b32.cont [14/16] 0.0, 128
          %2411 = vxpose.xlu0.b32.cont [15/16] 0.0, 128
          %2412 = vxpose.xlu0.b32.end [16/16] 0.0, 128
          %v2413 = vpop.trf.xlu0
          %v2414 = vpop.trf.xlu0
          %v2415 = vpop.trf.xlu0
          %v2416 = vpop.trf.xlu0
          %v2417 = vpop.trf.xlu0
          %v2418 = vpop.trf.xlu0
          %v2419 = vpop.trf.xlu0
          %v2420 = vpop.trf.xlu0
          %v2421 = vpop.trf.xlu0
          %v2422 = vpop.trf.xlu0
          %v2423 = vpop.trf.xlu0
          %v2424 = vpop.trf.xlu0
          %v2425 = vpop.trf.xlu0
          %v2426 = vpop.trf.xlu0
          %v2427 = vpop.trf.xlu0
          %v2428 = vpop.trf.xlu0
          %v2430 = vsel %vm1026, %v2413, 0
          %v2433 = vsel %vm1030, %v976, 0
          %2435 = vmatprep.subr.mxu0 0.0
          %2436 = vmatpush1.msra.mxu0 0.0
          %2437 = vmatprep.subr.mxu0 0.0
          %2438 = vmatpush1.msra.mxu0 0.0
          %2439 = vmatprep.subr.mxu0 0.0
          %2440 = vmatpush1.msra.mxu0 0.0
          %2441 = vmatprep.subr.mxu0 0.0
          %2442 = vmatpush1.msra.mxu0 0.0
          %2443 = vmatprep.subr.mxu0 0.0
          %2444 = vmatpush1.msra.mxu0 0.0
          %2445 = vmatprep.subr.mxu0 0.0
          %2446 = vmatpush1.msra.mxu0 0.0
          %2447 = vmatprep.subr.mxu0 0.0
          %2448 = vmatpush1.msra.mxu0 0.0
          %2449 = vmatprep.subr.mxu0 0.0
          %2450 = vmatpush1.msra.mxu0 0.0
          %2451 = vmatprep.subr.mxu0 0.0
          %2452 = vmatpush1.msra.mxu0 0.0
          %2453 = vmatprep.subr.mxu0 0.0
          %2454 = vmatpush1.msra.mxu0 0.0
          %2455 = vmatprep.subr.mxu0 0.0
          %2456 = vmatpush1.msra.mxu0 0.0
          %2457 = vmatprep.subr.mxu0 0.0
          %2458 = vmatpush1.msra.mxu0 0.0
          %2459 = vmatprep.subr.mxu0 0.0
          %2460 = vmatpush1.msra.mxu0 0.0
          %2461 = vmatprep.subr.mxu0 0.0
          %2462 = vmatpush1.msra.mxu0 0.0
          %2463 = vmatprep.subr.mxu0 0.0
          %2464 = vmatpush1.msra.mxu0 0.0
          %2465 = vmatprep.subr.mxu0 0.0
          %v2466 = vand.u32 %v2433, 4294901760
          %2467 = vmatpush1.msra.mxu0 %v2466
          %2468 = vmatprep.subr.mxu0 0.0
          %2469 = vmatpush2.msra.mxu0 0.0
          %2470 = vmatprep.subr.mxu0 0.0
          %2471 = vmatpush2.msra.mxu0 0.0
          %2472 = vmatprep.subr.mxu0 0.0
          %2473 = vmatpush2.msra.mxu0 0.0
          %2474 = vmatprep.subr.mxu0 0.0
          %2475 = vmatpush2.msra.mxu0 0.0
          %2476 = vmatprep.subr.mxu0 0.0
          %2477 = vmatpush2.msra.mxu0 0.0
          %2478 = vmatprep.subr.mxu0 0.0
          %2479 = vmatpush2.msra.mxu0 0.0
          %2480 = vmatprep.subr.mxu0 0.0
          %2481 = vmatpush2.msra.mxu0 0.0
          %2482 = vmatprep.subr.mxu0 0.0
          %2483 = vmatpush2.msra.mxu0 0.0
          %2484 = vmatprep.subr.mxu0 0.0
          %2485 = vmatpush2.msra.mxu0 0.0
          %2486 = vmatprep.subr.mxu0 0.0
          %2487 = vmatpush2.msra.mxu0 0.0
          %2488 = vmatprep.subr.mxu0 0.0
          %2489 = vmatpush2.msra.mxu0 0.0
          %2490 = vmatprep.subr.mxu0 0.0
          %2491 = vmatpush2.msra.mxu0 0.0
          %2492 = vmatprep.subr.mxu0 0.0
          %2493 = vmatpush2.msra.mxu0 0.0
          %2494 = vmatprep.subr.mxu0 0.0
          %2495 = vmatpush2.msra.mxu0 0.0
          %2496 = vmatprep.subr.mxu0 0.0
          %2497 = vmatpush2.msra.mxu0 0.0
          %2498 = vmatprep.subr.mxu0 0.0
          %2499 = vmatpush2.msra.mxu0 0.0
          %2500 = vmatprep.mubr.f32.mxu0 0.0
          %v2501 = vand.u32 %v2430, 4294901760
          %v2502 = vsub.f32 %v2430, %v2501
          %v2503 = vand.u32 %v2502, 4294901760
          %v2504 = vsub.f32 %v2502, %v2503
          %v2505 = vand.u32 %v2504, 4294901760
          %2506 = vmatmul.mubr.f32.gmra.mxu0 %v2505
          %v2507 = vpop.f32.mrf.mxu0
          %v2508 = vadd.f32 0.0, %v2507
          %v2509 = vpop.f32.mrf.mxu0
          %2510 = vdwg.mxu0
          %2511 = vmatprep.subr.mxu0 0.0
          %2512 = vmatpush1.msra.mxu0 0.0
          %2513 = vmatprep.subr.mxu0 0.0
          %2514 = vmatpush1.msra.mxu0 0.0
          %2515 = vmatprep.subr.mxu0 0.0
          %2516 = vmatpush1.msra.mxu0 0.0
          %2517 = vmatprep.subr.mxu0 0.0
          %2518 = vmatpush1.msra.mxu0 0.0
          %2519 = vmatprep.subr.mxu0 0.0
          %2520 = vmatpush1.msra.mxu0 0.0
          %2521 = vmatprep.subr.mxu0 0.0
          %2522 = vmatpush1.msra.mxu0 0.0
          %2523 = vmatprep.subr.mxu0 0.0
          %2524 = vmatpush1.msra.mxu0 0.0
          %2525 = vmatprep.subr.mxu0 0.0
          %2526 = vmatpush1.msra.mxu0 0.0
          %2527 = vmatprep.subr.mxu0 0.0
          %2528 = vmatpush1.msra.mxu0 0.0
          %2529 = vmatprep.subr.mxu0 0.0
          %2530 = vmatpush1.msra.mxu0 0.0
          %2531 = vmatprep.subr.mxu0 0.0
          %2532 = vmatpush1.msra.mxu0 0.0
          %2533 = vmatprep.subr.mxu0 0.0
          %2534 = vmatpush1.msra.mxu0 0.0
          %2535 = vmatprep.subr.mxu0 0.0
          %2536 = vmatpush1.msra.mxu0 0.0
          %2537 = vmatprep.subr.mxu0 0.0
          %2538 = vmatpush1.msra.mxu0 0.0
          %2539 = vmatprep.subr.mxu0 0.0
          %2540 = vmatpush1.msra.mxu0 0.0
          %2541 = vmatprep.subr.mxu0 0.0
          %v2542 = vand.u32 %v2433, 4294901760
          %v2543 = vsub.f32 %v2433, %v2542
          %v2544 = vand.u32 %v2543, 4294901760
          %v2545 = vsub.f32 %v2543, %v2544
          %v2546 = vand.u32 %v2545, 4294901760
          %2547 = vmatpush1.msra.mxu0 %v2546
          %2548 = vmatprep.subr.mxu0 0.0
          %2549 = vmatpush2.msra.mxu0 0.0
          %2550 = vmatprep.subr.mxu0 0.0
          %2551 = vmatpush2.msra.mxu0 0.0
          %2552 = vmatprep.subr.mxu0 0.0
          %2553 = vmatpush2.msra.mxu0 0.0
          %2554 = vmatprep.subr.mxu0 0.0
          %2555 = vmatpush2.msra.mxu0 0.0
          %2556 = vmatprep.subr.mxu0 0.0
          %2557 = vmatpush2.msra.mxu0 0.0
          %2558 = vmatprep.subr.mxu0 0.0
          %2559 = vmatpush2.msra.mxu0 0.0
          %2560 = vmatprep.subr.mxu0 0.0
          %2561 = vmatpush2.msra.mxu0 0.0
          %2562 = vmatprep.subr.mxu0 0.0
          %2563 = vmatpush2.msra.mxu0 0.0
          %2564 = vmatprep.subr.mxu0 0.0
          %2565 = vmatpush2.msra.mxu0 0.0
          %2566 = vmatprep.subr.mxu0 0.0
          %2567 = vmatpush2.msra.mxu0 0.0
          %2568 = vmatprep.subr.mxu0 0.0
          %2569 = vmatpush2.msra.mxu0 0.0
          %2570 = vmatprep.subr.mxu0 0.0
          %2571 = vmatpush2.msra.mxu0 0.0
          %2572 = vmatprep.subr.mxu0 0.0
          %2573 = vmatpush2.msra.mxu0 0.0
          %2574 = vmatprep.subr.mxu0 0.0
          %2575 = vmatpush2.msra.mxu0 0.0
          %2576 = vmatprep.subr.mxu0 0.0
          %2577 = vmatpush2.msra.mxu0 0.0
          %2578 = vmatprep.subr.mxu0 0.0
          %2579 = vmatpush2.msra.mxu0 0.0
          %2580 = vmatprep.mubr.f32.mxu0 0.0
          %v2581 = vand.u32 %v2430, 4294901760
          %2582 = vmatmul.mubr.f32.gmra.mxu0 %v2581
          %v2583 = vpop.f32.mrf.mxu0
          %v2584 = vadd.f32 %v2508, %v2583
          %v2585 = vpop.f32.mrf.mxu0
          %2586 = vdwg.mxu0
          %2587 = vmatprep.subr.mxu0 0.0
          %2588 = vmatpush1.msra.mxu0 0.0
          %2589 = vmatprep.subr.mxu0 0.0
          %2590 = vmatpush1.msra.mxu0 0.0
          %2591 = vmatprep.subr.mxu0 0.0
          %2592 = vmatpush1.msra.mxu0 0.0
          %2593 = vmatprep.subr.mxu0 0.0
          %2594 = vmatpush1.msra.mxu0 0.0
          %2595 = vmatprep.subr.mxu0 0.0
          %2596 = vmatpush1.msra.mxu0 0.0
          %2597 = vmatprep.subr.mxu0 0.0
          %2598 = vmatpush1.msra.mxu0 0.0
          %2599 = vmatprep.subr.mxu0 0.0
          %2600 = vmatpush1.msra.mxu0 0.0
          %2601 = vmatprep.subr.mxu0 0.0
          %2602 = vmatpush1.msra.mxu0 0.0
          %2603 = vmatprep.subr.mxu0 0.0
          %2604 = vmatpush1.msra.mxu0 0.0
          %2605 = vmatprep.subr.mxu0 0.0
          %2606 = vmatpush1.msra.mxu0 0.0
          %2607 = vmatprep.subr.mxu0 0.0
          %2608 = vmatpush1.msra.mxu0 0.0
          %2609 = vmatprep.subr.mxu0 0.0
          %2610 = vmatpush1.msra.mxu0 0.0
          %2611 = vmatprep.subr.mxu0 0.0
          %2612 = vmatpush1.msra.mxu0 0.0
          %2613 = vmatprep.subr.mxu0 0.0
          %2614 = vmatpush1.msra.mxu0 0.0
          %2615 = vmatprep.subr.mxu0 0.0
          %2616 = vmatpush1.msra.mxu0 0.0
          %2617 = vmatprep.subr.mxu0 0.0
          %v2618 = vand.u32 %v2433, 4294901760
          %v2619 = vsub.f32 %v2433, %v2618
          %2620 = vmatpush1.msra.mxu0 %v2619
          %2621 = vmatprep.subr.mxu0 0.0
          %2622 = vmatpush2.msra.mxu0 0.0
          %2623 = vmatprep.subr.mxu0 0.0
          %2624 = vmatpush2.msra.mxu0 0.0
          %2625 = vmatprep.subr.mxu0 0.0
          %2626 = vmatpush2.msra.mxu0 0.0
          %2627 = vmatprep.subr.mxu0 0.0
          %2628 = vmatpush2.msra.mxu0 0.0
          %2629 = vmatprep.subr.mxu0 0.0
          %2630 = vmatpush2.msra.mxu0 0.0
          %2631 = vmatprep.subr.mxu0 0.0
          %2632 = vmatpush2.msra.mxu0 0.0
          %2633 = vmatprep.subr.mxu0 0.0
          %2634 = vmatpush2.msra.mxu0 0.0
          %2635 = vmatprep.subr.mxu0 0.0
          %2636 = vmatpush2.msra.mxu0 0.0
          %2637 = vmatprep.subr.mxu0 0.0
          %2638 = vmatpush2.msra.mxu0 0.0
          %2639 = vmatprep.subr.mxu0 0.0
          %2640 = vmatpush2.msra.mxu0 0.0
          %2641 = vmatprep.subr.mxu0 0.0
          %2642 = vmatpush2.msra.mxu0 0.0
          %2643 = vmatprep.subr.mxu0 0.0
          %2644 = vmatpush2.msra.mxu0 0.0
          %2645 = vmatprep.subr.mxu0 0.0
          %2646 = vmatpush2.msra.mxu0 0.0
          %2647 = vmatprep.subr.mxu0 0.0
          %2648 = vmatpush2.msra.mxu0 0.0
          %2649 = vmatprep.subr.mxu0 0.0
          %2650 = vmatpush2.msra.mxu0 0.0
          %2651 = vmatprep.subr.mxu0 0.0
          %2652 = vmatpush2.msra.mxu0 0.0
          %2653 = vmatprep.mubr.f32.mxu0 0.0
          %v2654 = vand.u32 %v2430, 4294901760
          %v2655 = vsub.f32 %v2430, %v2654
          %2656 = vmatmul.mubr.f32.gmra.mxu0 %v2655
          %v2657 = vpop.f32.mrf.mxu0
          %v2658 = vadd.f32 %v2584, %v2657
          %v2659 = vpop.f32.mrf.mxu0
          %2660 = vdwg.mxu0
          %2661 = vmatprep.subr.mxu0 0.0
          %2662 = vmatpush1.msra.mxu0 0.0
          %2663 = vmatprep.subr.mxu0 0.0
          %2664 = vmatpush1.msra.mxu0 0.0
          %2665 = vmatprep.subr.mxu0 0.0
          %2666 = vmatpush1.msra.mxu0 0.0
          %2667 = vmatprep.subr.mxu0 0.0
          %2668 = vmatpush1.msra.mxu0 0.0
          %2669 = vmatprep.subr.mxu0 0.0
          %2670 = vmatpush1.msra.mxu0 0.0
          %2671 = vmatprep.subr.mxu0 0.0
          %2672 = vmatpush1.msra.mxu0 0.0
          %2673 = vmatprep.subr.mxu0 0.0
          %2674 = vmatpush1.msra.mxu0 0.0
          %2675 = vmatprep.subr.mxu0 0.0
          %2676 = vmatpush1.msra.mxu0 0.0
          %2677 = vmatprep.subr.mxu0 0.0
          %2678 = vmatpush1.msra.mxu0 0.0
          %2679 = vmatprep.subr.mxu0 0.0
          %2680 = vmatpush1.msra.mxu0 0.0
          %2681 = vmatprep.subr.mxu0 0.0
          %2682 = vmatpush1.msra.mxu0 0.0
          %2683 = vmatprep.subr.mxu0 0.0
          %2684 = vmatpush1.msra.mxu0 0.0
          %2685 = vmatprep.subr.mxu0 0.0
          %2686 = vmatpush1.msra.mxu0 0.0
          %2687 = vmatprep.subr.mxu0 0.0
          %2688 = vmatpush1.msra.mxu0 0.0
          %2689 = vmatprep.subr.mxu0 0.0
          %2690 = vmatpush1.msra.mxu0 0.0
          %2691 = vmatprep.subr.mxu0 0.0
          %v2692 = vand.u32 %v2433, 4294901760
          %2693 = vmatpush1.msra.mxu0 %v2692
          %2694 = vmatprep.subr.mxu0 0.0
          %2695 = vmatpush2.msra.mxu0 0.0
          %2696 = vmatprep.subr.mxu0 0.0
          %2697 = vmatpush2.msra.mxu0 0.0
          %2698 = vmatprep.subr.mxu0 0.0
          %2699 = vmatpush2.msra.mxu0 0.0
          %2700 = vmatprep.subr.mxu0 0.0
          %2701 = vmatpush2.msra.mxu0 0.0
          %2702 = vmatprep.subr.mxu0 0.0
          %2703 = vmatpush2.msra.mxu0 0.0
          %2704 = vmatprep.subr.mxu0 0.0
          %2705 = vmatpush2.msra.mxu0 0.0
          %2706 = vmatprep.subr.mxu0 0.0
          %2707 = vmatpush2.msra.mxu0 0.0
          %2708 = vmatprep.subr.mxu0 0.0
          %2709 = vmatpush2.msra.mxu0 0.0
          %2710 = vmatprep.subr.mxu0 0.0
          %2711 = vmatpush2.msra.mxu0 0.0
          %2712 = vmatprep.subr.mxu0 0.0
          %2713 = vmatpush2.msra.mxu0 0.0
          %2714 = vmatprep.subr.mxu0 0.0
          %2715 = vmatpush2.msra.mxu0 0.0
          %2716 = vmatprep.subr.mxu0 0.0
          %2717 = vmatpush2.msra.mxu0 0.0
          %2718 = vmatprep.subr.mxu0 0.0
          %2719 = vmatpush2.msra.mxu0 0.0
          %2720 = vmatprep.subr.mxu0 0.0
          %2721 = vmatpush2.msra.mxu0 0.0
          %2722 = vmatprep.subr.mxu0 0.0
          %2723 = vmatpush2.msra.mxu0 0.0
          %2724 = vmatprep.subr.mxu0 0.0
          %2725 = vmatpush2.msra.mxu0 0.0
          %2726 = vmatprep.mubr.f32.mxu0 0.0
          %v2727 = vand.u32 %v2430, 4294901760
          %v2728 = vsub.f32 %v2430, %v2727
          %v2729 = vand.u32 %v2728, 4294901760
          %2730 = vmatmul.mubr.f32.gmra.mxu0 %v2729
          %v2731 = vpop.f32.mrf.mxu0
          %v2732 = vadd.f32 %v2658, %v2731
          %v2733 = vpop.f32.mrf.mxu0
          %2734 = vdwg.mxu0
          %2735 = vmatprep.subr.mxu0 0.0
          %2736 = vmatpush1.msra.mxu0 0.0
          %2737 = vmatprep.subr.mxu0 0.0
          %2738 = vmatpush1.msra.mxu0 0.0
          %2739 = vmatprep.subr.mxu0 0.0
          %2740 = vmatpush1.msra.mxu0 0.0
          %2741 = vmatprep.subr.mxu0 0.0
          %2742 = vmatpush1.msra.mxu0 0.0
          %2743 = vmatprep.subr.mxu0 0.0
          %2744 = vmatpush1.msra.mxu0 0.0
          %2745 = vmatprep.subr.mxu0 0.0
          %2746 = vmatpush1.msra.mxu0 0.0
          %2747 = vmatprep.subr.mxu0 0.0
          %2748 = vmatpush1.msra.mxu0 0.0
          %2749 = vmatprep.subr.mxu0 0.0
          %2750 = vmatpush1.msra.mxu0 0.0
          %2751 = vmatprep.subr.mxu0 0.0
          %2752 = vmatpush1.msra.mxu0 0.0
          %2753 = vmatprep.subr.mxu0 0.0
          %2754 = vmatpush1.msra.mxu0 0.0
          %2755 = vmatprep.subr.mxu0 0.0
          %2756 = vmatpush1.msra.mxu0 0.0
          %2757 = vmatprep.subr.mxu0 0.0
          %2758 = vmatpush1.msra.mxu0 0.0
          %2759 = vmatprep.subr.mxu0 0.0
          %2760 = vmatpush1.msra.mxu0 0.0
          %2761 = vmatprep.subr.mxu0 0.0
          %2762 = vmatpush1.msra.mxu0 0.0
          %2763 = vmatprep.subr.mxu0 0.0
          %2764 = vmatpush1.msra.mxu0 0.0
          %2765 = vmatprep.subr.mxu0 0.0
          %v2766 = vand.u32 %v2433, 4294901760
          %v2767 = vsub.f32 %v2433, %v2766
          %v2768 = vand.u32 %v2767, 4294901760
          %2769 = vmatpush1.msra.mxu0 %v2768
          %2770 = vmatprep.subr.mxu0 0.0
          %2771 = vmatpush2.msra.mxu0 0.0
          %2772 = vmatprep.subr.mxu0 0.0
          %2773 = vmatpush2.msra.mxu0 0.0
          %2774 = vmatprep.subr.mxu0 0.0
          %2775 = vmatpush2.msra.mxu0 0.0
          %2776 = vmatprep.subr.mxu0 0.0
          %2777 = vmatpush2.msra.mxu0 0.0
          %2778 = vmatprep.subr.mxu0 0.0
          %2779 = vmatpush2.msra.mxu0 0.0
          %2780 = vmatprep.subr.mxu0 0.0
          %2781 = vmatpush2.msra.mxu0 0.0
          %2782 = vmatprep.subr.mxu0 0.0
          %2783 = vmatpush2.msra.mxu0 0.0
          %2784 = vmatprep.subr.mxu0 0.0
          %2785 = vmatpush2.msra.mxu0 0.0
          %2786 = vmatprep.subr.mxu0 0.0
          %2787 = vmatpush2.msra.mxu0 0.0
          %2788 = vmatprep.subr.mxu0 0.0
          %2789 = vmatpush2.msra.mxu0 0.0
          %2790 = vmatprep.subr.mxu0 0.0
          %2791 = vmatpush2.msra.mxu0 0.0
          %2792 = vmatprep.subr.mxu0 0.0
          %2793 = vmatpush2.msra.mxu0 0.0
          %2794 = vmatprep.subr.mxu0 0.0
          %2795 = vmatpush2.msra.mxu0 0.0
          %2796 = vmatprep.subr.mxu0 0.0
          %2797 = vmatpush2.msra.mxu0 0.0
          %2798 = vmatprep.subr.mxu0 0.0
          %2799 = vmatpush2.msra.mxu0 0.0
          %2800 = vmatprep.subr.mxu0 0.0
          %2801 = vmatpush2.msra.mxu0 0.0
          %2802 = vmatprep.mubr.f32.mxu0 0.0
          %v2803 = vand.u32 %v2430, 4294901760
          %2804 = vmatmul.mubr.f32.gmra.mxu0 %v2803
          %v2805 = vpop.f32.mrf.mxu0
          %v2806 = vadd.f32 %v2732, %v2805
          %v2807 = vpop.f32.mrf.mxu0
          %2808 = vdwg.mxu0
          %2809 = vmatprep.subr.mxu0 0.0
          %2810 = vmatpush1.msra.mxu0 0.0
          %2811 = vmatprep.subr.mxu0 0.0
          %2812 = vmatpush1.msra.mxu0 0.0
          %2813 = vmatprep.subr.mxu0 0.0
          %2814 = vmatpush1.msra.mxu0 0.0
          %2815 = vmatprep.subr.mxu0 0.0
          %2816 = vmatpush1.msra.mxu0 0.0
          %2817 = vmatprep.subr.mxu0 0.0
          %2818 = vmatpush1.msra.mxu0 0.0
          %2819 = vmatprep.subr.mxu0 0.0
          %2820 = vmatpush1.msra.mxu0 0.0
          %2821 = vmatprep.subr.mxu0 0.0
          %2822 = vmatpush1.msra.mxu0 0.0
          %2823 = vmatprep.subr.mxu0 0.0
          %2824 = vmatpush1.msra.mxu0 0.0
          %2825 = vmatprep.subr.mxu0 0.0
          %2826 = vmatpush1.msra.mxu0 0.0
          %2827 = vmatprep.subr.mxu0 0.0
          %2828 = vmatpush1.msra.mxu0 0.0
          %2829 = vmatprep.subr.mxu0 0.0
          %2830 = vmatpush1.msra.mxu0 0.0
          %2831 = vmatprep.subr.mxu0 0.0
          %2832 = vmatpush1.msra.mxu0 0.0
          %2833 = vmatprep.subr.mxu0 0.0
          %2834 = vmatpush1.msra.mxu0 0.0
          %2835 = vmatprep.subr.mxu0 0.0
          %2836 = vmatpush1.msra.mxu0 0.0
          %2837 = vmatprep.subr.mxu0 0.0
          %2838 = vmatpush1.msra.mxu0 0.0
          %2839 = vmatprep.subr.mxu0 0.0
          %v2840 = vand.u32 %v2433, 4294901760
          %2841 = vmatpush1.msra.mxu0 %v2840
          %2842 = vmatprep.subr.mxu0 0.0
          %2843 = vmatpush2.msra.mxu0 0.0
          %2844 = vmatprep.subr.mxu0 0.0
          %2845 = vmatpush2.msra.mxu0 0.0
          %2846 = vmatprep.subr.mxu0 0.0
          %2847 = vmatpush2.msra.mxu0 0.0
          %2848 = vmatprep.subr.mxu0 0.0
          %2849 = vmatpush2.msra.mxu0 0.0
          %2850 = vmatprep.subr.mxu0 0.0
          %2851 = vmatpush2.msra.mxu0 0.0
          %2852 = vmatprep.subr.mxu0 0.0
          %2853 = vmatpush2.msra.mxu0 0.0
          %2854 = vmatprep.subr.mxu0 0.0
          %2855 = vmatpush2.msra.mxu0 0.0
          %2856 = vmatprep.subr.mxu0 0.0
          %2857 = vmatpush2.msra.mxu0 0.0
          %2858 = vmatprep.subr.mxu0 0.0
          %2859 = vmatpush2.msra.mxu0 0.0
          %2860 = vmatprep.subr.mxu0 0.0
          %2861 = vmatpush2.msra.mxu0 0.0
          %2862 = vmatprep.subr.mxu0 0.0
          %2863 = vmatpush2.msra.mxu0 0.0
          %2864 = vmatprep.subr.mxu0 0.0
          %2865 = vmatpush2.msra.mxu0 0.0
          %2866 = vmatprep.subr.mxu0 0.0
          %2867 = vmatpush2.msra.mxu0 0.0
          %2868 = vmatprep.subr.mxu0 0.0
          %2869 = vmatpush2.msra.mxu0 0.0
          %2870 = vmatprep.subr.mxu0 0.0
          %2871 = vmatpush2.msra.mxu0 0.0
          %2872 = vmatprep.subr.mxu0 0.0
          %2873 = vmatpush2.msra.mxu0 0.0
          %2874 = vmatprep.mubr.f32.mxu0 0.0
          %v2875 = vand.u32 %v2430, 4294901760
          %2876 = vmatmul.mubr.f32.gmra.mxu0 %v2875
          %v2877 = vpop.f32.mrf.mxu0
          %v2878 = vadd.f32 %v2806, %v2877
          %v2879 = vpop.f32.mrf.mxu0
          %2880 = vdwg.mxu0
          %v2881 = vmul.f32 %v979, %v986
          %v2882 = vsub.f32 %v976, %v2881
          %v2884 = vsel %vm1030, %v2882, 0
          %2886 = vmatprep.subr.mxu0 0.0
          %2887 = vmatpush1.msra.mxu0 0.0
          %2888 = vmatprep.subr.mxu0 0.0
          %2889 = vmatpush1.msra.mxu0 0.0
          %2890 = vmatprep.subr.mxu0 0.0
          %2891 = vmatpush1.msra.mxu0 0.0
          %2892 = vmatprep.subr.mxu0 0.0
          %2893 = vmatpush1.msra.mxu0 0.0
          %2894 = vmatprep.subr.mxu0 0.0
          %2895 = vmatpush1.msra.mxu0 0.0
          %2896 = vmatprep.subr.mxu0 0.0
          %2897 = vmatpush1.msra.mxu0 0.0
          %2898 = vmatprep.subr.mxu0 0.0
          %2899 = vmatpush1.msra.mxu0 0.0
          %2900 = vmatprep.subr.mxu0 0.0
          %2901 = vmatpush1.msra.mxu0 0.0
          %2902 = vmatprep.subr.mxu0 0.0
          %2903 = vmatpush1.msra.mxu0 0.0
          %2904 = vmatprep.subr.mxu0 0.0
          %2905 = vmatpush1.msra.mxu0 0.0
          %2906 = vmatprep.subr.mxu0 0.0
          %2907 = vmatpush1.msra.mxu0 0.0
          %2908 = vmatprep.subr.mxu0 0.0
          %2909 = vmatpush1.msra.mxu0 0.0
          %2910 = vmatprep.subr.mxu0 0.0
          %2911 = vmatpush1.msra.mxu0 0.0
          %2912 = vmatprep.subr.mxu0 0.0
          %2913 = vmatpush1.msra.mxu0 0.0
          %2914 = vmatprep.subr.mxu0 0.0
          %2915 = vmatpush1.msra.mxu0 0.0
          %2916 = vmatprep.subr.mxu0 0.0
          %v2917 = vand.u32 %v2884, 4294901760
          %2918 = vmatpush1.msra.mxu0 %v2917
          %2919 = vmatprep.subr.mxu0 0.0
          %2920 = vmatpush2.msra.mxu0 0.0
          %2921 = vmatprep.subr.mxu0 0.0
          %2922 = vmatpush2.msra.mxu0 0.0
          %2923 = vmatprep.subr.mxu0 0.0
          %2924 = vmatpush2.msra.mxu0 0.0
          %2925 = vmatprep.subr.mxu0 0.0
          %2926 = vmatpush2.msra.mxu0 0.0
          %2927 = vmatprep.subr.mxu0 0.0
          %2928 = vmatpush2.msra.mxu0 0.0
          %2929 = vmatprep.subr.mxu0 0.0
          %2930 = vmatpush2.msra.mxu0 0.0
          %2931 = vmatprep.subr.mxu0 0.0
          %2932 = vmatpush2.msra.mxu0 0.0
          %2933 = vmatprep.subr.mxu0 0.0
          %2934 = vmatpush2.msra.mxu0 0.0
          %2935 = vmatprep.subr.mxu0 0.0
          %2936 = vmatpush2.msra.mxu0 0.0
          %2937 = vmatprep.subr.mxu0 0.0
          %2938 = vmatpush2.msra.mxu0 0.0
          %2939 = vmatprep.subr.mxu0 0.0
          %2940 = vmatpush2.msra.mxu0 0.0
          %2941 = vmatprep.subr.mxu0 0.0
          %2942 = vmatpush2.msra.mxu0 0.0
          %2943 = vmatprep.subr.mxu0 0.0
          %2944 = vmatpush2.msra.mxu0 0.0
          %2945 = vmatprep.subr.mxu0 0.0
          %2946 = vmatpush2.msra.mxu0 0.0
          %2947 = vmatprep.subr.mxu0 0.0
          %2948 = vmatpush2.msra.mxu0 0.0
          %2949 = vmatprep.subr.mxu0 0.0
          %2950 = vmatpush2.msra.mxu0 0.0
          %2951 = vmatprep.mubr.f32.mxu0 0.0
          %v2952 = vand.u32 %v2430, 4294901760
          %v2953 = vsub.f32 %v2430, %v2952
          %v2954 = vand.u32 %v2953, 4294901760
          %v2955 = vsub.f32 %v2953, %v2954
          %v2956 = vand.u32 %v2955, 4294901760
          %2957 = vmatmul.mubr.f32.gmra.mxu0 %v2956
          %v2958 = vpop.f32.mrf.mxu0
          %v2959 = vadd.f32 0.0, %v2958
          %v2960 = vpop.f32.mrf.mxu0
          %2961 = vdwg.mxu0
          %2962 = vmatprep.subr.mxu0 0.0
          %2963 = vmatpush1.msra.mxu0 0.0
          %2964 = vmatprep.subr.mxu0 0.0
          %2965 = vmatpush1.msra.mxu0 0.0
          %2966 = vmatprep.subr.mxu0 0.0
          %2967 = vmatpush1.msra.mxu0 0.0
          %2968 = vmatprep.subr.mxu0 0.0
          %2969 = vmatpush1.msra.mxu0 0.0
          %2970 = vmatprep.subr.mxu0 0.0
          %2971 = vmatpush1.msra.mxu0 0.0
          %2972 = vmatprep.subr.mxu0 0.0
          %2973 = vmatpush1.msra.mxu0 0.0
          %2974 = vmatprep.subr.mxu0 0.0
          %2975 = vmatpush1.msra.mxu0 0.0
          %2976 = vmatprep.subr.mxu0 0.0
          %2977 = vmatpush1.msra.mxu0 0.0
          %2978 = vmatprep.subr.mxu0 0.0
          %2979 = vmatpush1.msra.mxu0 0.0
          %2980 = vmatprep.subr.mxu0 0.0
          %2981 = vmatpush1.msra.mxu0 0.0
          %2982 = vmatprep.subr.mxu0 0.0
          %2983 = vmatpush1.msra.mxu0 0.0
          %2984 = vmatprep.subr.mxu0 0.0
          %2985 = vmatpush1.msra.mxu0 0.0
          %2986 = vmatprep.subr.mxu0 0.0
          %2987 = vmatpush1.msra.mxu0 0.0
          %2988 = vmatprep.subr.mxu0 0.0
          %2989 = vmatpush1.msra.mxu0 0.0
          %2990 = vmatprep.subr.mxu0 0.0
          %2991 = vmatpush1.msra.mxu0 0.0
          %2992 = vmatprep.subr.mxu0 0.0
          %v2993 = vand.u32 %v2884, 4294901760
          %v2994 = vsub.f32 %v2884, %v2993
          %v2995 = vand.u32 %v2994, 4294901760
          %v2996 = vsub.f32 %v2994, %v2995
          %v2997 = vand.u32 %v2996, 4294901760
          %2998 = vmatpush1.msra.mxu0 %v2997
          %2999 = vmatprep.subr.mxu0 0.0
          %3000 = vmatpush2.msra.mxu0 0.0
          %3001 = vmatprep.subr.mxu0 0.0
          %3002 = vmatpush2.msra.mxu0 0.0
          %3003 = vmatprep.subr.mxu0 0.0
          %3004 = vmatpush2.msra.mxu0 0.0
          %3005 = vmatprep.subr.mxu0 0.0
          %3006 = vmatpush2.msra.mxu0 0.0
          %3007 = vmatprep.subr.mxu0 0.0
          %3008 = vmatpush2.msra.mxu0 0.0
          %3009 = vmatprep.subr.mxu0 0.0
          %3010 = vmatpush2.msra.mxu0 0.0
          %3011 = vmatprep.subr.mxu0 0.0
          %3012 = vmatpush2.msra.mxu0 0.0
          %3013 = vmatprep.subr.mxu0 0.0
          %3014 = vmatpush2.msra.mxu0 0.0
          %3015 = vmatprep.subr.mxu0 0.0
          %3016 = vmatpush2.msra.mxu0 0.0
          %3017 = vmatprep.subr.mxu0 0.0
          %3018 = vmatpush2.msra.mxu0 0.0
          %3019 = vmatprep.subr.mxu0 0.0
          %3020 = vmatpush2.msra.mxu0 0.0
          %3021 = vmatprep.subr.mxu0 0.0
          %3022 = vmatpush2.msra.mxu0 0.0
          %3023 = vmatprep.subr.mxu0 0.0
          %3024 = vmatpush2.msra.mxu0 0.0
          %3025 = vmatprep.subr.mxu0 0.0
          %3026 = vmatpush2.msra.mxu0 0.0
          %3027 = vmatprep.subr.mxu0 0.0
          %3028 = vmatpush2.msra.mxu0 0.0
          %3029 = vmatprep.subr.mxu0 0.0
          %3030 = vmatpush2.msra.mxu0 0.0
          %3031 = vmatprep.mubr.f32.mxu0 0.0
          %v3032 = vand.u32 %v2430, 4294901760
          %3033 = vmatmul.mubr.f32.gmra.mxu0 %v3032
          %v3034 = vpop.f32.mrf.mxu0
          %v3035 = vadd.f32 %v2959, %v3034
          %v3036 = vpop.f32.mrf.mxu0
          %3037 = vdwg.mxu0
          %3038 = vmatprep.subr.mxu0 0.0
          %3039 = vmatpush1.msra.mxu0 0.0
          %3040 = vmatprep.subr.mxu0 0.0
          %3041 = vmatpush1.msra.mxu0 0.0
          %3042 = vmatprep.subr.mxu0 0.0
          %3043 = vmatpush1.msra.mxu0 0.0
          %3044 = vmatprep.subr.mxu0 0.0
          %3045 = vmatpush1.msra.mxu0 0.0
          %3046 = vmatprep.subr.mxu0 0.0
          %3047 = vmatpush1.msra.mxu0 0.0
          %3048 = vmatprep.subr.mxu0 0.0
          %3049 = vmatpush1.msra.mxu0 0.0
          %3050 = vmatprep.subr.mxu0 0.0
          %3051 = vmatpush1.msra.mxu0 0.0
          %3052 = vmatprep.subr.mxu0 0.0
          %3053 = vmatpush1.msra.mxu0 0.0
          %3054 = vmatprep.subr.mxu0 0.0
          %3055 = vmatpush1.msra.mxu0 0.0
          %3056 = vmatprep.subr.mxu0 0.0
          %3057 = vmatpush1.msra.mxu0 0.0
          %3058 = vmatprep.subr.mxu0 0.0
          %3059 = vmatpush1.msra.mxu0 0.0
          %3060 = vmatprep.subr.mxu0 0.0
          %3061 = vmatpush1.msra.mxu0 0.0
          %3062 = vmatprep.subr.mxu0 0.0
          %3063 = vmatpush1.msra.mxu0 0.0
          %3064 = vmatprep.subr.mxu0 0.0
          %3065 = vmatpush1.msra.mxu0 0.0
          %3066 = vmatprep.subr.mxu0 0.0
          %3067 = vmatpush1.msra.mxu0 0.0
          %3068 = vmatprep.subr.mxu0 0.0
          %v3069 = vand.u32 %v2884, 4294901760
          %v3070 = vsub.f32 %v2884, %v3069
          %3071 = vmatpush1.msra.mxu0 %v3070
          %3072 = vmatprep.subr.mxu0 0.0
          %3073 = vmatpush2.msra.mxu0 0.0
          %3074 = vmatprep.subr.mxu0 0.0
          %3075 = vmatpush2.msra.mxu0 0.0
          %3076 = vmatprep.subr.mxu0 0.0
          %3077 = vmatpush2.msra.mxu0 0.0
          %3078 = vmatprep.subr.mxu0 0.0
          %3079 = vmatpush2.msra.mxu0 0.0
          %3080 = vmatprep.subr.mxu0 0.0
          %3081 = vmatpush2.msra.mxu0 0.0
          %3082 = vmatprep.subr.mxu0 0.0
          %3083 = vmatpush2.msra.mxu0 0.0
          %3084 = vmatprep.subr.mxu0 0.0
          %3085 = vmatpush2.msra.mxu0 0.0
          %3086 = vmatprep.subr.mxu0 0.0
          %3087 = vmatpush2.msra.mxu0 0.0
          %3088 = vmatprep.subr.mxu0 0.0
          %3089 = vmatpush2.msra.mxu0 0.0
          %3090 = vmatprep.subr.mxu0 0.0
          %3091 = vmatpush2.msra.mxu0 0.0
          %3092 = vmatprep.subr.mxu0 0.0
          %3093 = vmatpush2.msra.mxu0 0.0
          %3094 = vmatprep.subr.mxu0 0.0
          %3095 = vmatpush2.msra.mxu0 0.0
          %3096 = vmatprep.subr.mxu0 0.0
          %3097 = vmatpush2.msra.mxu0 0.0
          %3098 = vmatprep.subr.mxu0 0.0
          %3099 = vmatpush2.msra.mxu0 0.0
          %3100 = vmatprep.subr.mxu0 0.0
          %3101 = vmatpush2.msra.mxu0 0.0
          %3102 = vmatprep.subr.mxu0 0.0
          %3103 = vmatpush2.msra.mxu0 0.0
          %3104 = vmatprep.mubr.f32.mxu0 0.0
          %v3105 = vand.u32 %v2430, 4294901760
          %v3106 = vsub.f32 %v2430, %v3105
          %3107 = vmatmul.mubr.f32.gmra.mxu0 %v3106
          %v3108 = vpop.f32.mrf.mxu0
          %v3109 = vadd.f32 %v3035, %v3108
          %v3110 = vpop.f32.mrf.mxu0
          %3111 = vdwg.mxu0
          %3112 = vmatprep.subr.mxu0 0.0
          %3113 = vmatpush1.msra.mxu0 0.0
          %3114 = vmatprep.subr.mxu0 0.0
          %3115 = vmatpush1.msra.mxu0 0.0
          %3116 = vmatprep.subr.mxu0 0.0
          %3117 = vmatpush1.msra.mxu0 0.0
          %3118 = vmatprep.subr.mxu0 0.0
          %3119 = vmatpush1.msra.mxu0 0.0
          %3120 = vmatprep.subr.mxu0 0.0
          %3121 = vmatpush1.msra.mxu0 0.0
          %3122 = vmatprep.subr.mxu0 0.0
          %3123 = vmatpush1.msra.mxu0 0.0
          %3124 = vmatprep.subr.mxu0 0.0
          %3125 = vmatpush1.msra.mxu0 0.0
          %3126 = vmatprep.subr.mxu0 0.0
          %3127 = vmatpush1.msra.mxu0 0.0
          %3128 = vmatprep.subr.mxu0 0.0
          %3129 = vmatpush1.msra.mxu0 0.0
          %3130 = vmatprep.subr.mxu0 0.0
          %3131 = vmatpush1.msra.mxu0 0.0
          %3132 = vmatprep.subr.mxu0 0.0
          %3133 = vmatpush1.msra.mxu0 0.0
          %3134 = vmatprep.subr.mxu0 0.0
          %3135 = vmatpush1.msra.mxu0 0.0
          %3136 = vmatprep.subr.mxu0 0.0
          %3137 = vmatpush1.msra.mxu0 0.0
          %3138 = vmatprep.subr.mxu0 0.0
          %3139 = vmatpush1.msra.mxu0 0.0
          %3140 = vmatprep.subr.mxu0 0.0
          %3141 = vmatpush1.msra.mxu0 0.0
          %3142 = vmatprep.subr.mxu0 0.0
          %v3143 = vand.u32 %v2884, 4294901760
          %3144 = vmatpush1.msra.mxu0 %v3143
          %3145 = vmatprep.subr.mxu0 0.0
          %3146 = vmatpush2.msra.mxu0 0.0
          %3147 = vmatprep.subr.mxu0 0.0
          %3148 = vmatpush2.msra.mxu0 0.0
          %3149 = vmatprep.subr.mxu0 0.0
          %3150 = vmatpush2.msra.mxu0 0.0
          %3151 = vmatprep.subr.mxu0 0.0
          %3152 = vmatpush2.msra.mxu0 0.0
          %3153 = vmatprep.subr.mxu0 0.0
          %3154 = vmatpush2.msra.mxu0 0.0
          %3155 = vmatprep.subr.mxu0 0.0
          %3156 = vmatpush2.msra.mxu0 0.0
          %3157 = vmatprep.subr.mxu0 0.0
          %3158 = vmatpush2.msra.mxu0 0.0
          %3159 = vmatprep.subr.mxu0 0.0
          %3160 = vmatpush2.msra.mxu0 0.0
          %3161 = vmatprep.subr.mxu0 0.0
          %3162 = vmatpush2.msra.mxu0 0.0
          %3163 = vmatprep.subr.mxu0 0.0
          %3164 = vmatpush2.msra.mxu0 0.0
          %3165 = vmatprep.subr.mxu0 0.0
          %3166 = vmatpush2.msra.mxu0 0.0
          %3167 = vmatprep.subr.mxu0 0.0
          %3168 = vmatpush2.msra.mxu0 0.0
          %3169 = vmatprep.subr.mxu0 0.0
          %3170 = vmatpush2.msra.mxu0 0.0
          %3171 = vmatprep.subr.mxu0 0.0
          %3172 = vmatpush2.msra.mxu0 0.0
          %3173 = vmatprep.subr.mxu0 0.0
          %3174 = vmatpush2.msra.mxu0 0.0
          %3175 = vmatprep.subr.mxu0 0.0
          %3176 = vmatpush2.msra.mxu0 0.0
          %3177 = vmatprep.mubr.f32.mxu0 0.0
          %v3178 = vand.u32 %v2430, 4294901760
          %v3179 = vsub.f32 %v2430, %v3178
          %v3180 = vand.u32 %v3179, 4294901760
          %3181 = vmatmul.mubr.f32.gmra.mxu0 %v3180
          %v3182 = vpop.f32.mrf.mxu0
          %v3183 = vadd.f32 %v3109, %v3182
          %v3184 = vpop.f32.mrf.mxu0
          %3185 = vdwg.mxu0
          %3186 = vmatprep.subr.mxu0 0.0
          %3187 = vmatpush1.msra.mxu0 0.0
          %3188 = vmatprep.subr.mxu0 0.0
          %3189 = vmatpush1.msra.mxu0 0.0
          %3190 = vmatprep.subr.mxu0 0.0
          %3191 = vmatpush1.msra.mxu0 0.0
          %3192 = vmatprep.subr.mxu0 0.0
          %3193 = vmatpush1.msra.mxu0 0.0
          %3194 = vmatprep.subr.mxu0 0.0
          %3195 = vmatpush1.msra.mxu0 0.0
          %3196 = vmatprep.subr.mxu0 0.0
          %3197 = vmatpush1.msra.mxu0 0.0
          %3198 = vmatprep.subr.mxu0 0.0
          %3199 = vmatpush1.msra.mxu0 0.0
          %3200 = vmatprep.subr.mxu0 0.0
          %3201 = vmatpush1.msra.mxu0 0.0
          %3202 = vmatprep.subr.mxu0 0.0
          %3203 = vmatpush1.msra.mxu0 0.0
          %3204 = vmatprep.subr.mxu0 0.0
          %3205 = vmatpush1.msra.mxu0 0.0
          %3206 = vmatprep.subr.mxu0 0.0
          %3207 = vmatpush1.msra.mxu0 0.0
          %3208 = vmatprep.subr.mxu0 0.0
          %3209 = vmatpush1.msra.mxu0 0.0
          %3210 = vmatprep.subr.mxu0 0.0
          %3211 = vmatpush1.msra.mxu0 0.0
          %3212 = vmatprep.subr.mxu0 0.0
          %3213 = vmatpush1.msra.mxu0 0.0
          %3214 = vmatprep.subr.mxu0 0.0
          %3215 = vmatpush1.msra.mxu0 0.0
          %3216 = vmatprep.subr.mxu0 0.0
          %v3217 = vand.u32 %v2884, 4294901760
          %v3218 = vsub.f32 %v2884, %v3217
          %v3219 = vand.u32 %v3218, 4294901760
          %3220 = vmatpush1.msra.mxu0 %v3219
          %3221 = vmatprep.subr.mxu0 0.0
          %3222 = vmatpush2.msra.mxu0 0.0
          %3223 = vmatprep.subr.mxu0 0.0
          %3224 = vmatpush2.msra.mxu0 0.0
          %3225 = vmatprep.subr.mxu0 0.0
          %3226 = vmatpush2.msra.mxu0 0.0
          %3227 = vmatprep.subr.mxu0 0.0
          %3228 = vmatpush2.msra.mxu0 0.0
          %3229 = vmatprep.subr.mxu0 0.0
          %3230 = vmatpush2.msra.mxu0 0.0
          %3231 = vmatprep.subr.mxu0 0.0
          %3232 = vmatpush2.msra.mxu0 0.0
          %3233 = vmatprep.subr.mxu0 0.0
          %3234 = vmatpush2.msra.mxu0 0.0
          %3235 = vmatprep.subr.mxu0 0.0
          %3236 = vmatpush2.msra.mxu0 0.0
          %3237 = vmatprep.subr.mxu0 0.0
          %3238 = vmatpush2.msra.mxu0 0.0
          %3239 = vmatprep.subr.mxu0 0.0
          %3240 = vmatpush2.msra.mxu0 0.0
          %3241 = vmatprep.subr.mxu0 0.0
          %3242 = vmatpush2.msra.mxu0 0.0
          %3243 = vmatprep.subr.mxu0 0.0
          %3244 = vmatpush2.msra.mxu0 0.0
          %3245 = vmatprep.subr.mxu0 0.0
          %3246 = vmatpush2.msra.mxu0 0.0
          %3247 = vmatprep.subr.mxu0 0.0
          %3248 = vmatpush2.msra.mxu0 0.0
          %3249 = vmatprep.subr.mxu0 0.0
          %3250 = vmatpush2.msra.mxu0 0.0
          %3251 = vmatprep.subr.mxu0 0.0
          %3252 = vmatpush2.msra.mxu0 0.0
          %3253 = vmatprep.mubr.f32.mxu0 0.0
          %v3254 = vand.u32 %v2430, 4294901760
          %3255 = vmatmul.mubr.f32.gmra.mxu0 %v3254
          %v3256 = vpop.f32.mrf.mxu0
          %v3257 = vadd.f32 %v3183, %v3256
          %v3258 = vpop.f32.mrf.mxu0
          %3259 = vdwg.mxu0
          %3260 = vmatprep.subr.mxu0 0.0
          %3261 = vmatpush1.msra.mxu0 0.0
          %3262 = vmatprep.subr.mxu0 0.0
          %3263 = vmatpush1.msra.mxu0 0.0
          %3264 = vmatprep.subr.mxu0 0.0
          %3265 = vmatpush1.msra.mxu0 0.0
          %3266 = vmatprep.subr.mxu0 0.0
          %3267 = vmatpush1.msra.mxu0 0.0
          %3268 = vmatprep.subr.mxu0 0.0
          %3269 = vmatpush1.msra.mxu0 0.0
          %3270 = vmatprep.subr.mxu0 0.0
          %3271 = vmatpush1.msra.mxu0 0.0
          %3272 = vmatprep.subr.mxu0 0.0
          %3273 = vmatpush1.msra.mxu0 0.0
          %3274 = vmatprep.subr.mxu0 0.0
          %3275 = vmatpush1.msra.mxu0 0.0
          %3276 = vmatprep.subr.mxu0 0.0
          %3277 = vmatpush1.msra.mxu0 0.0
          %3278 = vmatprep.subr.mxu0 0.0
          %3279 = vmatpush1.msra.mxu0 0.0
          %3280 = vmatprep.subr.mxu0 0.0
          %3281 = vmatpush1.msra.mxu0 0.0
          %3282 = vmatprep.subr.mxu0 0.0
          %3283 = vmatpush1.msra.mxu0 0.0
          %3284 = vmatprep.subr.mxu0 0.0
          %3285 = vmatpush1.msra.mxu0 0.0
          %3286 = vmatprep.subr.mxu0 0.0
          %3287 = vmatpush1.msra.mxu0 0.0
          %3288 = vmatprep.subr.mxu0 0.0
          %3289 = vmatpush1.msra.mxu0 0.0
          %3290 = vmatprep.subr.mxu0 0.0
          %v3291 = vand.u32 %v2884, 4294901760
          %3292 = vmatpush1.msra.mxu0 %v3291
          %3293 = vmatprep.subr.mxu0 0.0
          %3294 = vmatpush2.msra.mxu0 0.0
          %3295 = vmatprep.subr.mxu0 0.0
          %3296 = vmatpush2.msra.mxu0 0.0
          %3297 = vmatprep.subr.mxu0 0.0
          %3298 = vmatpush2.msra.mxu0 0.0
          %3299 = vmatprep.subr.mxu0 0.0
          %3300 = vmatpush2.msra.mxu0 0.0
          %3301 = vmatprep.subr.mxu0 0.0
          %3302 = vmatpush2.msra.mxu0 0.0
          %3303 = vmatprep.subr.mxu0 0.0
          %3304 = vmatpush2.msra.mxu0 0.0
          %3305 = vmatprep.subr.mxu0 0.0
          %3306 = vmatpush2.msra.mxu0 0.0
          %3307 = vmatprep.subr.mxu0 0.0
          %3308 = vmatpush2.msra.mxu0 0.0
          %3309 = vmatprep.subr.mxu0 0.0
          %3310 = vmatpush2.msra.mxu0 0.0
          %3311 = vmatprep.subr.mxu0 0.0
          %3312 = vmatpush2.msra.mxu0 0.0
          %3313 = vmatprep.subr.mxu0 0.0
          %3314 = vmatpush2.msra.mxu0 0.0
          %3315 = vmatprep.subr.mxu0 0.0
          %3316 = vmatpush2.msra.mxu0 0.0
          %3317 = vmatprep.subr.mxu0 0.0
          %3318 = vmatpush2.msra.mxu0 0.0
          %3319 = vmatprep.subr.mxu0 0.0
          %3320 = vmatpush2.msra.mxu0 0.0
          %3321 = vmatprep.subr.mxu0 0.0
          %3322 = vmatpush2.msra.mxu0 0.0
          %3323 = vmatprep.subr.mxu0 0.0
          %3324 = vmatpush2.msra.mxu0 0.0
          %3325 = vmatprep.mubr.f32.mxu0 0.0
          %v3326 = vand.u32 %v2430, 4294901760
          %3327 = vmatmul.mubr.f32.gmra.mxu0 %v3326
          %v3328 = vpop.f32.mrf.mxu0
          %v3329 = vadd.f32 %v3257, %v3328
          %v3330 = vpop.f32.mrf.mxu0
          %3331 = vdwg.mxu0
          %vm3332 = vcmask 60416
          %3333 = vst.msk [vmem:[#allocation5] sm:$0xf] %vm3332, %v992
          %vm3334 = vcmask 7168
          %3335 = vst.msk [vmem:[#allocation6] sm:$0xff] %vm3334, %v2396
          %v3336 = vsub.f32 %v3329, %v2878
          %v3337 = vmul.f32 %v3336, %v2396
          %v3338 = vadd.f32 %v3337, %v978
          %3339 = vst.msk [vmem:[#allocation7] sm:$0xff] %vm3334, %v3338
        $region64: #{tpu_custom_call.1} parent=47 // pred_fallthru
          _
        // Predicated region
        $region65: #{tpu_custom_call.1} parent=47 // pred_check
          %p3340 = pneg %p952
        $region66: #{tpu_custom_call.1} parent=47 // pred_check_branch
          %3342 = sbr.rel (%p3340) target = $region68
        $region67: #{tpu_custom_call.1} parent=47 // pred_region
          %s3343 = smul.u32 %s27, 2
          %s3344 = smul.addr %s3343, 8
          %s3345 = scalar_lea.vmem [#allocation8], %s3344
          %v3346 = vld [vmem:[%s3345] sm:$0xff]
          %v3347 = vld [vmem:[%s3345 + $0x8] sm:$0xff]
          %v3348 = vld [vmem:[#allocation5] sm:$0xf]
          %v3349 = vld [vmem:[#allocation6] sm:$0xff]
          %v3350 = vld [vmem:[#allocation7] sm:$0xff]
          %3351 = vxpose.xlu0.b32.start [1/16] %v3348, 128
          %3352 = vxpose.xlu0.b32.cont [2/16] 0.0, 128
          %3353 = vxpose.xlu0.b32.cont [3/16] 0.0, 128
          %3354 = vxpose.xlu0.b32.cont [4/16] 0.0, 128
          %3355 = vxpose.xlu0.b32.cont [5/16] 0.0, 128
          %3356 = vxpose.xlu0.b32.cont [6/16] 0.0, 128
          %3357 = vxpose.xlu0.b32.cont [7/16] 0.0, 128
          %3358 = vxpose.xlu0.b32.cont [8/16] 0.0, 128
          %3359 = vxpose.xlu0.b32.cont [9/16] 0.0, 128
          %3360 = vxpose.xlu0.b32.cont [10/16] 0.0, 128
          %3361 = vxpose.xlu0.b32.cont [11/16] 0.0, 128
          %3362 = vxpose.xlu0.b32.cont [12/16] 0.0, 128
          %3363 = vxpose.xlu0.b32.cont [13/16] 0.0, 128
          %3364 = vxpose.xlu0.b32.cont [14/16] 0.0, 128
          %3365 = vxpose.xlu0.b32.cont [15/16] 0.0, 128
          %3366 = vxpose.xlu0.b32.end [16/16] 0.0, 128
          %v3367 = vpop.trf.xlu0
          %v3368 = vpop.trf.xlu0
          %v3369 = vpop.trf.xlu0
          %v3370 = vpop.trf.xlu0
          %v3371 = vpop.trf.xlu0
          %v3372 = vpop.trf.xlu0
          %v3373 = vpop.trf.xlu0
          %v3374 = vpop.trf.xlu0
          %v3375 = vpop.trf.xlu0
          %v3376 = vpop.trf.xlu0
          %v3377 = vpop.trf.xlu0
          %v3378 = vpop.trf.xlu0
          %v3379 = vpop.trf.xlu0
          %v3380 = vpop.trf.xlu0
          %v3381 = vpop.trf.xlu0
          %v3382 = vpop.trf.xlu0
          %vm3383 = vcmask 31744
          %v3385 = vsel %vm3383, %v3367, 0
          %vm3387 = vcmask 1043456
          %v3389 = vsel %vm3387, %v3346, 0
          %v3392 = vsel %vm3387, %v3347, 0
          %3394 = vmatprep.subr.mxu0 0.0
          %3395 = vmatpush1.msra.mxu0 0.0
          %3396 = vmatprep.subr.mxu0 0.0
          %3397 = vmatpush1.msra.mxu0 0.0
          %3398 = vmatprep.subr.mxu0 0.0
          %3399 = vmatpush1.msra.mxu0 0.0
          %3400 = vmatprep.subr.mxu0 0.0
          %3401 = vmatpush1.msra.mxu0 0.0
          %3402 = vmatprep.subr.mxu0 0.0
          %3403 = vmatpush1.msra.mxu0 0.0
          %3404 = vmatprep.subr.mxu0 0.0
          %3405 = vmatpush1.msra.mxu0 0.0
          %3406 = vmatprep.subr.mxu0 0.0
          %3407 = vmatpush1.msra.mxu0 0.0
          %3408 = vmatprep.subr.mxu0 0.0
          %3409 = vmatpush1.msra.mxu0 0.0
          %3410 = vmatprep.subr.mxu0 0.0
          %3411 = vmatpush1.msra.mxu0 0.0
          %3412 = vmatprep.subr.mxu0 0.0
          %3413 = vmatpush1.msra.mxu0 0.0
          %3414 = vmatprep.subr.mxu0 0.0
          %3415 = vmatpush1.msra.mxu0 0.0
          %3416 = vmatprep.subr.mxu0 0.0
          %3417 = vmatpush1.msra.mxu0 0.0
          %3418 = vmatprep.subr.mxu0 0.0
          %3419 = vmatpush1.msra.mxu0 0.0
          %3420 = vmatprep.subr.mxu0 0.0
          %3421 = vmatpush1.msra.mxu0 0.0
          %3422 = vmatprep.subr.mxu0 0.0
          %3423 = vmatpush1.msra.mxu0 0.0
          %v3424 = vand.u32 %v3392, 4294901760
          %3425 = vmatprep.subr.mxu0 %v3424
          %v3426 = vand.u32 %v3389, 4294901760
          %3427 = vmatpush1.msra.mxu0 %v3426
          %3428 = vmatprep.subr.mxu0 0.0
          %3429 = vmatpush2.msra.mxu0 0.0
          %3430 = vmatprep.subr.mxu0 0.0
          %3431 = vmatpush2.msra.mxu0 0.0
          %3432 = vmatprep.subr.mxu0 0.0
          %3433 = vmatpush2.msra.mxu0 0.0
          %3434 = vmatprep.subr.mxu0 0.0
          %3435 = vmatpush2.msra.mxu0 0.0
          %3436 = vmatprep.subr.mxu0 0.0
          %3437 = vmatpush2.msra.mxu0 0.0
          %3438 = vmatprep.subr.mxu0 0.0
          %3439 = vmatpush2.msra.mxu0 0.0
          %3440 = vmatprep.subr.mxu0 0.0
          %3441 = vmatpush2.msra.mxu0 0.0
          %3442 = vmatprep.subr.mxu0 0.0
          %3443 = vmatpush2.msra.mxu0 0.0
          %3444 = vmatprep.subr.mxu0 0.0
          %3445 = vmatpush2.msra.mxu0 0.0
          %3446 = vmatprep.subr.mxu0 0.0
          %3447 = vmatpush2.msra.mxu0 0.0
          %3448 = vmatprep.subr.mxu0 0.0
          %3449 = vmatpush2.msra.mxu0 0.0
          %3450 = vmatprep.subr.mxu0 0.0
          %3451 = vmatpush2.msra.mxu0 0.0
          %3452 = vmatprep.subr.mxu0 0.0
          %3453 = vmatpush2.msra.mxu0 0.0
          %3454 = vmatprep.subr.mxu0 0.0
          %3455 = vmatpush2.msra.mxu0 0.0
          %3456 = vmatprep.subr.mxu0 0.0
          %3457 = vmatpush2.msra.mxu0 0.0
          %3458 = vmatprep.subr.mxu0 0.0
          %3459 = vmatpush2.msra.mxu0 0.0
          %3460 = vmatprep.mubr.f32.mxu0 0.0
          %v3461 = vand.u32 %v3385, 4294901760
          %v3462 = vsub.f32 %v3385, %v3461
          %v3463 = vand.u32 %v3462, 4294901760
          %v3464 = vsub.f32 %v3462, %v3463
          %v3465 = vand.u32 %v3464, 4294901760
          %3466 = vmatmul.mubr.f32.gmra.mxu0 %v3465
          %v3467 = vpop.f32.mrf.mxu0
          %v3468 = vadd.f32 0.0, %v3467
          %v3469 = vpop.f32.mrf.mxu0
          %v3470 = vadd.f32 0.0, %v3469
          %3471 = vdwg.mxu0
          %3472 = vmatprep.subr.mxu0 0.0
          %3473 = vmatpush1.msra.mxu0 0.0
          %3474 = vmatprep.subr.mxu0 0.0
          %3475 = vmatpush1.msra.mxu0 0.0
          %3476 = vmatprep.subr.mxu0 0.0
          %3477 = vmatpush1.msra.mxu0 0.0
          %3478 = vmatprep.subr.mxu0 0.0
          %3479 = vmatpush1.msra.mxu0 0.0
          %3480 = vmatprep.subr.mxu0 0.0
          %3481 = vmatpush1.msra.mxu0 0.0
          %3482 = vmatprep.subr.mxu0 0.0
          %3483 = vmatpush1.msra.mxu0 0.0
          %3484 = vmatprep.subr.mxu0 0.0
          %3485 = vmatpush1.msra.mxu0 0.0
          %3486 = vmatprep.subr.mxu0 0.0
          %3487 = vmatpush1.msra.mxu0 0.0
          %3488 = vmatprep.subr.mxu0 0.0
          %3489 = vmatpush1.msra.mxu0 0.0
          %3490 = vmatprep.subr.mxu0 0.0
          %3491 = vmatpush1.msra.mxu0 0.0
          %3492 = vmatprep.subr.mxu0 0.0
          %3493 = vmatpush1.msra.mxu0 0.0
          %3494 = vmatprep.subr.mxu0 0.0
          %3495 = vmatpush1.msra.mxu0 0.0
          %3496 = vmatprep.subr.mxu0 0.0
          %3497 = vmatpush1.msra.mxu0 0.0
          %3498 = vmatprep.subr.mxu0 0.0
          %3499 = vmatpush1.msra.mxu0 0.0
          %3500 = vmatprep.subr.mxu0 0.0
          %3501 = vmatpush1.msra.mxu0 0.0
          %v3502 = vand.u32 %v3392, 4294901760
          %v3503 = vsub.f32 %v3392, %v3502
          %v3504 = vand.u32 %v3503, 4294901760
          %v3505 = vsub.f32 %v3503, %v3504
          %v3506 = vand.u32 %v3505, 4294901760
          %3507 = vmatprep.subr.mxu0 %v3506
          %v3508 = vand.u32 %v3389, 4294901760
          %v3509 = vsub.f32 %v3389, %v3508
          %v3510 = vand.u32 %v3509, 4294901760
          %v3511 = vsub.f32 %v3509, %v3510
          %v3512 = vand.u32 %v3511, 4294901760
          %3513 = vmatpush1.msra.mxu0 %v3512
          %3514 = vmatprep.subr.mxu0 0.0
          %3515 = vmatpush2.msra.mxu0 0.0
          %3516 = vmatprep.subr.mxu0 0.0
          %3517 = vmatpush2.msra.mxu0 0.0
          %3518 = vmatprep.subr.mxu0 0.0
          %3519 = vmatpush2.msra.mxu0 0.0
          %3520 = vmatprep.subr.mxu0 0.0
          %3521 = vmatpush2.msra.mxu0 0.0
          %3522 = vmatprep.subr.mxu0 0.0
          %3523 = vmatpush2.msra.mxu0 0.0
          %3524 = vmatprep.subr.mxu0 0.0
          %3525 = vmatpush2.msra.mxu0 0.0
          %3526 = vmatprep.subr.mxu0 0.0
          %3527 = vmatpush2.msra.mxu0 0.0
          %3528 = vmatprep.subr.mxu0 0.0
          %3529 = vmatpush2.msra.mxu0 0.0
          %3530 = vmatprep.subr.mxu0 0.0
          %3531 = vmatpush2.msra.mxu0 0.0
          %3532 = vmatprep.subr.mxu0 0.0
          %3533 = vmatpush2.msra.mxu0 0.0
          %3534 = vmatprep.subr.mxu0 0.0
          %3535 = vmatpush2.msra.mxu0 0.0
          %3536 = vmatprep.subr.mxu0 0.0
          %3537 = vmatpush2.msra.mxu0 0.0
          %3538 = vmatprep.subr.mxu0 0.0
          %3539 = vmatpush2.msra.mxu0 0.0
          %3540 = vmatprep.subr.mxu0 0.0
          %3541 = vmatpush2.msra.mxu0 0.0
          %3542 = vmatprep.subr.mxu0 0.0
          %3543 = vmatpush2.msra.mxu0 0.0
          %3544 = vmatprep.subr.mxu0 0.0
          %3545 = vmatpush2.msra.mxu0 0.0
          %3546 = vmatprep.mubr.f32.mxu0 0.0
          %v3547 = vand.u32 %v3385, 4294901760
          %3548 = vmatmul.mubr.f32.gmra.mxu0 %v3547
          %v3549 = vpop.f32.mrf.mxu0
          %v3550 = vadd.f32 %v3468, %v3549
          %v3551 = vpop.f32.mrf.mxu0
          %v3552 = vadd.f32 %v3470, %v3551
          %3553 = vdwg.mxu0
          %3554 = vmatprep.subr.mxu0 0.0
          %3555 = vmatpush1.msra.mxu0 0.0
          %3556 = vmatprep.subr.mxu0 0.0
          %3557 = vmatpush1.msra.mxu0 0.0
          %3558 = vmatprep.subr.mxu0 0.0
          %3559 = vmatpush1.msra.mxu0 0.0
          %3560 = vmatprep.subr.mxu0 0.0
          %3561 = vmatpush1.msra.mxu0 0.0
          %3562 = vmatprep.subr.mxu0 0.0
          %3563 = vmatpush1.msra.mxu0 0.0
          %3564 = vmatprep.subr.mxu0 0.0
          %3565 = vmatpush1.msra.mxu0 0.0
          %3566 = vmatprep.subr.mxu0 0.0
          %3567 = vmatpush1.msra.mxu0 0.0
          %3568 = vmatprep.subr.mxu0 0.0
          %3569 = vmatpush1.msra.mxu0 0.0
          %3570 = vmatprep.subr.mxu0 0.0
          %3571 = vmatpush1.msra.mxu0 0.0
          %3572 = vmatprep.subr.mxu0 0.0
          %3573 = vmatpush1.msra.mxu0 0.0
          %3574 = vmatprep.subr.mxu0 0.0
          %3575 = vmatpush1.msra.mxu0 0.0
          %3576 = vmatprep.subr.mxu0 0.0
          %3577 = vmatpush1.msra.mxu0 0.0
          %3578 = vmatprep.subr.mxu0 0.0
          %3579 = vmatpush1.msra.mxu0 0.0
          %3580 = vmatprep.subr.mxu0 0.0
          %3581 = vmatpush1.msra.mxu0 0.0
          %3582 = vmatprep.subr.mxu0 0.0
          %3583 = vmatpush1.msra.mxu0 0.0
          %v3584 = vand.u32 %v3392, 4294901760
          %v3585 = vsub.f32 %v3392, %v3584
          %3586 = vmatprep.subr.mxu0 %v3585
          %v3587 = vand.u32 %v3389, 4294901760
          %v3588 = vsub.f32 %v3389, %v3587
          %3589 = vmatpush1.msra.mxu0 %v3588
          %3590 = vmatprep.subr.mxu0 0.0
          %3591 = vmatpush2.msra.mxu0 0.0
          %3592 = vmatprep.subr.mxu0 0.0
          %3593 = vmatpush2.msra.mxu0 0.0
          %3594 = vmatprep.subr.mxu0 0.0
          %3595 = vmatpush2.msra.mxu0 0.0
          %3596 = vmatprep.subr.mxu0 0.0
          %3597 = vmatpush2.msra.mxu0 0.0
          %3598 = vmatprep.subr.mxu0 0.0
          %3599 = vmatpush2.msra.mxu0 0.0
          %3600 = vmatprep.subr.mxu0 0.0
          %3601 = vmatpush2.msra.mxu0 0.0
          %3602 = vmatprep.subr.mxu0 0.0
          %3603 = vmatpush2.msra.mxu0 0.0
          %3604 = vmatprep.subr.mxu0 0.0
          %3605 = vmatpush2.msra.mxu0 0.0
          %3606 = vmatprep.subr.mxu0 0.0
          %3607 = vmatpush2.msra.mxu0 0.0
          %3608 = vmatprep.subr.mxu0 0.0
          %3609 = vmatpush2.msra.mxu0 0.0
          %3610 = vmatprep.subr.mxu0 0.0
          %3611 = vmatpush2.msra.mxu0 0.0
          %3612 = vmatprep.subr.mxu0 0.0
          %3613 = vmatpush2.msra.mxu0 0.0
          %3614 = vmatprep.subr.mxu0 0.0
          %3615 = vmatpush2.msra.mxu0 0.0
          %3616 = vmatprep.subr.mxu0 0.0
          %3617 = vmatpush2.msra.mxu0 0.0
          %3618 = vmatprep.subr.mxu0 0.0
          %3619 = vmatpush2.msra.mxu0 0.0
          %3620 = vmatprep.subr.mxu0 0.0
          %3621 = vmatpush2.msra.mxu0 0.0
          %3622 = vmatprep.mubr.f32.mxu0 0.0
          %v3623 = vand.u32 %v3385, 4294901760
          %v3624 = vsub.f32 %v3385, %v3623
          %3625 = vmatmul.mubr.f32.gmra.mxu0 %v3624
          %v3626 = vpop.f32.mrf.mxu0
          %v3627 = vadd.f32 %v3550, %v3626
          %v3628 = vpop.f32.mrf.mxu0
          %v3629 = vadd.f32 %v3552, %v3628
          %3630 = vdwg.mxu0
          %3631 = vmatprep.subr.mxu0 0.0
          %3632 = vmatpush1.msra.mxu0 0.0
          %3633 = vmatprep.subr.mxu0 0.0
          %3634 = vmatpush1.msra.mxu0 0.0
          %3635 = vmatprep.subr.mxu0 0.0
          %3636 = vmatpush1.msra.mxu0 0.0
          %3637 = vmatprep.subr.mxu0 0.0
          %3638 = vmatpush1.msra.mxu0 0.0
          %3639 = vmatprep.subr.mxu0 0.0
          %3640 = vmatpush1.msra.mxu0 0.0
          %3641 = vmatprep.subr.mxu0 0.0
          %3642 = vmatpush1.msra.mxu0 0.0
          %3643 = vmatprep.subr.mxu0 0.0
          %3644 = vmatpush1.msra.mxu0 0.0
          %3645 = vmatprep.subr.mxu0 0.0
          %3646 = vmatpush1.msra.mxu0 0.0
          %3647 = vmatprep.subr.mxu0 0.0
          %3648 = vmatpush1.msra.mxu0 0.0
          %3649 = vmatprep.subr.mxu0 0.0
          %3650 = vmatpush1.msra.mxu0 0.0
          %3651 = vmatprep.subr.mxu0 0.0
          %3652 = vmatpush1.msra.mxu0 0.0
          %3653 = vmatprep.subr.mxu0 0.0
          %3654 = vmatpush1.msra.mxu0 0.0
          %3655 = vmatprep.subr.mxu0 0.0
          %3656 = vmatpush1.msra.mxu0 0.0
          %3657 = vmatprep.subr.mxu0 0.0
          %3658 = vmatpush1.msra.mxu0 0.0
          %3659 = vmatprep.subr.mxu0 0.0
          %3660 = vmatpush1.msra.mxu0 0.0
          %v3661 = vand.u32 %v3392, 4294901760
          %3662 = vmatprep.subr.mxu0 %v3661
          %v3663 = vand.u32 %v3389, 4294901760
          %3664 = vmatpush1.msra.mxu0 %v3663
          %3665 = vmatprep.subr.mxu0 0.0
          %3666 = vmatpush2.msra.mxu0 0.0
          %3667 = vmatprep.subr.mxu0 0.0
          %3668 = vmatpush2.msra.mxu0 0.0
          %3669 = vmatprep.subr.mxu0 0.0
          %3670 = vmatpush2.msra.mxu0 0.0
          %3671 = vmatprep.subr.mxu0 0.0
          %3672 = vmatpush2.msra.mxu0 0.0
          %3673 = vmatprep.subr.mxu0 0.0
          %3674 = vmatpush2.msra.mxu0 0.0
          %3675 = vmatprep.subr.mxu0 0.0
          %3676 = vmatpush2.msra.mxu0 0.0
          %3677 = vmatprep.subr.mxu0 0.0
          %3678 = vmatpush2.msra.mxu0 0.0
          %3679 = vmatprep.subr.mxu0 0.0
          %3680 = vmatpush2.msra.mxu0 0.0
          %3681 = vmatprep.subr.mxu0 0.0
          %3682 = vmatpush2.msra.mxu0 0.0
          %3683 = vmatprep.subr.mxu0 0.0
          %3684 = vmatpush2.msra.mxu0 0.0
          %3685 = vmatprep.subr.mxu0 0.0
          %3686 = vmatpush2.msra.mxu0 0.0
          %3687 = vmatprep.subr.mxu0 0.0
          %3688 = vmatpush2.msra.mxu0 0.0
          %3689 = vmatprep.subr.mxu0 0.0
          %3690 = vmatpush2.msra.mxu0 0.0
          %3691 = vmatprep.subr.mxu0 0.0
          %3692 = vmatpush2.msra.mxu0 0.0
          %3693 = vmatprep.subr.mxu0 0.0
          %3694 = vmatpush2.msra.mxu0 0.0
          %3695 = vmatprep.subr.mxu0 0.0
          %3696 = vmatpush2.msra.mxu0 0.0
          %3697 = vmatprep.mubr.f32.mxu0 0.0
          %v3698 = vand.u32 %v3385, 4294901760
          %v3699 = vsub.f32 %v3385, %v3698
          %v3700 = vand.u32 %v3699, 4294901760
          %3701 = vmatmul.mubr.f32.gmra.mxu0 %v3700
          %v3702 = vpop.f32.mrf.mxu0
          %v3703 = vadd.f32 %v3627, %v3702
          %v3704 = vpop.f32.mrf.mxu0
          %v3705 = vadd.f32 %v3629, %v3704
          %3706 = vdwg.mxu0
          %3707 = vmatprep.subr.mxu0 0.0
          %3708 = vmatpush1.msra.mxu0 0.0
          %3709 = vmatprep.subr.mxu0 0.0
          %3710 = vmatpush1.msra.mxu0 0.0
          %3711 = vmatprep.subr.mxu0 0.0
          %3712 = vmatpush1.msra.mxu0 0.0
          %3713 = vmatprep.subr.mxu0 0.0
          %3714 = vmatpush1.msra.mxu0 0.0
          %3715 = vmatprep.subr.mxu0 0.0
          %3716 = vmatpush1.msra.mxu0 0.0
          %3717 = vmatprep.subr.mxu0 0.0
          %3718 = vmatpush1.msra.mxu0 0.0
          %3719 = vmatprep.subr.mxu0 0.0
          %3720 = vmatpush1.msra.mxu0 0.0
          %3721 = vmatprep.subr.mxu0 0.0
          %3722 = vmatpush1.msra.mxu0 0.0
          %3723 = vmatprep.subr.mxu0 0.0
          %3724 = vmatpush1.msra.mxu0 0.0
          %3725 = vmatprep.subr.mxu0 0.0
          %3726 = vmatpush1.msra.mxu0 0.0
          %3727 = vmatprep.subr.mxu0 0.0
          %3728 = vmatpush1.msra.mxu0 0.0
          %3729 = vmatprep.subr.mxu0 0.0
          %3730 = vmatpush1.msra.mxu0 0.0
          %3731 = vmatprep.subr.mxu0 0.0
          %3732 = vmatpush1.msra.mxu0 0.0
          %3733 = vmatprep.subr.mxu0 0.0
          %3734 = vmatpush1.msra.mxu0 0.0
          %3735 = vmatprep.subr.mxu0 0.0
          %3736 = vmatpush1.msra.mxu0 0.0
          %v3737 = vand.u32 %v3392, 4294901760
          %v3738 = vsub.f32 %v3392, %v3737
          %v3739 = vand.u32 %v3738, 4294901760
          %3740 = vmatprep.subr.mxu0 %v3739
          %v3741 = vand.u32 %v3389, 4294901760
          %v3742 = vsub.f32 %v3389, %v3741
          %v3743 = vand.u32 %v3742, 4294901760
          %3744 = vmatpush1.msra.mxu0 %v3743
          %3745 = vmatprep.subr.mxu0 0.0
          %3746 = vmatpush2.msra.mxu0 0.0
          %3747 = vmatprep.subr.mxu0 0.0
          %3748 = vmatpush2.msra.mxu0 0.0
          %3749 = vmatprep.subr.mxu0 0.0
          %3750 = vmatpush2.msra.mxu0 0.0
          %3751 = vmatprep.subr.mxu0 0.0
          %3752 = vmatpush2.msra.mxu0 0.0
          %3753 = vmatprep.subr.mxu0 0.0
          %3754 = vmatpush2.msra.mxu0 0.0
          %3755 = vmatprep.subr.mxu0 0.0
          %3756 = vmatpush2.msra.mxu0 0.0
          %3757 = vmatprep.subr.mxu0 0.0
          %3758 = vmatpush2.msra.mxu0 0.0
          %3759 = vmatprep.subr.mxu0 0.0
          %3760 = vmatpush2.msra.mxu0 0.0
          %3761 = vmatprep.subr.mxu0 0.0
          %3762 = vmatpush2.msra.mxu0 0.0
          %3763 = vmatprep.subr.mxu0 0.0
          %3764 = vmatpush2.msra.mxu0 0.0
          %3765 = vmatprep.subr.mxu0 0.0
          %3766 = vmatpush2.msra.mxu0 0.0
          %3767 = vmatprep.subr.mxu0 0.0
          %3768 = vmatpush2.msra.mxu0 0.0
          %3769 = vmatprep.subr.mxu0 0.0
          %3770 = vmatpush2.msra.mxu0 0.0
          %3771 = vmatprep.subr.mxu0 0.0
          %3772 = vmatpush2.msra.mxu0 0.0
          %3773 = vmatprep.subr.mxu0 0.0
          %3774 = vmatpush2.msra.mxu0 0.0
          %3775 = vmatprep.subr.mxu0 0.0
          %3776 = vmatpush2.msra.mxu0 0.0
          %3777 = vmatprep.mubr.f32.mxu0 0.0
          %v3778 = vand.u32 %v3385, 4294901760
          %3779 = vmatmul.mubr.f32.gmra.mxu0 %v3778
          %v3780 = vpop.f32.mrf.mxu0
          %v3781 = vadd.f32 %v3703, %v3780
          %v3782 = vpop.f32.mrf.mxu0
          %v3783 = vadd.f32 %v3705, %v3782
          %3784 = vdwg.mxu0
          %3785 = vmatprep.subr.mxu0 0.0
          %3786 = vmatpush1.msra.mxu0 0.0
          %3787 = vmatprep.subr.mxu0 0.0
          %3788 = vmatpush1.msra.mxu0 0.0
          %3789 = vmatprep.subr.mxu0 0.0
          %3790 = vmatpush1.msra.mxu0 0.0
          %3791 = vmatprep.subr.mxu0 0.0
          %3792 = vmatpush1.msra.mxu0 0.0
          %3793 = vmatprep.subr.mxu0 0.0
          %3794 = vmatpush1.msra.mxu0 0.0
          %3795 = vmatprep.subr.mxu0 0.0
          %3796 = vmatpush1.msra.mxu0 0.0
          %3797 = vmatprep.subr.mxu0 0.0
          %3798 = vmatpush1.msra.mxu0 0.0
          %3799 = vmatprep.subr.mxu0 0.0
          %3800 = vmatpush1.msra.mxu0 0.0
          %3801 = vmatprep.subr.mxu0 0.0
          %3802 = vmatpush1.msra.mxu0 0.0
          %3803 = vmatprep.subr.mxu0 0.0
          %3804 = vmatpush1.msra.mxu0 0.0
          %3805 = vmatprep.subr.mxu0 0.0
          %3806 = vmatpush1.msra.mxu0 0.0
          %3807 = vmatprep.subr.mxu0 0.0
          %3808 = vmatpush1.msra.mxu0 0.0
          %3809 = vmatprep.subr.mxu0 0.0
          %3810 = vmatpush1.msra.mxu0 0.0
          %3811 = vmatprep.subr.mxu0 0.0
          %3812 = vmatpush1.msra.mxu0 0.0
          %3813 = vmatprep.subr.mxu0 0.0
          %3814 = vmatpush1.msra.mxu0 0.0
          %v3815 = vand.u32 %v3392, 4294901760
          %3816 = vmatprep.subr.mxu0 %v3815
          %v3817 = vand.u32 %v3389, 4294901760
          %3818 = vmatpush1.msra.mxu0 %v3817
          %3819 = vmatprep.subr.mxu0 0.0
          %3820 = vmatpush2.msra.mxu0 0.0
          %3821 = vmatprep.subr.mxu0 0.0
          %3822 = vmatpush2.msra.mxu0 0.0
          %3823 = vmatprep.subr.mxu0 0.0
          %3824 = vmatpush2.msra.mxu0 0.0
          %3825 = vmatprep.subr.mxu0 0.0
          %3826 = vmatpush2.msra.mxu0 0.0
          %3827 = vmatprep.subr.mxu0 0.0
          %3828 = vmatpush2.msra.mxu0 0.0
          %3829 = vmatprep.subr.mxu0 0.0
          %3830 = vmatpush2.msra.mxu0 0.0
          %3831 = vmatprep.subr.mxu0 0.0
          %3832 = vmatpush2.msra.mxu0 0.0
          %3833 = vmatprep.subr.mxu0 0.0
          %3834 = vmatpush2.msra.mxu0 0.0
          %3835 = vmatprep.subr.mxu0 0.0
          %3836 = vmatpush2.msra.mxu0 0.0
          %3837 = vmatprep.subr.mxu0 0.0
          %3838 = vmatpush2.msra.mxu0 0.0
          %3839 = vmatprep.subr.mxu0 0.0
          %3840 = vmatpush2.msra.mxu0 0.0
          %3841 = vmatprep.subr.mxu0 0.0
          %3842 = vmatpush2.msra.mxu0 0.0
          %3843 = vmatprep.subr.mxu0 0.0
          %3844 = vmatpush2.msra.mxu0 0.0
          %3845 = vmatprep.subr.mxu0 0.0
          %3846 = vmatpush2.msra.mxu0 0.0
          %3847 = vmatprep.subr.mxu0 0.0
          %3848 = vmatpush2.msra.mxu0 0.0
          %3849 = vmatprep.subr.mxu0 0.0
          %3850 = vmatpush2.msra.mxu0 0.0
          %3851 = vmatprep.mubr.f32.mxu0 0.0
          %v3852 = vand.u32 %v3385, 4294901760
          %3853 = vmatmul.mubr.f32.gmra.mxu0 %v3852
          %v3854 = vpop.f32.mrf.mxu0
          %v3855 = vadd.f32 %v3781, %v3854
          %v3856 = vpop.f32.mrf.mxu0
          %v3857 = vadd.f32 %v3783, %v3856
          %3858 = vdwg.mxu0
          %3860 = vset.pattern.permute.xlu0 0
          %3861 = vperm.xlu0 %3860, %v3349
          %v3862 = vpop.permute.xlu0 %3861
          %v3864 = vmul.f32 %v3862, %v3855
          %v3865 = vmul.f32 %v3862, %v3857
          %3867 = vset.pattern.permute.xlu0 0
          %3868 = vperm.xlu0 %3867, %v3350
          %v3869 = vpop.permute.xlu0 %3868
          %v3871 = vadd.f32 %v3864, %v3869
          %v3872 = vadd.f32 %v3865, %v3869
          %3873 = vst [vmem:[%s310] sm:$0xff] %v3871
          %3874 = vst [vmem:[%s310 + $0x8] sm:$0xff] %v3872
          %v3875 = vrot.slane %v3346, 4
          %v3876 = vrot.slane %v3347, 4
          %v3877 = vsel %vm3387, %v3875, 0
          %v3879 = vsel %vm3387, %v3876, 0
          %3881 = vmatprep.subr.mxu0 0.0
          %3882 = vmatpush1.msra.mxu0 0.0
          %3883 = vmatprep.subr.mxu0 0.0
          %3884 = vmatpush1.msra.mxu0 0.0
          %3885 = vmatprep.subr.mxu0 0.0
          %3886 = vmatpush1.msra.mxu0 0.0
          %3887 = vmatprep.subr.mxu0 0.0
          %3888 = vmatpush1.msra.mxu0 0.0
          %3889 = vmatprep.subr.mxu0 0.0
          %3890 = vmatpush1.msra.mxu0 0.0
          %3891 = vmatprep.subr.mxu0 0.0
          %3892 = vmatpush1.msra.mxu0 0.0
          %3893 = vmatprep.subr.mxu0 0.0
          %3894 = vmatpush1.msra.mxu0 0.0
          %3895 = vmatprep.subr.mxu0 0.0
          %3896 = vmatpush1.msra.mxu0 0.0
          %3897 = vmatprep.subr.mxu0 0.0
          %3898 = vmatpush1.msra.mxu0 0.0
          %3899 = vmatprep.subr.mxu0 0.0
          %3900 = vmatpush1.msra.mxu0 0.0
          %3901 = vmatprep.subr.mxu0 0.0
          %3902 = vmatpush1.msra.mxu0 0.0
          %3903 = vmatprep.subr.mxu0 0.0
          %3904 = vmatpush1.msra.mxu0 0.0
          %3905 = vmatprep.subr.mxu0 0.0
          %3906 = vmatpush1.msra.mxu0 0.0
          %3907 = vmatprep.subr.mxu0 0.0
          %3908 = vmatpush1.msra.mxu0 0.0
          %3909 = vmatprep.subr.mxu0 0.0
          %3910 = vmatpush1.msra.mxu0 0.0
          %v3911 = vand.u32 %v3879, 4294901760
          %3912 = vmatprep.subr.mxu0 %v3911
          %v3913 = vand.u32 %v3877, 4294901760
          %3914 = vmatpush1.msra.mxu0 %v3913
          %3915 = vmatprep.subr.mxu0 0.0
          %3916 = vmatpush2.msra.mxu0 0.0
          %3917 = vmatprep.subr.mxu0 0.0
          %3918 = vmatpush2.msra.mxu0 0.0
          %3919 = vmatprep.subr.mxu0 0.0
          %3920 = vmatpush2.msra.mxu0 0.0
          %3921 = vmatprep.subr.mxu0 0.0
          %3922 = vmatpush2.msra.mxu0 0.0
          %3923 = vmatprep.subr.mxu0 0.0
          %3924 = vmatpush2.msra.mxu0 0.0
          %3925 = vmatprep.subr.mxu0 0.0
          %3926 = vmatpush2.msra.mxu0 0.0
          %3927 = vmatprep.subr.mxu0 0.0
          %3928 = vmatpush2.msra.mxu0 0.0
          %3929 = vmatprep.subr.mxu0 0.0
          %3930 = vmatpush2.msra.mxu0 0.0
          %3931 = vmatprep.subr.mxu0 0.0
          %3932 = vmatpush2.msra.mxu0 0.0
          %3933 = vmatprep.subr.mxu0 0.0
          %3934 = vmatpush2.msra.mxu0 0.0
          %3935 = vmatprep.subr.mxu0 0.0
          %3936 = vmatpush2.msra.mxu0 0.0
          %3937 = vmatprep.subr.mxu0 0.0
          %3938 = vmatpush2.msra.mxu0 0.0
          %3939 = vmatprep.subr.mxu0 0.0
          %3940 = vmatpush2.msra.mxu0 0.0
          %3941 = vmatprep.subr.mxu0 0.0
          %3942 = vmatpush2.msra.mxu0 0.0
          %3943 = vmatprep.subr.mxu0 0.0
          %3944 = vmatpush2.msra.mxu0 0.0
          %3945 = vmatprep.subr.mxu0 0.0
          %3946 = vmatpush2.msra.mxu0 0.0
          %3947 = vmatprep.mubr.f32.mxu0 0.0
          %v3948 = vand.u32 %v3385, 4294901760
          %v3949 = vsub.f32 %v3385, %v3948
          %v3950 = vand.u32 %v3949, 4294901760
          %v3951 = vsub.f32 %v3949, %v3950
          %v3952 = vand.u32 %v3951, 4294901760
          %3953 = vmatmul.mubr.f32.gmra.mxu0 %v3952
          %v3954 = vpop.f32.mrf.mxu0
          %v3955 = vadd.f32 0.0, %v3954
          %v3956 = vpop.f32.mrf.mxu0
          %v3957 = vadd.f32 0.0, %v3956
          %3958 = vdwg.mxu0
          %3959 = vmatprep.subr.mxu0 0.0
          %3960 = vmatpush1.msra.mxu0 0.0
          %3961 = vmatprep.subr.mxu0 0.0
          %3962 = vmatpush1.msra.mxu0 0.0
          %3963 = vmatprep.subr.mxu0 0.0
          %3964 = vmatpush1.msra.mxu0 0.0
          %3965 = vmatprep.subr.mxu0 0.0
          %3966 = vmatpush1.msra.mxu0 0.0
          %3967 = vmatprep.subr.mxu0 0.0
          %3968 = vmatpush1.msra.mxu0 0.0
          %3969 = vmatprep.subr.mxu0 0.0
          %3970 = vmatpush1.msra.mxu0 0.0
          %3971 = vmatprep.subr.mxu0 0.0
          %3972 = vmatpush1.msra.mxu0 0.0
          %3973 = vmatprep.subr.mxu0 0.0
          %3974 = vmatpush1.msra.mxu0 0.0
          %3975 = vmatprep.subr.mxu0 0.0
          %3976 = vmatpush1.msra.mxu0 0.0
          %3977 = vmatprep.subr.mxu0 0.0
          %3978 = vmatpush1.msra.mxu0 0.0
          %3979 = vmatprep.subr.mxu0 0.0
          %3980 = vmatpush1.msra.mxu0 0.0
          %3981 = vmatprep.subr.mxu0 0.0
          %3982 = vmatpush1.msra.mxu0 0.0
          %3983 = vmatprep.subr.mxu0 0.0
          %3984 = vmatpush1.msra.mxu0 0.0
          %3985 = vmatprep.subr.mxu0 0.0
          %3986 = vmatpush1.msra.mxu0 0.0
          %3987 = vmatprep.subr.mxu0 0.0
          %3988 = vmatpush1.msra.mxu0 0.0
          %v3989 = vand.u32 %v3879, 4294901760
          %v3990 = vsub.f32 %v3879, %v3989
          %v3991 = vand.u32 %v3990, 4294901760
          %v3992 = vsub.f32 %v3990, %v3991
          %v3993 = vand.u32 %v3992, 4294901760
          %3994 = vmatprep.subr.mxu0 %v3993
          %v3995 = vand.u32 %v3877, 4294901760
          %v3996 = vsub.f32 %v3877, %v3995
          %v3997 = vand.u32 %v3996, 4294901760
          %v3998 = vsub.f32 %v3996, %v3997
          %v3999 = vand.u32 %v3998, 4294901760
          %4000 = vmatpush1.msra.mxu0 %v3999
          %4001 = vmatprep.subr.mxu0 0.0
          %4002 = vmatpush2.msra.mxu0 0.0
          %4003 = vmatprep.subr.mxu0 0.0
          %4004 = vmatpush2.msra.mxu0 0.0
          %4005 = vmatprep.subr.mxu0 0.0
          %4006 = vmatpush2.msra.mxu0 0.0
          %4007 = vmatprep.subr.mxu0 0.0
          %4008 = vmatpush2.msra.mxu0 0.0
          %4009 = vmatprep.subr.mxu0 0.0
          %4010 = vmatpush2.msra.mxu0 0.0
          %4011 = vmatprep.subr.mxu0 0.0
          %4012 = vmatpush2.msra.mxu0 0.0
          %4013 = vmatprep.subr.mxu0 0.0
          %4014 = vmatpush2.msra.mxu0 0.0
          %4015 = vmatprep.subr.mxu0 0.0
          %4016 = vmatpush2.msra.mxu0 0.0
          %4017 = vmatprep.subr.mxu0 0.0
          %4018 = vmatpush2.msra.mxu0 0.0
          %4019 = vmatprep.subr.mxu0 0.0
          %4020 = vmatpush2.msra.mxu0 0.0
          %4021 = vmatprep.subr.mxu0 0.0
          %4022 = vmatpush2.msra.mxu0 0.0
          %4023 = vmatprep.subr.mxu0 0.0
          %4024 = vmatpush2.msra.mxu0 0.0
          %4025 = vmatprep.subr.mxu0 0.0
          %4026 = vmatpush2.msra.mxu0 0.0
          %4027 = vmatprep.subr.mxu0 0.0
          %4028 = vmatpush2.msra.mxu0 0.0
          %4029 = vmatprep.subr.mxu0 0.0
          %4030 = vmatpush2.msra.mxu0 0.0
          %4031 = vmatprep.subr.mxu0 0.0
          %4032 = vmatpush2.msra.mxu0 0.0
          %4033 = vmatprep.mubr.f32.mxu0 0.0
          %v4034 = vand.u32 %v3385, 4294901760
          %4035 = vmatmul.mubr.f32.gmra.mxu0 %v4034
          %v4036 = vpop.f32.mrf.mxu0
          %v4037 = vadd.f32 %v3955, %v4036
          %v4038 = vpop.f32.mrf.mxu0
          %v4039 = vadd.f32 %v3957, %v4038
          %4040 = vdwg.mxu0
          %4041 = vmatprep.subr.mxu0 0.0
          %4042 = vmatpush1.msra.mxu0 0.0
          %4043 = vmatprep.subr.mxu0 0.0
          %4044 = vmatpush1.msra.mxu0 0.0
          %4045 = vmatprep.subr.mxu0 0.0
          %4046 = vmatpush1.msra.mxu0 0.0
          %4047 = vmatprep.subr.mxu0 0.0
          %4048 = vmatpush1.msra.mxu0 0.0
          %4049 = vmatprep.subr.mxu0 0.0
          %4050 = vmatpush1.msra.mxu0 0.0
          %4051 = vmatprep.subr.mxu0 0.0
          %4052 = vmatpush1.msra.mxu0 0.0
          %4053 = vmatprep.subr.mxu0 0.0
          %4054 = vmatpush1.msra.mxu0 0.0
          %4055 = vmatprep.subr.mxu0 0.0
          %4056 = vmatpush1.msra.mxu0 0.0
          %4057 = vmatprep.subr.mxu0 0.0
          %4058 = vmatpush1.msra.mxu0 0.0
          %4059 = vmatprep.subr.mxu0 0.0
          %4060 = vmatpush1.msra.mxu0 0.0
          %4061 = vmatprep.subr.mxu0 0.0
          %4062 = vmatpush1.msra.mxu0 0.0
          %4063 = vmatprep.subr.mxu0 0.0
          %4064 = vmatpush1.msra.mxu0 0.0
          %4065 = vmatprep.subr.mxu0 0.0
          %4066 = vmatpush1.msra.mxu0 0.0
          %4067 = vmatprep.subr.mxu0 0.0
          %4068 = vmatpush1.msra.mxu0 0.0
          %4069 = vmatprep.subr.mxu0 0.0
          %4070 = vmatpush1.msra.mxu0 0.0
          %v4071 = vand.u32 %v3879, 4294901760
          %v4072 = vsub.f32 %v3879, %v4071
          %4073 = vmatprep.subr.mxu0 %v4072
          %v4074 = vand.u32 %v3877, 4294901760
          %v4075 = vsub.f32 %v3877, %v4074
          %4076 = vmatpush1.msra.mxu0 %v4075
          %4077 = vmatprep.subr.mxu0 0.0
          %4078 = vmatpush2.msra.mxu0 0.0
          %4079 = vmatprep.subr.mxu0 0.0
          %4080 = vmatpush2.msra.mxu0 0.0
          %4081 = vmatprep.subr.mxu0 0.0
          %4082 = vmatpush2.msra.mxu0 0.0
          %4083 = vmatprep.subr.mxu0 0.0
          %4084 = vmatpush2.msra.mxu0 0.0
          %4085 = vmatprep.subr.mxu0 0.0
          %4086 = vmatpush2.msra.mxu0 0.0
          %4087 = vmatprep.subr.mxu0 0.0
          %4088 = vmatpush2.msra.mxu0 0.0
          %4089 = vmatprep.subr.mxu0 0.0
          %4090 = vmatpush2.msra.mxu0 0.0
          %4091 = vmatprep.subr.mxu0 0.0
          %4092 = vmatpush2.msra.mxu0 0.0
          %4093 = vmatprep.subr.mxu0 0.0
          %4094 = vmatpush2.msra.mxu0 0.0
          %4095 = vmatprep.subr.mxu0 0.0
          %4096 = vmatpush2.msra.mxu0 0.0
          %4097 = vmatprep.subr.mxu0 0.0
          %4098 = vmatpush2.msra.mxu0 0.0
          %4099 = vmatprep.subr.mxu0 0.0
          %4100 = vmatpush2.msra.mxu0 0.0
          %4101 = vmatprep.subr.mxu0 0.0
          %4102 = vmatpush2.msra.mxu0 0.0
          %4103 = vmatprep.subr.mxu0 0.0
          %4104 = vmatpush2.msra.mxu0 0.0
          %4105 = vmatprep.subr.mxu0 0.0
          %4106 = vmatpush2.msra.mxu0 0.0
          %4107 = vmatprep.subr.mxu0 0.0
          %4108 = vmatpush2.msra.mxu0 0.0
          %4109 = vmatprep.mubr.f32.mxu0 0.0
          %v4110 = vand.u32 %v3385, 4294901760
          %v4111 = vsub.f32 %v3385, %v4110
          %4112 = vmatmul.mubr.f32.gmra.mxu0 %v4111
          %v4113 = vpop.f32.mrf.mxu0
          %v4114 = vadd.f32 %v4037, %v4113
          %v4115 = vpop.f32.mrf.mxu0
          %v4116 = vadd.f32 %v4039, %v4115
          %4117 = vdwg.mxu0
          %4118 = vmatprep.subr.mxu0 0.0
          %4119 = vmatpush1.msra.mxu0 0.0
          %4120 = vmatprep.subr.mxu0 0.0
          %4121 = vmatpush1.msra.mxu0 0.0
          %4122 = vmatprep.subr.mxu0 0.0
          %4123 = vmatpush1.msra.mxu0 0.0
          %4124 = vmatprep.subr.mxu0 0.0
          %4125 = vmatpush1.msra.mxu0 0.0
          %4126 = vmatprep.subr.mxu0 0.0
          %4127 = vmatpush1.msra.mxu0 0.0
          %4128 = vmatprep.subr.mxu0 0.0
          %4129 = vmatpush1.msra.mxu0 0.0
          %4130 = vmatprep.subr.mxu0 0.0
          %4131 = vmatpush1.msra.mxu0 0.0
          %4132 = vmatprep.subr.mxu0 0.0
          %4133 = vmatpush1.msra.mxu0 0.0
          %4134 = vmatprep.subr.mxu0 0.0
          %4135 = vmatpush1.msra.mxu0 0.0
          %4136 = vmatprep.subr.mxu0 0.0
          %4137 = vmatpush1.msra.mxu0 0.0
          %4138 = vmatprep.subr.mxu0 0.0
          %4139 = vmatpush1.msra.mxu0 0.0
          %4140 = vmatprep.subr.mxu0 0.0
          %4141 = vmatpush1.msra.mxu0 0.0
          %4142 = vmatprep.subr.mxu0 0.0
          %4143 = vmatpush1.msra.mxu0 0.0
          %4144 = vmatprep.subr.mxu0 0.0
          %4145 = vmatpush1.msra.mxu0 0.0
          %4146 = vmatprep.subr.mxu0 0.0
          %4147 = vmatpush1.msra.mxu0 0.0
          %v4148 = vand.u32 %v3879, 4294901760
          %4149 = vmatprep.subr.mxu0 %v4148
          %v4150 = vand.u32 %v3877, 4294901760
          %4151 = vmatpush1.msra.mxu0 %v4150
          %4152 = vmatprep.subr.mxu0 0.0
          %4153 = vmatpush2.msra.mxu0 0.0
          %4154 = vmatprep.subr.mxu0 0.0
          %4155 = vmatpush2.msra.mxu0 0.0
          %4156 = vmatprep.subr.mxu0 0.0
          %4157 = vmatpush2.msra.mxu0 0.0
          %4158 = vmatprep.subr.mxu0 0.0
          %4159 = vmatpush2.msra.mxu0 0.0
          %4160 = vmatprep.subr.mxu0 0.0
          %4161 = vmatpush2.msra.mxu0 0.0
          %4162 = vmatprep.subr.mxu0 0.0
          %4163 = vmatpush2.msra.mxu0 0.0
          %4164 = vmatprep.subr.mxu0 0.0
          %4165 = vmatpush2.msra.mxu0 0.0
          %4166 = vmatprep.subr.mxu0 0.0
          %4167 = vmatpush2.msra.mxu0 0.0
          %4168 = vmatprep.subr.mxu0 0.0
          %4169 = vmatpush2.msra.mxu0 0.0
          %4170 = vmatprep.subr.mxu0 0.0
          %4171 = vmatpush2.msra.mxu0 0.0
          %4172 = vmatprep.subr.mxu0 0.0
          %4173 = vmatpush2.msra.mxu0 0.0
          %4174 = vmatprep.subr.mxu0 0.0
          %4175 = vmatpush2.msra.mxu0 0.0
          %4176 = vmatprep.subr.mxu0 0.0
          %4177 = vmatpush2.msra.mxu0 0.0
          %4178 = vmatprep.subr.mxu0 0.0
          %4179 = vmatpush2.msra.mxu0 0.0
          %4180 = vmatprep.subr.mxu0 0.0
          %4181 = vmatpush2.msra.mxu0 0.0
          %4182 = vmatprep.subr.mxu0 0.0
          %4183 = vmatpush2.msra.mxu0 0.0
          %4184 = vmatprep.mubr.f32.mxu0 0.0
          %v4185 = vand.u32 %v3385, 4294901760
          %v4186 = vsub.f32 %v3385, %v4185
          %v4187 = vand.u32 %v4186, 4294901760
          %4188 = vmatmul.mubr.f32.gmra.mxu0 %v4187
          %v4189 = vpop.f32.mrf.mxu0
          %v4190 = vadd.f32 %v4114, %v4189
          %v4191 = vpop.f32.mrf.mxu0
          %v4192 = vadd.f32 %v4116, %v4191
          %4193 = vdwg.mxu0
          %4194 = vmatprep.subr.mxu0 0.0
          %4195 = vmatpush1.msra.mxu0 0.0
          %4196 = vmatprep.subr.mxu0 0.0
          %4197 = vmatpush1.msra.mxu0 0.0
          %4198 = vmatprep.subr.mxu0 0.0
          %4199 = vmatpush1.msra.mxu0 0.0
          %4200 = vmatprep.subr.mxu0 0.0
          %4201 = vmatpush1.msra.mxu0 0.0
          %4202 = vmatprep.subr.mxu0 0.0
          %4203 = vmatpush1.msra.mxu0 0.0
          %4204 = vmatprep.subr.mxu0 0.0
          %4205 = vmatpush1.msra.mxu0 0.0
          %4206 = vmatprep.subr.mxu0 0.0
          %4207 = vmatpush1.msra.mxu0 0.0
          %4208 = vmatprep.subr.mxu0 0.0
          %4209 = vmatpush1.msra.mxu0 0.0
          %4210 = vmatprep.subr.mxu0 0.0
          %4211 = vmatpush1.msra.mxu0 0.0
          %4212 = vmatprep.subr.mxu0 0.0
          %4213 = vmatpush1.msra.mxu0 0.0
          %4214 = vmatprep.subr.mxu0 0.0
          %4215 = vmatpush1.msra.mxu0 0.0
          %4216 = vmatprep.subr.mxu0 0.0
          %4217 = vmatpush1.msra.mxu0 0.0
          %4218 = vmatprep.subr.mxu0 0.0
          %4219 = vmatpush1.msra.mxu0 0.0
          %4220 = vmatprep.subr.mxu0 0.0
          %4221 = vmatpush1.msra.mxu0 0.0
          %4222 = vmatprep.subr.mxu0 0.0
          %4223 = vmatpush1.msra.mxu0 0.0
          %v4224 = vand.u32 %v3879, 4294901760
          %v4225 = vsub.f32 %v3879, %v4224
          %v4226 = vand.u32 %v4225, 4294901760
          %4227 = vmatprep.subr.mxu0 %v4226
          %v4228 = vand.u32 %v3877, 4294901760
          %v4229 = vsub.f32 %v3877, %v4228
          %v4230 = vand.u32 %v4229, 4294901760
          %4231 = vmatpush1.msra.mxu0 %v4230
          %4232 = vmatprep.subr.mxu0 0.0
          %4233 = vmatpush2.msra.mxu0 0.0
          %4234 = vmatprep.subr.mxu0 0.0
          %4235 = vmatpush2.msra.mxu0 0.0
          %4236 = vmatprep.subr.mxu0 0.0
          %4237 = vmatpush2.msra.mxu0 0.0
          %4238 = vmatprep.subr.mxu0 0.0
          %4239 = vmatpush2.msra.mxu0 0.0
          %4240 = vmatprep.subr.mxu0 0.0
          %4241 = vmatpush2.msra.mxu0 0.0
          %4242 = vmatprep.subr.mxu0 0.0
          %4243 = vmatpush2.msra.mxu0 0.0
          %4244 = vmatprep.subr.mxu0 0.0
          %4245 = vmatpush2.msra.mxu0 0.0
          %4246 = vmatprep.subr.mxu0 0.0
          %4247 = vmatpush2.msra.mxu0 0.0
          %4248 = vmatprep.subr.mxu0 0.0
          %4249 = vmatpush2.msra.mxu0 0.0
          %4250 = vmatprep.subr.mxu0 0.0
          %4251 = vmatpush2.msra.mxu0 0.0
          %4252 = vmatprep.subr.mxu0 0.0
          %4253 = vmatpush2.msra.mxu0 0.0
          %4254 = vmatprep.subr.mxu0 0.0
          %4255 = vmatpush2.msra.mxu0 0.0
          %4256 = vmatprep.subr.mxu0 0.0
          %4257 = vmatpush2.msra.mxu0 0.0
          %4258 = vmatprep.subr.mxu0 0.0
          %4259 = vmatpush2.msra.mxu0 0.0
          %4260 = vmatprep.subr.mxu0 0.0
          %4261 = vmatpush2.msra.mxu0 0.0
          %4262 = vmatprep.subr.mxu0 0.0
          %4263 = vmatpush2.msra.mxu0 0.0
          %4264 = vmatprep.mubr.f32.mxu0 0.0
          %v4265 = vand.u32 %v3385, 4294901760
          %4266 = vmatmul.mubr.f32.gmra.mxu0 %v4265
          %v4267 = vpop.f32.mrf.mxu0
          %v4268 = vadd.f32 %v4190, %v4267
          %v4269 = vpop.f32.mrf.mxu0
          %v4270 = vadd.f32 %v4192, %v4269
          %4271 = vdwg.mxu0
          %4272 = vmatprep.subr.mxu0 0.0
          %4273 = vmatpush1.msra.mxu0 0.0
          %4274 = vmatprep.subr.mxu0 0.0
          %4275 = vmatpush1.msra.mxu0 0.0
          %4276 = vmatprep.subr.mxu0 0.0
          %4277 = vmatpush1.msra.mxu0 0.0
          %4278 = vmatprep.subr.mxu0 0.0
          %4279 = vmatpush1.msra.mxu0 0.0
          %4280 = vmatprep.subr.mxu0 0.0
          %4281 = vmatpush1.msra.mxu0 0.0
          %4282 = vmatprep.subr.mxu0 0.0
          %4283 = vmatpush1.msra.mxu0 0.0
          %4284 = vmatprep.subr.mxu0 0.0
          %4285 = vmatpush1.msra.mxu0 0.0
          %4286 = vmatprep.subr.mxu0 0.0
          %4287 = vmatpush1.msra.mxu0 0.0
          %4288 = vmatprep.subr.mxu0 0.0
          %4289 = vmatpush1.msra.mxu0 0.0
          %4290 = vmatprep.subr.mxu0 0.0
          %4291 = vmatpush1.msra.mxu0 0.0
          %4292 = vmatprep.subr.mxu0 0.0
          %4293 = vmatpush1.msra.mxu0 0.0
          %4294 = vmatprep.subr.mxu0 0.0
          %4295 = vmatpush1.msra.mxu0 0.0
          %4296 = vmatprep.subr.mxu0 0.0
          %4297 = vmatpush1.msra.mxu0 0.0
          %4298 = vmatprep.subr.mxu0 0.0
          %4299 = vmatpush1.msra.mxu0 0.0
          %4300 = vmatprep.subr.mxu0 0.0
          %4301 = vmatpush1.msra.mxu0 0.0
          %v4302 = vand.u32 %v3879, 4294901760
          %4303 = vmatprep.subr.mxu0 %v4302
          %v4304 = vand.u32 %v3877, 4294901760
          %4305 = vmatpush1.msra.mxu0 %v4304
          %4306 = vmatprep.subr.mxu0 0.0
          %4307 = vmatpush2.msra.mxu0 0.0
          %4308 = vmatprep.subr.mxu0 0.0
          %4309 = vmatpush2.msra.mxu0 0.0
          %4310 = vmatprep.subr.mxu0 0.0
          %4311 = vmatpush2.msra.mxu0 0.0
          %4312 = vmatprep.subr.mxu0 0.0
          %4313 = vmatpush2.msra.mxu0 0.0
          %4314 = vmatprep.subr.mxu0 0.0
          %4315 = vmatpush2.msra.mxu0 0.0
          %4316 = vmatprep.subr.mxu0 0.0
          %4317 = vmatpush2.msra.mxu0 0.0
          %4318 = vmatprep.subr.mxu0 0.0
          %4319 = vmatpush2.msra.mxu0 0.0
          %4320 = vmatprep.subr.mxu0 0.0
          %4321 = vmatpush2.msra.mxu0 0.0
          %4322 = vmatprep.subr.mxu0 0.0
          %4323 = vmatpush2.msra.mxu0 0.0
          %4324 = vmatprep.subr.mxu0 0.0
          %4325 = vmatpush2.msra.mxu0 0.0
          %4326 = vmatprep.subr.mxu0 0.0
          %4327 = vmatpush2.msra.mxu0 0.0
          %4328 = vmatprep.subr.mxu0 0.0
          %4329 = vmatpush2.msra.mxu0 0.0
          %4330 = vmatprep.subr.mxu0 0.0
          %4331 = vmatpush2.msra.mxu0 0.0
          %4332 = vmatprep.subr.mxu0 0.0
          %4333 = vmatpush2.msra.mxu0 0.0
          %4334 = vmatprep.subr.mxu0 0.0
          %4335 = vmatpush2.msra.mxu0 0.0
          %4336 = vmatprep.subr.mxu0 0.0
          %4337 = vmatpush2.msra.mxu0 0.0
          %4338 = vmatprep.mubr.f32.mxu0 0.0
          %v4339 = vand.u32 %v3385, 4294901760
          %4340 = vmatmul.mubr.f32.gmra.mxu0 %v4339
          %v4341 = vpop.f32.mrf.mxu0
          %v4342 = vadd.f32 %v4268, %v4341
          %v4343 = vpop.f32.mrf.mxu0
          %v4344 = vadd.f32 %v4270, %v4343
          %4345 = vdwg.mxu0
          %v4346 = vmul.f32 %v3862, %v4342
          %v4347 = vmul.f32 %v3862, %v4344
          %v4348 = vadd.f32 %v4346, %v3869
          %v4349 = vadd.f32 %v4347, %v3869
          %4350 = vst [vmem:[%s310 + $0x10] sm:$0xff] %v4348
          %4351 = vst [vmem:[%s310 + $0x18] sm:$0xff] %v4349
        $region68: #{tpu_custom_call.1} parent=47 // pred_fallthru
          _
        %s4352 = sand.u32 %s200, 1
        %s4353 = scalar_lea.sflag [#allocation11], %s4352
        %s4354 = sand.u32 %s200, 1
        %s4355 = smul.addr %s4354, 32
        %s4356 = scalar_lea.vmem [#allocation12], %s4355
        // Predicated region
        $region69: #{tpu_custom_call.1} parent=47 // pred_check
          %p4357 = pneg %p210
        $region70: #{tpu_custom_call.1} parent=47 // pred_check_branch
          %4359 = sbr.rel (%p4357) target = $region72
        $region71: #{tpu_custom_call.1} parent=47 // pred_region
          %s4360 = smul.u32 %s27, %s26
          %s4361 = smul.u32 2, %s4360
          %s4363 = ssub.s32 512, 512
          %4364 = vsyncadd %s4353, %s4363
          %s4365 = smul.addr %s4361, 2
          %s4366 = smul.addr %s4365, 128
          %s4367 = scalar_lea.hbm %s7, %s4366
          %s4368 = sshll.u32 %s4356, 4
          %s4369 = int_to_ptr.vmem [resolvable:$true] %s4368
          %4374 = dma.vmem_to_hbm [thread:$0]  %s4369, 512, %s4367, %s4353, 256, 256, 16
        $region72: #{tpu_custom_call.1} parent=47 // pred_fallthru
          _
      $region48: #{tpu_custom_call.1} parent=5 // pred_fallthru
        _
      %p4375 = scmp.le.s32.totalorder 2, %s17
      // Predicated region
      $region73: #{tpu_custom_call.1} parent=5 // pred_check
        %p4376 = pneg %p4375
      $region74: #{tpu_custom_call.1} parent=5 // pred_check_branch
        %4378 = sbr.rel (%p4376) target = $region76
      $region75: #{tpu_custom_call.1} parent=5 // pred_region
        %s4379 = ssub.s32 %s17, 2
        // Predicated region
        $region77: #{tpu_custom_call.1} parent=75 // pred_check
          %p4380 = pneg %p216
        $region78: #{tpu_custom_call.1} parent=75 // pred_check_branch
          %4382 = sbr.rel (%p4380) target = $region80
        $region79: #{tpu_custom_call.1} parent=75 // pred_region
          %s4383 = sand.u32 %s201, 1
          %s4384 = scalar_lea.sflag [#allocation11], %s4383
          %s4385 = sand.u32 %s201, 1
          %s4386 = smul.addr %s4385, 32
          %s4387 = scalar_lea.vmem [#allocation12], %s4386
          %4388 = dma.done %s4384, 512
        $region80: #{tpu_custom_call.1} parent=75 // pred_fallthru
          _
      $region76: #{tpu_custom_call.1} parent=5 // pred_fallthru
        _
    $region6: #{tpu_custom_call.1} parent=1 // loop_footer
      %s21 = sadd.s32 1, %s17
    $region7: #{tpu_custom_call.1} parent=1 // loop_footer_branch
      %16 = sbr.rel target = $region3
    $region8: #{tpu_custom_call.1} parent=1 // loop_exit
      _
    %4389 = vsyncpa [#allocation10], 1
    %s4390 = scalar_lea.sflag [#allocation10], 1
    %4391 = vsyncpa %s4390, 1
    %4392 = vsyncpa [#allocation11], 1
    %s4393 = scalar_lea.sflag [#allocation11], 1
    %4394 = vsyncpa %s4393, 1

</llo_original>
